<compile_context>
chip_gen: v7x
topology: tpu7x:2x2x1
jax: 0.10.0
libtpu: 0.0.40
codegen_flags: <defaults>
</compile_context>

<pallas_src>
import math
import jax
import jax.numpy as jnp
from jax import lax
from jax.experimental import pallas as pl
from jax.experimental.pallas import tpu as pltpu

NOUT = 128  # lane-padded head / output width


def make_rpn_kernel(A, TH, W, Cin):
    two_a = 2 * A
    six_a = 6 * A

    def rpn_kernel(xh_ref, ws_ref, bs_ref, wh_ref, bh_ref, out_ref):
        # xh_ref: (1, TH+2, W+2, Cin) bf16  NHWC halo tile (SAME-padded rows/cols)
        # ws_ref: (9*Cin, Cmid)       bf16  folded 3x3 conv weights (ky-major, kx, cin)
        # bs_ref: (1, Cmid)           f32
        # wh_ref: (Cmid, 128)         bf16  columns [cls0(A)|cls1(A)|bbox(4A)|cls1-cls0(A)|0...]
        # bh_ref: (1, 128)            f32
        # out_ref:(1, TH*W, 128)      f32   columns [l0(A)|l1(A)|bbox(4A)|p0(A)|p1(A)|0...]
        tile = xh_ref[0]                                              # (TH+2, W+2, Cin)

        # In-VMEM im2col: 9 statically shifted (TH, W, Cin) views -> (TH*W, 9*Cin) bf16.
        # These shifts are VMEM/XLU-only work; HBM saw only ~1x activation bytes.
        cols = [tile[ky:ky + TH, kx:kx + W, :] for ky in range(3) for kx in range(3)]
        xcol = jnp.concatenate(cols, axis=-1).reshape(TH * W, 9 * Cin)

        # 3x3 conv as ONE K=9*Cin MXU matmul, + bias, + ReLU (f32 accumulation).
        shared = jnp.dot(xcol, ws_ref[...], preferred_element_type=jnp.float32)
        shared = jnp.maximum(shared + bs_ref[...], 0.0)               # (TH*W, Cmid) f32

        # Merged class+bbox head: single lane-padded (Cmid, 128) matmul + bias.
        head = jnp.dot(shared.astype(jnp.bfloat16), wh_ref[...],
                       preferred_element_type=jnp.float32) + bh_ref[...]   # (TH*W, 128)

        # Fused 2-class softmax: diff column group already holds l1 - l0.
        diff = head[:, six_a:six_a + A]
        p1 = 1.0 / (1.0 + jnp.exp(-diff))
        p0 = 1.0 - p1

        # Single lane-dense (TH*W, 128) slab -> one unmasked full-width store.
        logits_bbox = head[:, :six_a]                                 # [l0 | l1 | bbox]
        zpad = jnp.zeros((TH * W, NOUT - 8 * A), head.dtype)
        out_ref[0] = jnp.concatenate([logits_bbox, p0, p1, zpad], axis=-1)

    return rpn_kernel


def _pick_strip_rows(H, W, B):
    """Rows per strip: ~1024 output positions per step, divisor of H, >=2 grid steps if possible."""
    target = max(1, 1024 // max(W, 1))
    divisors = [d for d in range(1, H + 1) if H % d == 0]
    th = max([d for d in divisors if d <= target] or [1])
    if B * (H // th) < 2:                    # v7x has 2 TensorCores: avoid a 1-step grid
        smaller = [d for d in divisors if d < H]
        if smaller:
            th = max(smaller)
    return th


def _vmem_limit_bytes():
    try:
        kind = jax.devices()[0].device_kind.lower()
    except Exception:
        kind = ""
    if "v5" in kind or "v6" in kind:
        return 64 * 1024 * 1024              # 128 MiB physical VMEM: allow bigger strips
    return 48 * 1024 * 1024                  # v7x: 64 MiB per TC, leave headroom


def _rpn_forward_impl(x_nchw, params, anchors_per_location, anchor_stride):
    """Returns [rpn_class_logits, rpn_probs, rpn_bbox] matching the PyTorch RPN head."""
    assert anchor_stride == 1, "this kernel implements the typical anchor_stride=1 case"
    A = anchors_per_location
    assert 8 * A <= NOUT
    B, Cin, H, W = x_nchw.shape
    Cmid = params["w_shared"].shape[-1]      # 512
    HW = H * W
    K = 9 * Cin

    TH = _pick_strip_rows(H, W, B)
    S = H // TH

    # --- wrapper: NHWC + SAME pad + TH-row strips with a 1-row halo (tiny duplication) --------
    x = jnp.transpose(x_nchw, (0, 2, 3, 1)).astype(jnp.bfloat16)      # NCHW -> NHWC, bf16
    x_pad = jnp.pad(x, ((0, 0), (1, 1), (1, 1), (0, 0)))              # (B, H+2, W+2, Cin)
    strips = jnp.stack([x_pad[:, s * TH:s * TH + TH + 2] for s in range(S)], axis=1)
    strips = strips.reshape(B * S, TH + 2, W + 2, Cin)                # (B*S, TH+2, W+2, Cin)

    # Folded 3x3 weights (3,3,Cin,Cmid) HWIO -> (9*Cin, Cmid), matching the in-kernel tap order.
    ws_col = params["w_shared"].reshape(K, Cmid).astype(jnp.bfloat16)
    bs = params["b_shared"].reshape(1, Cmid).astype(jnp.float32)

    # Merged, lane-padded head: columns [cls0(A) | cls1(A) | bbox(4A) | cls1-cls0(A) | zeros].
    wc, bc = params["w_class"], params["b_class"]                     # channel order 2*a + cls
    w0, w1 = wc[:, 0::2], wc[:, 1::2]
    b0, b1 = bc[0::2], bc[1::2]
    w_head = jnp.concatenate(
        [w0, w1, params["w_bbox"], w1 - w0,
         jnp.zeros((Cmid, NOUT - 7 * A), wc.dtype)], axis=1).astype(jnp.bfloat16)
    b_head = jnp.concatenate(
        [b0, b1, params["b_bbox"], b1 - b0,
         jnp.zeros((NOUT - 7 * A,), bc.dtype)]).reshape(1, NOUT).astype(jnp.float32)

    cost = pl.CostEstimate(
        flops=2 * B * HW * (K * Cmid + Cmid * NOUT),
        transcendentals=B * HW * A,
        bytes_accessed=int(strips.size) * 2 + int(ws_col.size) * 2 + int(w_head.size) * 2
                       + int(bs.size) * 4 + int(b_head.size) * 4
                       + B * S * TH * W * NOUT * 4,
    )

    out = pl.pallas_call(
        make_rpn_kernel(A, TH, W, Cin),
        out_shape=jax.ShapeDtypeStruct((B * S, TH * W, NOUT), jnp.float32),
        grid_spec=pltpu.PrefetchScalarGridSpec(
            num_scalar_prefetch=0,
            grid=(B * S,),
            in_specs=[
                pl.BlockSpec((1, TH + 2, W + 2, Cin), lambda i: (i, 0, 0, 0)),
                pl.BlockSpec((K, Cmid), lambda i: (0, 0)),
                pl.BlockSpec((1, Cmid), lambda i: (0, 0)),
                pl.BlockSpec((Cmid, NOUT), lambda i: (0, 0)),
                pl.BlockSpec((1, NOUT), lambda i: (0, 0)),
            ],
            out_specs=pl.BlockSpec((1, TH * W, NOUT), lambda i: (i, 0, 0)),
        ),
        compiler_params=pltpu.CompilerParams(
            dimension_semantics=("parallel",),
            vmem_limit_bytes=_vmem_limit_bytes(),
        ),
        cost_estimate=cost,
    )(strips, ws_col, bs, w_head, b_head)

    out = out.reshape(B, HW, NOUT)

    # Recover the PyTorch layouts: permute(0,2,3,1).view(B, H*W*A, 2/4).
    def deinterleave(y):   # (B, HW, [g0(A)|g1(A)]) -> (B, HW*A, 2)
        return y.reshape(B, HW, 2, A).transpose(0, 1, 3, 2).reshape(B, HW * A, 2)

    rpn_class_logits = deinterleave(out[:, :, 0:2 * A])
    rpn_bbox = out[:, :, 2 * A:6 * A].reshape(B, HW * A, 4)
    rpn_probs = deinterleave(out[:, :, 6 * A:8 * A])
    return [rpn_class_logits, rpn_probs, rpn_bbox]


rpn_forward = jax.jit(_rpn_forward_impl, static_argnums=(2, 3))


def rpn_reference(x_nchw, params, anchors_per_location):
    """Pure-JAX (XLA) reference with the same bf16 quantization points as the kernel."""
    A = anchors_per_location
    B, Cin, H, W = x_nchw.shape
    x = jnp.transpose(x_nchw, (0, 2, 3, 1)).astype(jnp.bfloat16)
    shared = lax.conv_general_dilated(
        x, params["w_shared"].astype(jnp.bfloat16), window_strides=(1, 1), padding="SAME",
        dimension_numbers=("NHWC", "HWIO", "NHWC"),
        preferred_element_type=jnp.float32)
    shared = jnp.maximum(shared + params["b_shared"], 0.0)
    shared_b = shared.astype(jnp.bfloat16)
    logits = jnp.einsum("bhwc,cd->bhwd", shared_b, params["w_class"].astype(jnp.bfloat16),
                        preferred_element_type=jnp.float32) + params["b_class"]
    bbox = jnp.einsum("bhwc,cd->bhwd", shared_b, params["w_bbox"].astype(jnp.bfloat16),
                      preferred_element_type=jnp.float32) + params["b_bbox"]
    logits = logits.reshape(B, H * W * A, 2)
    bbox = bbox.reshape(B, H * W * A, 4)
    probs = jax.nn.softmax(logits, axis=2)
    return [logits, probs, bbox]


def init_params(key, depth, anchors_per_location, cmid=512):
    A = anchors_per_location
    ks = jax.random.split(key, 6)
    w_shared = jax.random.normal(ks[0], (3, 3, depth, cmid), jnp.float32) * (
        1.0 / math.sqrt(9 * depth))
    b_shared = jax.random.normal(ks[1], (cmid,), jnp.float32) * 0.01
    w_class = jax.random.normal(ks[2], (cmid, 2 * A), jnp.float32) * (1.0 / math.sqrt(cmid))
    b_class = jax.random.normal(ks[3], (2 * A,), jnp.float32) * 0.01
    w_bbox = jax.random.normal(ks[4], (cmid, 4 * A), jnp.float32) * (1.0 / math.sqrt(cmid))
    b_bbox = jax.random.normal(ks[5], (4 * A,), jnp.float32) * 0.01
    return dict(w_shared=w_shared, b_shared=b_shared,
                w_class=w_class, b_class=b_class,
                w_bbox=w_bbox, b_bbox=b_bbox)


if __name__ == "__main__":
    B, depth, H, W = 2, 32, 16, 16
    anchors_per_location = 3
    anchor_stride = 1

    key = jax.random.PRNGKey(0)
    kx, kp = jax.random.split(key)
    x = jax.random.normal(kx, (B, depth, H, W), jnp.float32)
    params = init_params(kp, depth, anchors_per_location)

    logits, probs, bbox = rpn_forward(x, params, anchors_per_location, anchor_stride)
    jax.block_until_ready((logits, probs, bbox))

    ref_logits, ref_probs, ref_bbox = rpn_reference(x, params, anchors_per_location)
    N = H * W * anchors_per_location
    assert logits.shape == (B, N, 2)
    assert probs.shape == (B, N, 2)
    assert bbox.shape == (B, N, 4)
    assert jnp.allclose(logits, ref_logits, rtol=1e-2, atol=1e-2)
    assert jnp.allclose(probs, ref_probs, rtol=1e-2, atol=1e-2)
    assert jnp.allclose(bbox, ref_bbox, rtol=1e-2, atol=1e-2)

    print("KERNEL_OK")
</pallas_src>

<mosaic_0001>
module attributes {stable_mosaic.version = 11 : i64} {
  func.func @rpn_kernel(%arg0: i32, %arg1: memref<1x18x18x32xbf16, #tpu.memory_space<vmem>>, %arg2: memref<288x512xbf16, #tpu.memory_space<vmem>>, %arg3: memref<1x512xf32, #tpu.memory_space<vmem>>, %arg4: memref<512x128xbf16, #tpu.memory_space<vmem>>, %arg5: memref<1x128xf32, #tpu.memory_space<vmem>>, %arg6: memref<1x256x128xf32, #tpu.memory_space<vmem>>) attributes {dimension_semantics = [#tpu.dimension_semantics<parallel>], iteration_bounds = array<i64: 2>, scalar_prefetch = 0 : i64, scratch_operands = 0 : i64, tpu.core_type = #tpu.core_type<tc>, window_params = [{transform_indices = @transform_0, window_bounds = array<i64: 1, 18, 18, 32>}, {pipeline_mode = #tpu.pipeline_mode<synchronous>, transform_indices = @transform_1, window_bounds = array<i64: 288, 512>}, {pipeline_mode = #tpu.pipeline_mode<synchronous>, transform_indices = @transform_2, window_bounds = array<i64: 1, 512>}, {pipeline_mode = #tpu.pipeline_mode<synchronous>, transform_indices = @transform_3, window_bounds = array<i64: 512, 128>}, {pipeline_mode = #tpu.pipeline_mode<synchronous>, transform_indices = @transform_4, window_bounds = array<i64: 1, 128>}, {transform_indices = @transform_5, window_bounds = array<i64: 1, 256, 128>}]} {
    %c0 = arith.constant 0 : index
    %c0_0 = arith.constant 0 : index
    %c0_1 = arith.constant 0 : index
    %c0_2 = arith.constant 0 : index
    %0 = vector.load %arg1[%c0, %c0_0, %c0_1, %c0_2] : memref<1x18x18x32xbf16, #tpu.memory_space<vmem>>, vector<1x18x18x32xbf16>
    %1 = vector.shape_cast %0 : vector<1x18x18x32xbf16> to vector<18x18x32xbf16>
    %2 = vector.extract_strided_slice %1 {offsets = [0, 0, 0], sizes = [16, 16, 32], strides = [1, 1, 1]} : vector<18x18x32xbf16> to vector<16x16x32xbf16>
    %3 = vector.extract_strided_slice %1 {offsets = [0, 1, 0], sizes = [16, 16, 32], strides = [1, 1, 1]} : vector<18x18x32xbf16> to vector<16x16x32xbf16>
    %4 = vector.extract_strided_slice %1 {offsets = [0, 2, 0], sizes = [16, 16, 32], strides = [1, 1, 1]} : vector<18x18x32xbf16> to vector<16x16x32xbf16>
    %5 = vector.extract_strided_slice %1 {offsets = [1, 0, 0], sizes = [16, 16, 32], strides = [1, 1, 1]} : vector<18x18x32xbf16> to vector<16x16x32xbf16>
    %6 = vector.extract_strided_slice %1 {offsets = [1, 1, 0], sizes = [16, 16, 32], strides = [1, 1, 1]} : vector<18x18x32xbf16> to vector<16x16x32xbf16>
    %7 = vector.extract_strided_slice %1 {offsets = [1, 2, 0], sizes = [16, 16, 32], strides = [1, 1, 1]} : vector<18x18x32xbf16> to vector<16x16x32xbf16>
    %8 = vector.extract_strided_slice %1 {offsets = [2, 0, 0], sizes = [16, 16, 32], strides = [1, 1, 1]} : vector<18x18x32xbf16> to vector<16x16x32xbf16>
    %9 = vector.extract_strided_slice %1 {offsets = [2, 1, 0], sizes = [16, 16, 32], strides = [1, 1, 1]} : vector<18x18x32xbf16> to vector<16x16x32xbf16>
    %10 = vector.extract_strided_slice %1 {offsets = [2, 2, 0], sizes = [16, 16, 32], strides = [1, 1, 1]} : vector<18x18x32xbf16> to vector<16x16x32xbf16>
    %11 = tpu.concatenate %2, %3, %4, %5, %6, %7, %8, %9, %10 in 2 : vector<16x16x32xbf16>, vector<16x16x32xbf16>, vector<16x16x32xbf16>, vector<16x16x32xbf16>, vector<16x16x32xbf16>, vector<16x16x32xbf16>, vector<16x16x32xbf16>, vector<16x16x32xbf16>, vector<16x16x32xbf16> -> vector<16x16x288xbf16>
    %12 = vector.shape_cast %11 : vector<16x16x288xbf16> to vector<256x288xbf16>
    %c0_3 = arith.constant 0 : index
    %c0_4 = arith.constant 0 : index
    %13 = vector.load %arg2[%c0_3, %c0_4] : memref<288x512xbf16, #tpu.memory_space<vmem>>, vector<288x512xbf16>
    %cst = arith.constant dense<0.000000e+00> : vector<256x512xf32>
    %14 = tpu.matmul %12, %13, %cst {dimension_numbers = #tpu.dot_dimension_numbers<[1], [0], [0], [1], [0, 0, 1, 1], [], []>} : vector<256x288xbf16>, vector<288x512xbf16>, vector<256x512xf32> -> vector<256x512xf32>
    %c0_5 = arith.constant 0 : index
    %c0_6 = arith.constant 0 : index
    %15 = vector.load %arg3[%c0_5, %c0_6] : memref<1x512xf32, #tpu.memory_space<vmem>>, vector<1x512xf32>
    %16 = vector.broadcast %15 : vector<1x512xf32> to vector<256x512xf32>
    %17 = arith.addf %14, %16 : vector<256x512xf32>
    %cst_7 = arith.constant 0.000000e+00 : f32
    %18 = vector.broadcast %cst_7 : f32 to vector<256x512xf32>
    %19 = arith.maximumf %17, %18 : vector<256x512xf32>
    %20 = arith.truncf %19 : vector<256x512xf32> to vector<256x512xbf16>
    %c0_8 = arith.constant 0 : index
    %c0_9 = arith.constant 0 : index
    %21 = vector.load %arg4[%c0_8, %c0_9] : memref<512x128xbf16, #tpu.memory_space<vmem>>, vector<512x128xbf16>
    %cst_10 = arith.constant dense<0.000000e+00> : vector<256x128xf32>
    %22 = tpu.matmul %20, %21, %cst_10 {dimension_numbers = #tpu.dot_dimension_numbers<[1], [0], [0], [1], [0, 0, 1, 1], [], []>} : vector<256x512xbf16>, vector<512x128xbf16>, vector<256x128xf32> -> vector<256x128xf32>
    %c0_11 = arith.constant 0 : index
    %c0_12 = arith.constant 0 : index
    %23 = vector.load %arg5[%c0_11, %c0_12] : memref<1x128xf32, #tpu.memory_space<vmem>>, vector<1x128xf32>
    %24 = vector.broadcast %23 : vector<1x128xf32> to vector<256x128xf32>
    %25 = arith.addf %22, %24 : vector<256x128xf32>
    %26 = vector.extract_strided_slice %25 {offsets = [0, 18], sizes = [256, 3], strides = [1, 1]} : vector<256x128xf32> to vector<256x3xf32>
    %cst_13 = arith.constant 0.000000e+00 : f32
    %27 = vector.broadcast %cst_13 : f32 to vector<256x3xf32>
    %28 = arith.subf %27, %26 : vector<256x3xf32>
    %29 = math.exp %28 : vector<256x3xf32>
    %cst_14 = arith.constant 1.000000e+00 : f32
    %30 = vector.broadcast %cst_14 : f32 to vector<256x3xf32>
    %31 = arith.addf %30, %29 : vector<256x3xf32>
    %cst_15 = arith.constant 1.000000e+00 : f32
    %32 = vector.broadcast %cst_15 : f32 to vector<256x3xf32>
    %33 = arith.divf %32, %31 : vector<256x3xf32>
    %cst_16 = arith.constant 1.000000e+00 : f32
    %34 = vector.broadcast %cst_16 : f32 to vector<256x3xf32>
    %35 = arith.subf %34, %33 : vector<256x3xf32>
    %36 = vector.extract_strided_slice %25 {offsets = [0, 0], sizes = [256, 18], strides = [1, 1]} : vector<256x128xf32> to vector<256x18xf32>
    %cst_17 = arith.constant 0.000000e+00 : f32
    %37 = vector.broadcast %cst_17 : f32 to vector<256x104xf32>
    %38 = tpu.concatenate %36, %35, %33, %37 in 1 : vector<256x18xf32>, vector<256x3xf32>, vector<256x3xf32>, vector<256x104xf32> -> vector<256x128xf32>
    %c0_18 = arith.constant 0 : index
    %c0_19 = arith.constant 0 : index
    %c0_20 = arith.constant 0 : index
    %39 = vector.load %arg6[%c0_18, %c0_19, %c0_20] : memref<1x256x128xf32, #tpu.memory_space<vmem>>, vector<1x256x128xf32>
    %40 = vector.shape_cast %39 : vector<1x256x128xf32> to vector<256x128xf32>
    %41 = vector.shape_cast %38 : vector<256x128xf32> to vector<1x256x128xf32>
    tpu.vector_store %arg6[%c0_18, %c0_19, %c0_20], %41 {strides = array<i32>} : memref<1x256x128xf32, #tpu.memory_space<vmem>>, vector<1x256x128xf32>,
    return
  }
  func.func @transform_0(%arg0: i32) -> (i32, i32, i32, i32) {
    %c0_i32 = arith.constant 0 : i32
    %c0_i32_0 = arith.constant 0 : i32
    %c0_i32_1 = arith.constant 0 : i32
    %c0_i32_2 = arith.constant 0 : i32
    return %arg0, %c0_i32, %c0_i32_0, %c0_i32_1 : i32, i32, i32, i32
  }
  func.func @transform_1(%arg0: i32) -> (i32, i32) {
    %c0_i32 = arith.constant 0 : i32
    %c0_i32_0 = arith.constant 0 : i32
    %c0_i32_1 = arith.constant 0 : i32
    return %c0_i32, %c0_i32_0 : i32, i32
  }
  func.func @transform_2(%arg0: i32) -> (i32, i32) {
    %c0_i32 = arith.constant 0 : i32
    %c0_i32_0 = arith.constant 0 : i32
    %c0_i32_1 = arith.constant 0 : i32
    return %c0_i32, %c0_i32_0 : i32, i32
  }
  func.func @transform_3(%arg0: i32) -> (i32, i32) {
    %c0_i32 = arith.constant 0 : i32
    %c0_i32_0 = arith.constant 0 : i32
    %c0_i32_1 = arith.constant 0 : i32
    return %c0_i32, %c0_i32_0 : i32, i32
  }
  func.func @transform_4(%arg0: i32) -> (i32, i32) {
    %c0_i32 = arith.constant 0 : i32
    %c0_i32_0 = arith.constant 0 : i32
    %c0_i32_1 = arith.constant 0 : i32
    return %c0_i32, %c0_i32_0 : i32, i32
  }
  func.func @transform_5(%arg0: i32) -> (i32, i32, i32) {
    %c0_i32 = arith.constant 0 : i32
    %c0_i32_0 = arith.constant 0 : i32
    %c0_i32_1 = arith.constant 0 : i32
    return %arg0, %c0_i32, %c0_i32_0 : i32, i32, i32
  }
}

</mosaic_0001>

<llo_original>
// kernel: sub.3
$region0: #{sub.3}
  #allocation0 [shape = 's32[1]{0}', space=sflag, size = 0x4, scoped, tag = 'scoped memory for sub.3']
  %s0 = inlined_call_operand.vmem [shape: f32[3], index: 0, kind: input, shape index: {}]
  %s1 = inlined_call_operand.vmem [shape: f32[3], index: 1, kind: input, shape index: {}]
  %s2 = inlined_call_operand.vmem [shape: f32[3], index: 2, kind: output, shape index: {}]
  %v3 = vld [vmem:[%s0] sm:$0x1]
  %v4 = vld [vmem:[%s1] sm:$0x1]
  %5 = xla_tuple %v3, %v4
  %6 = xla_tuple %5
  %v7 = vsub.f32 %v3, %v4
  %8 = xla_tuple %v7
  %9 = vst [vmem:[%s2] sm:$0x1] %v7

// kernel: _rpn_forward_impl.1
$region0: #{_rpn_forward_impl.1}
  #allocation0 [shape = 'u32[]', space=smem, size = 0x4, offset = 0x4, fixed_abs, tag = 'smem constant byte address 0x4 - core index']
  #allocation1 [shape = 'u32[144,128]{1,0:T(1,128)}', space=vmem, size = 0x12000, scoped, tag = 'internal scratch']
  %s0 = inlined_call_operand.vmem [shape: bf16[2,18,18,32], index: 0, kind: input, shape index: {}]
  %s1 = inlined_call_operand.vmem [shape: bf16[288,512], index: 1, kind: input, shape index: {}]
  %s2 = inlined_call_operand.vmem [shape: f32[1,512], index: 2, kind: input, shape index: {}]
  %s3 = inlined_call_operand.vmem [shape: bf16[512,128], index: 3, kind: input, shape index: {}]
  %s4 = inlined_call_operand.vmem [shape: f32[1,128], index: 4, kind: input, shape index: {}]
  %s5 = inlined_call_operand.vmem [shape: f32[2,256,128], index: 5, kind: output, shape index: {}]
  %s6 = sld [smem:[#allocation0]]
  $region53: #{_rpn_forward_impl.1} parent=0
    _
  %s8 = ssub.s32 1, %s6
  %s9 = scalar_select 0, %s8, %s6
  loop: start=0, step=1, limit=4
  $region2: #{_rpn_forward_impl.1} parent=0 // loop_pre_header
    _
  $region3: #{_rpn_forward_impl.1} parent=0 // loop_header
    %s11 = sphi 0, %s15
    %p12 = scmp.ge.s32.totalorder %s11, 4
    %s21 = sphi 0, %s23
    %s24 = sphi 0, %s21
    %s25 = sphi 0, %s24
    %s41 = sphi 0, %s25
    %s45 = sphi 0, %s45
    %s47 = sphi 0, %s45
    %s48 = sphi 0, %s47
    %s62 = sphi 0, %s48
    %s66 = sphi 0, %s66
    %s68 = sphi 0, %s66
    %s69 = sphi 0, %s68
    %s83 = sphi 0, %s69
    %s87 = sphi 0, %s87
    %s89 = sphi 0, %s87
    %s90 = sphi 0, %s89
    %s104 = sphi 0, %s90
    %s108 = sphi 0, %s108
    %s110 = sphi 0, %s108
    %s111 = sphi 0, %s110
    %s125 = sphi 0, %s111
    %s131 = sphi 0, %s133
    %s134 = sphi 0, %s131
    %s135 = sphi 0, %s134
    %s151 = sphi 0, %s135
  $region4: #{_rpn_forward_impl.1} parent=0 // loop_header_branch
    %14 = sbr.rel (%p12) target = $region8
  $region5: #{_rpn_forward_impl.1} parent=0 // loop_body
    %s16 = ssub.s32 %s11, 1
    %s17 = ssub.s32 %s11, 2
    %s18 = sadd.s32 %s11, 1
    %s19 = ssub.s32 %s11, %s18
    %p20 = scmp.eq.s32.totalorder %s19, 0
    %s22 = sadd.s32 %s21, 1
    %s23 = scalar_select %p20, %s21, %s22
    %p26 = pneg %p20
    %p27 = scmp.eq.s32.totalorder %s11, 1
    %p28 = por %p26, %p27
    %p29 = scmp.ne.s32.totalorder %s21, %s24
    %p30 = scmp.eq.s32.totalorder %s11, 0
    %p31 = por %p29, %p30
    %p32 = scmp.ne.s32.totalorder %s21, %s24
    %p33 = scmp.eq.s32.totalorder %s16, 1
    %p34 = por %p32, %p33
    %p35 = scmp.ne.s32.totalorder %s24, %s25
    %p36 = scmp.eq.s32.totalorder %s16, 0
    %p37 = por %p35, %p36
    %p38 = scmp.ne.s32.totalorder %s24, %s25
    %p39 = scmp.eq.s32.totalorder %s17, 1
    %p40 = por %p38, %p39
    %p42 = scmp.ne.s32.totalorder %s25, %s41
    %p43 = scmp.eq.s32.totalorder %s17, 0
    %p44 = por %p42, %p43
    %s46 = sadd.s32 %s45, 1
    %p49 = scmp.eq.s32.totalorder %s11, 1
    %p50 = scmp.ne.s32.totalorder %s45, %s47
    %p51 = scmp.eq.s32.totalorder %s11, 0
    %p52 = por %p50, %p51
    %p53 = scmp.ne.s32.totalorder %s45, %s47
    %p54 = scmp.eq.s32.totalorder %s16, 1
    %p55 = por %p53, %p54
    %p56 = scmp.ne.s32.totalorder %s47, %s48
    %p57 = scmp.eq.s32.totalorder %s16, 0
    %p58 = por %p56, %p57
    %p59 = scmp.ne.s32.totalorder %s47, %s48
    %p60 = scmp.eq.s32.totalorder %s17, 1
    %p61 = por %p59, %p60
    %p63 = scmp.ne.s32.totalorder %s48, %s62
    %p64 = scmp.eq.s32.totalorder %s17, 0
    %p65 = por %p63, %p64
    %s67 = sadd.s32 %s66, 1
    %p70 = scmp.eq.s32.totalorder %s11, 1
    %p71 = scmp.ne.s32.totalorder %s66, %s68
    %p72 = scmp.eq.s32.totalorder %s11, 0
    %p73 = por %p71, %p72
    %p74 = scmp.ne.s32.totalorder %s66, %s68
    %p75 = scmp.eq.s32.totalorder %s16, 1
    %p76 = por %p74, %p75
    %p77 = scmp.ne.s32.totalorder %s68, %s69
    %p78 = scmp.eq.s32.totalorder %s16, 0
    %p79 = por %p77, %p78
    %p80 = scmp.ne.s32.totalorder %s68, %s69
    %p81 = scmp.eq.s32.totalorder %s17, 1
    %p82 = por %p80, %p81
    %p84 = scmp.ne.s32.totalorder %s69, %s83
    %p85 = scmp.eq.s32.totalorder %s17, 0
    %p86 = por %p84, %p85
    %s88 = sadd.s32 %s87, 1
    %p91 = scmp.eq.s32.totalorder %s11, 1
    %p92 = scmp.ne.s32.totalorder %s87, %s89
    %p93 = scmp.eq.s32.totalorder %s11, 0
    %p94 = por %p92, %p93
    %p95 = scmp.ne.s32.totalorder %s87, %s89
    %p96 = scmp.eq.s32.totalorder %s16, 1
    %p97 = por %p95, %p96
    %p98 = scmp.ne.s32.totalorder %s89, %s90
    %p99 = scmp.eq.s32.totalorder %s16, 0
    %p100 = por %p98, %p99
    %p101 = scmp.ne.s32.totalorder %s89, %s90
    %p102 = scmp.eq.s32.totalorder %s17, 1
    %p103 = por %p101, %p102
    %p105 = scmp.ne.s32.totalorder %s90, %s104
    %p106 = scmp.eq.s32.totalorder %s17, 0
    %p107 = por %p105, %p106
    %s109 = sadd.s32 %s108, 1
    %p112 = scmp.eq.s32.totalorder %s11, 1
    %p113 = scmp.ne.s32.totalorder %s108, %s110
    %p114 = scmp.eq.s32.totalorder %s11, 0
    %p115 = por %p113, %p114
    %p116 = scmp.ne.s32.totalorder %s108, %s110
    %p117 = scmp.eq.s32.totalorder %s16, 1
    %p118 = por %p116, %p117
    %p119 = scmp.ne.s32.totalorder %s110, %s111
    %p120 = scmp.eq.s32.totalorder %s16, 0
    %p121 = por %p119, %p120
    %p122 = scmp.ne.s32.totalorder %s110, %s111
    %p123 = scmp.eq.s32.totalorder %s17, 1
    %p124 = por %p122, %p123
    %p126 = scmp.ne.s32.totalorder %s111, %s125
    %p127 = scmp.eq.s32.totalorder %s17, 0
    %p128 = por %p126, %p127
    %s129 = ssub.s32 %s11, %s18
    %p130 = scmp.eq.s32.totalorder %s129, 0
    %s132 = sadd.s32 %s131, 1
    %s133 = scalar_select %p130, %s131, %s132
    %p136 = pneg %p130
    %p137 = scmp.eq.s32.totalorder %s11, 1
    %p138 = por %p136, %p137
    %p139 = scmp.ne.s32.totalorder %s131, %s134
    %p140 = scmp.eq.s32.totalorder %s11, 0
    %p141 = por %p139, %p140
    %p142 = scmp.ne.s32.totalorder %s131, %s134
    %p143 = scmp.eq.s32.totalorder %s16, 1
    %p144 = por %p142, %p143
    %p145 = scmp.ne.s32.totalorder %s134, %s135
    %p146 = scmp.eq.s32.totalorder %s16, 0
    %p147 = por %p145, %p146
    %p148 = scmp.ne.s32.totalorder %s134, %s135
    %p149 = scmp.eq.s32.totalorder %s17, 1
    %p150 = por %p148, %p149
    %p152 = scmp.ne.s32.totalorder %s135, %s151
    %p153 = scmp.eq.s32.totalorder %s17, 0
    %p154 = por %p152, %p153
    %p155 = scmp.le.s32.totalorder 1, %s11
    %p156 = scmp.lt.s32.totalorder %s11, 3
    %p157 = pnand %p155, %p156
    %p158 = pneg %p157
    // Predicated region
    $region9: #{_rpn_forward_impl.1} parent=5 // pred_check
      _
    $region10: #{_rpn_forward_impl.1} parent=5 // pred_check_branch
      %160 = sbr.rel (%p157) target = $region12
    $region11: #{_rpn_forward_impl.1} parent=5 // pred_region
      %s161 = ssub.s32 %s11, 1
      // Predicated region
      $region13: #{_rpn_forward_impl.1} parent=11 // pred_check
        %p162 = pneg %p58
      $region14: #{_rpn_forward_impl.1} parent=11 // pred_check_branch
        %164 = sbr.rel (%p162) target = $region16
      $region15: #{_rpn_forward_impl.1} parent=11 // pred_region
        _
      $region16: #{_rpn_forward_impl.1} parent=11 // pred_fallthru
        _
      // Predicated region
      $region17: #{_rpn_forward_impl.1} parent=11 // pred_check
        %p165 = pneg %p79
      $region18: #{_rpn_forward_impl.1} parent=11 // pred_check_branch
        %167 = sbr.rel (%p165) target = $region20
      $region19: #{_rpn_forward_impl.1} parent=11 // pred_region
        _
      $region20: #{_rpn_forward_impl.1} parent=11 // pred_fallthru
        _
      // Predicated region
      $region21: #{_rpn_forward_impl.1} parent=11 // pred_check
        %p168 = pneg %p100
      $region22: #{_rpn_forward_impl.1} parent=11 // pred_check_branch
        %170 = sbr.rel (%p168) target = $region24
      $region23: #{_rpn_forward_impl.1} parent=11 // pred_region
        _
      $region24: #{_rpn_forward_impl.1} parent=11 // pred_fallthru
        _
      // Predicated region
      $region25: #{_rpn_forward_impl.1} parent=11 // pred_check
        %p171 = pneg %p121
      $region26: #{_rpn_forward_impl.1} parent=11 // pred_check_branch
        %173 = sbr.rel (%p171) target = $region28
      $region27: #{_rpn_forward_impl.1} parent=11 // pred_region
        _
      $region28: #{_rpn_forward_impl.1} parent=11 // pred_fallthru
        _
    $region12: #{_rpn_forward_impl.1} parent=5 // pred_fallthru
      _
    %p174 = scmp.lt.s32.totalorder %s11, 2
    // Predicated region
    $region29: #{_rpn_forward_impl.1} parent=5 // pred_check
      %p175 = pneg %p174
    $region30: #{_rpn_forward_impl.1} parent=5 // pred_check_branch
      %177 = sbr.rel (%p175) target = $region32
    $region31: #{_rpn_forward_impl.1} parent=5 // pred_region
      // Predicated region
      $region33: #{_rpn_forward_impl.1} parent=31 // pred_check
        %p178 = pneg %p31
      $region34: #{_rpn_forward_impl.1} parent=31 // pred_check_branch
        %180 = sbr.rel (%p178) target = $region36
      $region35: #{_rpn_forward_impl.1} parent=31 // pred_region
        %p181 = scmp.lt.s32.totalorder %s11, 1
        %s182 = scalar_select %p181, %s11, 1
        %s183 = smul.addr %s182, 54
        %s184 = smul.addr %s183, 4
        %s185 = scalar_lea.vmem %s0, %s184
      $region36: #{_rpn_forward_impl.1} parent=31 // pred_fallthru
        _
    $region32: #{_rpn_forward_impl.1} parent=5 // pred_fallthru
      _
    %p186 = scmp.le.s32.totalorder 1, %s11
    %p187 = scmp.lt.s32.totalorder %s11, 3
    %p188 = pnand %p186, %p187
    %p189 = pneg %p188
    // Predicated region
    $region37: #{_rpn_forward_impl.1} parent=5 // pred_check
      _
    $region38: #{_rpn_forward_impl.1} parent=5 // pred_check_branch
      %191 = sbr.rel (%p188) target = $region40
    $region39: #{_rpn_forward_impl.1} parent=5 // pred_region
      %s192 = ssub.s32 %s11, 1
      %p193 = scmp.lt.s32.totalorder %s16, 1
      %s194 = scalar_select %p193, %s16, 1
      %s195 = smul.addr %s194, 54
      %s196 = smul.addr %s195, 4
      %s197 = scalar_lea.vmem %s0, %s196
      %p198 = pneg %p37
      %p199 = pneg %p34
      %p200 = pneg %p58
      %p201 = pneg %p55
      %p202 = pneg %p79
      %p203 = pneg %p76
      %p204 = pneg %p100
      %p205 = pneg %p97
      %p206 = pneg %p121
      %p207 = pneg %p118
      %p208 = pneg %p147
      %p209 = pneg %p144
      %p210 = scmp.lt.s32.totalorder %s16, 1
      %s211 = scalar_select %p210, %s16, 1
      %s212 = smul.addr %s211, 32
      %s213 = smul.addr %s212, 8
      %s214 = scalar_lea.vmem %s5, %s213
      %p215 = scmp.lt.s32.totalorder %s16, 1
      %s216 = scalar_select %p215, %s16, 1
      %s217 = smul.addr %s216, 54
      %s218 = smul.addr %s217, 4
      %s219 = scalar_lea.vmem %s0, %s218
      %p220 = scmp.lt.s32.totalorder %s16, 1
      %s221 = scalar_select %p220, %s16, 1
      %s222 = smul.addr %s221, 32
      %s223 = smul.addr %s222, 8
      %s224 = scalar_lea.vmem %s5, %s223
      %v226 = vld [vmem:[%s219] sm:$0xf]
      %v227 = vld [vmem:[%s219 + $0x4] sm:$0xf]
      %v228 = vld [vmem:[%s219 + $0x8] sm:$0x1]
      %v229 = vld [vmem:[%s219 + $0xc] sm:$0xf]
      %v230 = vld [vmem:[%s219 + $0x10] sm:$0xf]
      %v231 = vld [vmem:[%s219 + $0x14] sm:$0x1]
      %v232 = vld [vmem:[%s219 + $0x18] sm:$0xf]
      %v233 = vld [vmem:[%s219 + $0x1c] sm:$0xf]
      %v234 = vld [vmem:[%s219 + $0x20] sm:$0x1]
      %v235 = vld [vmem:[%s219 + $0x24] sm:$0xf]
      %v236 = vld [vmem:[%s219 + $0x28] sm:$0xf]
      %v237 = vld [vmem:[%s219 + $0x2c] sm:$0x1]
      %v238 = vld [vmem:[%s219 + $0x30] sm:$0xf]
      %v239 = vld [vmem:[%s219 + $0x34] sm:$0xf]
      %v240 = vld [vmem:[%s219 + $0x38] sm:$0x1]
      %v241 = vld [vmem:[%s219 + $0x3c] sm:$0xf]
      %v242 = vld [vmem:[%s219 + $0x40] sm:$0xf]
      %v243 = vld [vmem:[%s219 + $0x44] sm:$0x1]
      %v244 = vld [vmem:[%s219 + $0x48] sm:$0xf]
      %v245 = vld [vmem:[%s219 + $0x4c] sm:$0xf]
      %v246 = vld [vmem:[%s219 + $0x50] sm:$0x1]
      %v247 = vld [vmem:[%s219 + $0x54] sm:$0xf]
      %v248 = vld [vmem:[%s219 + $0x58] sm:$0xf]
      %v249 = vld [vmem:[%s219 + $0x5c] sm:$0x1]
      %v250 = vld [vmem:[%s219 + $0x60] sm:$0xf]
      %v251 = vld [vmem:[%s219 + $0x64] sm:$0xf]
      %v252 = vld [vmem:[%s219 + $0x68] sm:$0x1]
      %v253 = vld [vmem:[%s219 + $0x6c] sm:$0xf]
      %v254 = vld [vmem:[%s219 + $0x70] sm:$0xf]
      %v255 = vld [vmem:[%s219 + $0x74] sm:$0x1]
      %v256 = vld [vmem:[%s219 + $0x78] sm:$0xf]
      %v257 = vld [vmem:[%s219 + $0x7c] sm:$0xf]
      %v258 = vld [vmem:[%s219 + $0x80] sm:$0x1]
      %v259 = vld [vmem:[%s219 + $0x84] sm:$0xf]
      %v260 = vld [vmem:[%s219 + $0x88] sm:$0xf]
      %v261 = vld [vmem:[%s219 + $0x8c] sm:$0x1]
      %v262 = vld [vmem:[%s219 + $0x90] sm:$0xf]
      %v263 = vld [vmem:[%s219 + $0x94] sm:$0xf]
      %v264 = vld [vmem:[%s219 + $0x98] sm:$0x1]
      %v265 = vld [vmem:[%s219 + $0x9c] sm:$0xf]
      %v266 = vld [vmem:[%s219 + $0xa0] sm:$0xf]
      %v267 = vld [vmem:[%s219 + $0xa4] sm:$0x1]
      %v268 = vld [vmem:[%s219 + $0xa8] sm:$0xf]
      %v269 = vld [vmem:[%s219 + $0xac] sm:$0xf]
      %v270 = vld [vmem:[%s219 + $0xb0] sm:$0x1]
      %v271 = vld [vmem:[%s219 + $0xb4] sm:$0xf]
      %v272 = vld [vmem:[%s219 + $0xb8] sm:$0xf]
      %v273 = vld [vmem:[%s219 + $0xbc] sm:$0x1]
      %v274 = vld [vmem:[%s219 + $0xc0] sm:$0xf]
      %v275 = vld [vmem:[%s219 + $0xc4] sm:$0xf]
      %v276 = vld [vmem:[%s219 + $0xc8] sm:$0x1]
      %v277 = vld [vmem:[%s219 + $0xcc] sm:$0xf]
      %v278 = vld [vmem:[%s219 + $0xd0] sm:$0xf]
      %v279 = vld [vmem:[%s219 + $0xd4] sm:$0x1]
      %v312 = vunpack.c.l.b16 %v226
      %v313 = vunpack.c.l.b16 %v227
      %v314 = vunpack.c.l.b16 %v229
      %v315 = vunpack.c.l.b16 %v230
      %v316 = vunpack.c.l.b16 %v232
      %v317 = vunpack.c.l.b16 %v233
      %v318 = vunpack.c.l.b16 %v235
      %v319 = vunpack.c.l.b16 %v236
      %v320 = vunpack.c.l.b16 %v238
      %v321 = vunpack.c.l.b16 %v239
      %v322 = vunpack.c.l.b16 %v241
      %v323 = vunpack.c.l.b16 %v242
      %v324 = vunpack.c.l.b16 %v244
      %v325 = vunpack.c.l.b16 %v245
      %v326 = vunpack.c.l.b16 %v247
      %v327 = vunpack.c.l.b16 %v248
      %v328 = vunpack.c.l.b16 %v250
      %v329 = vunpack.c.l.b16 %v251
      %v330 = vunpack.c.l.b16 %v253
      %v331 = vunpack.c.l.b16 %v254
      %v332 = vunpack.c.l.b16 %v256
      %v333 = vunpack.c.l.b16 %v257
      %v334 = vunpack.c.l.b16 %v259
      %v335 = vunpack.c.l.b16 %v260
      %v336 = vunpack.c.l.b16 %v262
      %v337 = vunpack.c.l.b16 %v263
      %v338 = vunpack.c.l.b16 %v265
      %v339 = vunpack.c.l.b16 %v266
      %v340 = vunpack.c.l.b16 %v268
      %v341 = vunpack.c.l.b16 %v269
      %v342 = vunpack.c.l.b16 %v271
      %v343 = vunpack.c.l.b16 %v272
      %v344 = vpack.c.b16 %v313, %v312
      %v345 = vpack.c.b16 %v315, %v314
      %v346 = vpack.c.b16 %v317, %v316
      %v347 = vpack.c.b16 %v319, %v318
      %v348 = vpack.c.b16 %v321, %v320
      %v349 = vpack.c.b16 %v323, %v322
      %v350 = vpack.c.b16 %v325, %v324
      %v351 = vpack.c.b16 %v327, %v326
      %v352 = vpack.c.b16 %v329, %v328
      %v353 = vpack.c.b16 %v331, %v330
      %v354 = vpack.c.b16 %v333, %v332
      %v355 = vpack.c.b16 %v335, %v334
      %v356 = vpack.c.b16 %v337, %v336
      %v357 = vpack.c.b16 %v339, %v338
      %v358 = vpack.c.b16 %v341, %v340
      %v359 = vpack.c.b16 %v343, %v342
      %v376 = vunpack.c.l.b16 %v228
      %v377 = vunpack.c.l.b16 %v231
      %v378 = vunpack.c.l.b16 %v234
      %v379 = vunpack.c.l.b16 %v237
      %v380 = vunpack.c.l.b16 %v240
      %v381 = vunpack.c.l.b16 %v243
      %v382 = vunpack.c.l.b16 %v246
      %v383 = vunpack.c.l.b16 %v249
      %v384 = vunpack.c.l.b16 %v252
      %v385 = vunpack.c.l.b16 %v255
      %v386 = vunpack.c.l.b16 %v258
      %v387 = vunpack.c.l.b16 %v261
      %v388 = vunpack.c.l.b16 %v264
      %v389 = vunpack.c.l.b16 %v267
      %v390 = vunpack.c.l.b16 %v270
      %v391 = vunpack.c.l.b16 %v273
      %v392 = vpack.c.b16 %v376, %v376
      %v393 = vpack.c.b16 %v377, %v377
      %v394 = vpack.c.b16 %v378, %v378
      %v395 = vpack.c.b16 %v379, %v379
      %v396 = vpack.c.b16 %v380, %v380
      %v397 = vpack.c.b16 %v381, %v381
      %v398 = vpack.c.b16 %v382, %v382
      %v399 = vpack.c.b16 %v383, %v383
      %v400 = vpack.c.b16 %v384, %v384
      %v401 = vpack.c.b16 %v385, %v385
      %v402 = vpack.c.b16 %v386, %v386
      %v403 = vpack.c.b16 %v387, %v387
      %v404 = vpack.c.b16 %v388, %v388
      %v405 = vpack.c.b16 %v389, %v389
      %v406 = vpack.c.b16 %v390, %v390
      %v407 = vpack.c.b16 %v391, %v391
      %vm408 = vsmask.f32 7424
      %v410 = vshrl.u32 %v344, 16
      %v412 = vshll.u32 %v344, 16
      %v414 = vrot.slane %v412, 1
      %v415 = vor.u32 %v410, %v414
      %v417 = vshll.u32 %v392, 16
      %v419 = vrot.slane %v417, 1
      %v420 = vsel %vm408, %v415, %v419
      %v422 = vshrl.u32 %v345, 16
      %v424 = vshll.u32 %v345, 16
      %v426 = vrot.slane %v424, 1
      %v427 = vor.u32 %v422, %v426
      %v429 = vshll.u32 %v393, 16
      %v431 = vrot.slane %v429, 1
      %v432 = vsel %vm408, %v427, %v431
      %v434 = vshrl.u32 %v346, 16
      %v436 = vshll.u32 %v346, 16
      %v438 = vrot.slane %v436, 1
      %v439 = vor.u32 %v434, %v438
      %v441 = vshll.u32 %v394, 16
      %v443 = vrot.slane %v441, 1
      %v444 = vsel %vm408, %v439, %v443
      %v446 = vshrl.u32 %v347, 16
      %v448 = vshll.u32 %v347, 16
      %v450 = vrot.slane %v448, 1
      %v451 = vor.u32 %v446, %v450
      %v453 = vshll.u32 %v395, 16
      %v455 = vrot.slane %v453, 1
      %v456 = vsel %vm408, %v451, %v455
      %v458 = vshrl.u32 %v348, 16
      %v460 = vshll.u32 %v348, 16
      %v462 = vrot.slane %v460, 1
      %v463 = vor.u32 %v458, %v462
      %v465 = vshll.u32 %v396, 16
      %v467 = vrot.slane %v465, 1
      %v468 = vsel %vm408, %v463, %v467
      %v470 = vshrl.u32 %v349, 16
      %v472 = vshll.u32 %v349, 16
      %v474 = vrot.slane %v472, 1
      %v475 = vor.u32 %v470, %v474
      %v477 = vshll.u32 %v397, 16
      %v479 = vrot.slane %v477, 1
      %v480 = vsel %vm408, %v475, %v479
      %v482 = vshrl.u32 %v350, 16
      %v484 = vshll.u32 %v350, 16
      %v486 = vrot.slane %v484, 1
      %v487 = vor.u32 %v482, %v486
      %v489 = vshll.u32 %v398, 16
      %v491 = vrot.slane %v489, 1
      %v492 = vsel %vm408, %v487, %v491
      %v494 = vshrl.u32 %v351, 16
      %v496 = vshll.u32 %v351, 16
      %v498 = vrot.slane %v496, 1
      %v499 = vor.u32 %v494, %v498
      %v501 = vshll.u32 %v399, 16
      %v503 = vrot.slane %v501, 1
      %v504 = vsel %vm408, %v499, %v503
      %v506 = vshrl.u32 %v352, 16
      %v508 = vshll.u32 %v352, 16
      %v510 = vrot.slane %v508, 1
      %v511 = vor.u32 %v506, %v510
      %v513 = vshll.u32 %v400, 16
      %v515 = vrot.slane %v513, 1
      %v516 = vsel %vm408, %v511, %v515
      %v518 = vshrl.u32 %v353, 16
      %v520 = vshll.u32 %v353, 16
      %v522 = vrot.slane %v520, 1
      %v523 = vor.u32 %v518, %v522
      %v525 = vshll.u32 %v401, 16
      %v527 = vrot.slane %v525, 1
      %v528 = vsel %vm408, %v523, %v527
      %v530 = vshrl.u32 %v354, 16
      %v532 = vshll.u32 %v354, 16
      %v534 = vrot.slane %v532, 1
      %v535 = vor.u32 %v530, %v534
      %v537 = vshll.u32 %v402, 16
      %v539 = vrot.slane %v537, 1
      %v540 = vsel %vm408, %v535, %v539
      %v542 = vshrl.u32 %v355, 16
      %v544 = vshll.u32 %v355, 16
      %v546 = vrot.slane %v544, 1
      %v547 = vor.u32 %v542, %v546
      %v549 = vshll.u32 %v403, 16
      %v551 = vrot.slane %v549, 1
      %v552 = vsel %vm408, %v547, %v551
      %v554 = vshrl.u32 %v356, 16
      %v556 = vshll.u32 %v356, 16
      %v558 = vrot.slane %v556, 1
      %v559 = vor.u32 %v554, %v558
      %v561 = vshll.u32 %v404, 16
      %v563 = vrot.slane %v561, 1
      %v564 = vsel %vm408, %v559, %v563
      %v566 = vshrl.u32 %v357, 16
      %v568 = vshll.u32 %v357, 16
      %v570 = vrot.slane %v568, 1
      %v571 = vor.u32 %v566, %v570
      %v573 = vshll.u32 %v405, 16
      %v575 = vrot.slane %v573, 1
      %v576 = vsel %vm408, %v571, %v575
      %v578 = vshrl.u32 %v358, 16
      %v580 = vshll.u32 %v358, 16
      %v582 = vrot.slane %v580, 1
      %v583 = vor.u32 %v578, %v582
      %v585 = vshll.u32 %v406, 16
      %v587 = vrot.slane %v585, 1
      %v588 = vsel %vm408, %v583, %v587
      %v590 = vshrl.u32 %v359, 16
      %v592 = vshll.u32 %v359, 16
      %v594 = vrot.slane %v592, 1
      %v595 = vor.u32 %v590, %v594
      %v597 = vshll.u32 %v407, 16
      %v599 = vrot.slane %v597, 1
      %v600 = vsel %vm408, %v595, %v599
      %601 = vrot.lane.b32.xlu0 %v420, 32
      %v602 = vpop.permute.xlu0 %601
      %603 = vrot.lane.b32.xlu0 %v432, 32
      %v604 = vpop.permute.xlu0 %603
      %605 = vrot.lane.b32.xlu0 %v444, 32
      %v606 = vpop.permute.xlu0 %605
      %607 = vrot.lane.b32.xlu0 %v456, 32
      %v608 = vpop.permute.xlu0 %607
      %609 = vrot.lane.b32.xlu0 %v468, 32
      %v610 = vpop.permute.xlu0 %609
      %611 = vrot.lane.b32.xlu0 %v480, 32
      %v612 = vpop.permute.xlu0 %611
      %613 = vrot.lane.b32.xlu0 %v492, 32
      %v614 = vpop.permute.xlu0 %613
      %615 = vrot.lane.b32.xlu0 %v504, 32
      %v616 = vpop.permute.xlu0 %615
      %617 = vrot.lane.b32.xlu0 %v516, 32
      %v618 = vpop.permute.xlu0 %617
      %619 = vrot.lane.b32.xlu0 %v528, 32
      %v620 = vpop.permute.xlu0 %619
      %621 = vrot.lane.b32.xlu0 %v540, 32
      %v622 = vpop.permute.xlu0 %621
      %623 = vrot.lane.b32.xlu0 %v552, 32
      %v624 = vpop.permute.xlu0 %623
      %625 = vrot.lane.b32.xlu0 %v564, 32
      %v626 = vpop.permute.xlu0 %625
      %627 = vrot.lane.b32.xlu0 %v576, 32
      %v628 = vpop.permute.xlu0 %627
      %629 = vrot.lane.b32.xlu0 %v588, 32
      %v630 = vpop.permute.xlu0 %629
      %631 = vrot.lane.b32.xlu0 %v600, 32
      %v632 = vpop.permute.xlu0 %631
      %vm633 = vcmask 1046528
      %v634 = vrot.slane %v344, 1
      %v635 = vrot.slane %v392, 1
      %v636 = vsel %vm633, %v634, %v635
      %v637 = vrot.slane %v345, 1
      %v638 = vrot.slane %v393, 1
      %v639 = vsel %vm633, %v637, %v638
      %v640 = vrot.slane %v346, 1
      %v641 = vrot.slane %v394, 1
      %v642 = vsel %vm633, %v640, %v641
      %v643 = vrot.slane %v347, 1
      %v644 = vrot.slane %v395, 1
      %v645 = vsel %vm633, %v643, %v644
      %v646 = vrot.slane %v348, 1
      %v647 = vrot.slane %v396, 1
      %v648 = vsel %vm633, %v646, %v647
      %v649 = vrot.slane %v349, 1
      %v650 = vrot.slane %v397, 1
      %v651 = vsel %vm633, %v649, %v650
      %v652 = vrot.slane %v350, 1
      %v653 = vrot.slane %v398, 1
      %v654 = vsel %vm633, %v652, %v653
      %v655 = vrot.slane %v351, 1
      %v656 = vrot.slane %v399, 1
      %v657 = vsel %vm633, %v655, %v656
      %v658 = vrot.slane %v352, 1
      %v659 = vrot.slane %v400, 1
      %v660 = vsel %vm633, %v658, %v659
      %v661 = vrot.slane %v353, 1
      %v662 = vrot.slane %v401, 1
      %v663 = vsel %vm633, %v661, %v662
      %v664 = vrot.slane %v354, 1
      %v665 = vrot.slane %v402, 1
      %v666 = vsel %vm633, %v664, %v665
      %v667 = vrot.slane %v355, 1
      %v668 = vrot.slane %v403, 1
      %v669 = vsel %vm633, %v667, %v668
      %v670 = vrot.slane %v356, 1
      %v671 = vrot.slane %v404, 1
      %v672 = vsel %vm633, %v670, %v671
      %v673 = vrot.slane %v357, 1
      %v674 = vrot.slane %v405, 1
      %v675 = vsel %vm633, %v673, %v674
      %v676 = vrot.slane %v358, 1
      %v677 = vrot.slane %v406, 1
      %v678 = vsel %vm633, %v676, %v677
      %v679 = vrot.slane %v359, 1
      %v680 = vrot.slane %v407, 1
      %v681 = vsel %vm633, %v679, %v680
      %682 = vrot.lane.b32.xlu0 %v636, 64
      %v683 = vpop.permute.xlu0 %682
      %684 = vrot.lane.b32.xlu0 %v639, 64
      %v685 = vpop.permute.xlu0 %684
      %686 = vrot.lane.b32.xlu0 %v642, 64
      %v687 = vpop.permute.xlu0 %686
      %688 = vrot.lane.b32.xlu0 %v645, 64
      %v689 = vpop.permute.xlu0 %688
      %690 = vrot.lane.b32.xlu0 %v648, 64
      %v691 = vpop.permute.xlu0 %690
      %692 = vrot.lane.b32.xlu0 %v651, 64
      %v693 = vpop.permute.xlu0 %692
      %694 = vrot.lane.b32.xlu0 %v654, 64
      %v695 = vpop.permute.xlu0 %694
      %696 = vrot.lane.b32.xlu0 %v657, 64
      %v697 = vpop.permute.xlu0 %696
      %698 = vrot.lane.b32.xlu0 %v660, 64
      %v699 = vpop.permute.xlu0 %698
      %700 = vrot.lane.b32.xlu0 %v663, 64
      %v701 = vpop.permute.xlu0 %700
      %702 = vrot.lane.b32.xlu0 %v666, 64
      %v703 = vpop.permute.xlu0 %702
      %704 = vrot.lane.b32.xlu0 %v669, 64
      %v705 = vpop.permute.xlu0 %704
      %706 = vrot.lane.b32.xlu0 %v672, 64
      %v707 = vpop.permute.xlu0 %706
      %708 = vrot.lane.b32.xlu0 %v675, 64
      %v709 = vpop.permute.xlu0 %708
      %710 = vrot.lane.b32.xlu0 %v678, 64
      %v711 = vpop.permute.xlu0 %710
      %712 = vrot.lane.b32.xlu0 %v681, 64
      %v713 = vpop.permute.xlu0 %712
      %v716 = vunpack.c.l.b16 %v274
      %v717 = vunpack.c.l.b16 %v275
      %v718 = vpack.c.b16 %v717, %v716
      %719 = vrot.lane.b32.xlu0 %v345, 96
      %v720 = vpop.permute.xlu0 %719
      %721 = vrot.lane.b32.xlu0 %v346, 96
      %v722 = vpop.permute.xlu0 %721
      %723 = vrot.lane.b32.xlu0 %v347, 96
      %v724 = vpop.permute.xlu0 %723
      %725 = vrot.lane.b32.xlu0 %v348, 96
      %v726 = vpop.permute.xlu0 %725
      %727 = vrot.lane.b32.xlu0 %v349, 96
      %v728 = vpop.permute.xlu0 %727
      %729 = vrot.lane.b32.xlu0 %v350, 96
      %v730 = vpop.permute.xlu0 %729
      %731 = vrot.lane.b32.xlu0 %v351, 96
      %v732 = vpop.permute.xlu0 %731
      %733 = vrot.lane.b32.xlu0 %v352, 96
      %v734 = vpop.permute.xlu0 %733
      %735 = vrot.lane.b32.xlu0 %v353, 96
      %v736 = vpop.permute.xlu0 %735
      %737 = vrot.lane.b32.xlu0 %v354, 96
      %v738 = vpop.permute.xlu0 %737
      %739 = vrot.lane.b32.xlu0 %v355, 96
      %v740 = vpop.permute.xlu0 %739
      %741 = vrot.lane.b32.xlu0 %v356, 96
      %v742 = vpop.permute.xlu0 %741
      %743 = vrot.lane.b32.xlu0 %v357, 96
      %v744 = vpop.permute.xlu0 %743
      %745 = vrot.lane.b32.xlu0 %v358, 96
      %v746 = vpop.permute.xlu0 %745
      %747 = vrot.lane.b32.xlu0 %v359, 96
      %v748 = vpop.permute.xlu0 %747
      %749 = vrot.lane.b32.xlu0 %v718, 96
      %v750 = vpop.permute.xlu0 %749
      %v752 = vunpack.c.l.b16 %v276
      %v753 = vpack.c.b16 %v752, %v752
      %v755 = vshrl.u32 %v718, 16
      %v757 = vshll.u32 %v718, 16
      %v759 = vrot.slane %v757, 1
      %v760 = vor.u32 %v755, %v759
      %v762 = vshll.u32 %v753, 16
      %v764 = vrot.slane %v762, 1
      %v765 = vsel %vm408, %v760, %v764
      %v766 = vrot.slane %v718, 1
      %v767 = vrot.slane %v753, 1
      %v768 = vsel %vm633, %v766, %v767
      %769 = vrot.lane.b32.xlu0 %v639, 32
      %v770 = vpop.permute.xlu0 %769
      %771 = vrot.lane.b32.xlu0 %v642, 32
      %v772 = vpop.permute.xlu0 %771
      %773 = vrot.lane.b32.xlu0 %v645, 32
      %v774 = vpop.permute.xlu0 %773
      %775 = vrot.lane.b32.xlu0 %v648, 32
      %v776 = vpop.permute.xlu0 %775
      %777 = vrot.lane.b32.xlu0 %v651, 32
      %v778 = vpop.permute.xlu0 %777
      %779 = vrot.lane.b32.xlu0 %v654, 32
      %v780 = vpop.permute.xlu0 %779
      %781 = vrot.lane.b32.xlu0 %v657, 32
      %v782 = vpop.permute.xlu0 %781
      %783 = vrot.lane.b32.xlu0 %v660, 32
      %v784 = vpop.permute.xlu0 %783
      %785 = vrot.lane.b32.xlu0 %v663, 32
      %v786 = vpop.permute.xlu0 %785
      %787 = vrot.lane.b32.xlu0 %v666, 32
      %v788 = vpop.permute.xlu0 %787
      %789 = vrot.lane.b32.xlu0 %v669, 32
      %v790 = vpop.permute.xlu0 %789
      %791 = vrot.lane.b32.xlu0 %v672, 32
      %v792 = vpop.permute.xlu0 %791
      %793 = vrot.lane.b32.xlu0 %v675, 32
      %v794 = vpop.permute.xlu0 %793
      %795 = vrot.lane.b32.xlu0 %v678, 32
      %v796 = vpop.permute.xlu0 %795
      %797 = vrot.lane.b32.xlu0 %v681, 32
      %v798 = vpop.permute.xlu0 %797
      %799 = vrot.lane.b32.xlu0 %v768, 32
      %v800 = vpop.permute.xlu0 %799
      %v803 = vunpack.c.l.b16 %v277
      %v804 = vunpack.c.l.b16 %v278
      %v805 = vpack.c.b16 %v804, %v803
      %806 = vrot.lane.b32.xlu0 %v346, 64
      %v807 = vpop.permute.xlu0 %806
      %808 = vrot.lane.b32.xlu0 %v347, 64
      %v809 = vpop.permute.xlu0 %808
      %810 = vrot.lane.b32.xlu0 %v348, 64
      %v811 = vpop.permute.xlu0 %810
      %812 = vrot.lane.b32.xlu0 %v349, 64
      %v813 = vpop.permute.xlu0 %812
      %814 = vrot.lane.b32.xlu0 %v350, 64
      %v815 = vpop.permute.xlu0 %814
      %816 = vrot.lane.b32.xlu0 %v351, 64
      %v817 = vpop.permute.xlu0 %816
      %818 = vrot.lane.b32.xlu0 %v352, 64
      %v819 = vpop.permute.xlu0 %818
      %820 = vrot.lane.b32.xlu0 %v353, 64
      %v821 = vpop.permute.xlu0 %820
      %822 = vrot.lane.b32.xlu0 %v354, 64
      %v823 = vpop.permute.xlu0 %822
      %824 = vrot.lane.b32.xlu0 %v355, 64
      %v825 = vpop.permute.xlu0 %824
      %826 = vrot.lane.b32.xlu0 %v356, 64
      %v827 = vpop.permute.xlu0 %826
      %828 = vrot.lane.b32.xlu0 %v357, 64
      %v829 = vpop.permute.xlu0 %828
      %830 = vrot.lane.b32.xlu0 %v358, 64
      %v831 = vpop.permute.xlu0 %830
      %832 = vrot.lane.b32.xlu0 %v359, 64
      %v833 = vpop.permute.xlu0 %832
      %834 = vrot.lane.b32.xlu0 %v718, 64
      %v835 = vpop.permute.xlu0 %834
      %836 = vrot.lane.b32.xlu0 %v805, 64
      %v837 = vpop.permute.xlu0 %836
      %v839 = vunpack.c.l.b16 %v279
      %v840 = vpack.c.b16 %v839, %v839
      %v842 = vshrl.u32 %v805, 16
      %v844 = vshll.u32 %v805, 16
      %v846 = vrot.slane %v844, 1
      %v847 = vor.u32 %v842, %v846
      %v849 = vshll.u32 %v840, 16
      %v851 = vrot.slane %v849, 1
      %v852 = vsel %vm408, %v847, %v851
      %853 = vrot.lane.b32.xlu0 %v444, 96
      %v854 = vpop.permute.xlu0 %853
      %855 = vrot.lane.b32.xlu0 %v456, 96
      %v856 = vpop.permute.xlu0 %855
      %857 = vrot.lane.b32.xlu0 %v468, 96
      %v858 = vpop.permute.xlu0 %857
      %859 = vrot.lane.b32.xlu0 %v480, 96
      %v860 = vpop.permute.xlu0 %859
      %861 = vrot.lane.b32.xlu0 %v492, 96
      %v862 = vpop.permute.xlu0 %861
      %863 = vrot.lane.b32.xlu0 %v504, 96
      %v864 = vpop.permute.xlu0 %863
      %865 = vrot.lane.b32.xlu0 %v516, 96
      %v866 = vpop.permute.xlu0 %865
      %867 = vrot.lane.b32.xlu0 %v528, 96
      %v868 = vpop.permute.xlu0 %867
      %869 = vrot.lane.b32.xlu0 %v540, 96
      %v870 = vpop.permute.xlu0 %869
      %871 = vrot.lane.b32.xlu0 %v552, 96
      %v872 = vpop.permute.xlu0 %871
      %873 = vrot.lane.b32.xlu0 %v564, 96
      %v874 = vpop.permute.xlu0 %873
      %875 = vrot.lane.b32.xlu0 %v576, 96
      %v876 = vpop.permute.xlu0 %875
      %877 = vrot.lane.b32.xlu0 %v588, 96
      %v878 = vpop.permute.xlu0 %877
      %879 = vrot.lane.b32.xlu0 %v600, 96
      %v880 = vpop.permute.xlu0 %879
      %881 = vrot.lane.b32.xlu0 %v765, 96
      %v882 = vpop.permute.xlu0 %881
      %883 = vrot.lane.b32.xlu0 %v852, 96
      %v884 = vpop.permute.xlu0 %883
      %v885 = vrot.slane %v805, 1
      %v886 = vrot.slane %v840, 1
      %v887 = vsel %vm633, %v885, %v886
      %vm888 = vcmask 261120
      %v890 = vsel %vm888, %v344, %v602
      %v892 = vsel %vm888, %v345, %v604
      %v894 = vsel %vm888, %v346, %v606
      %v896 = vsel %vm888, %v347, %v608
      %v898 = vsel %vm888, %v348, %v610
      %v900 = vsel %vm888, %v349, %v612
      %v902 = vsel %vm888, %v350, %v614
      %v904 = vsel %vm888, %v351, %v616
      %v906 = vsel %vm888, %v352, %v618
      %v908 = vsel %vm888, %v353, %v620
      %v910 = vsel %vm888, %v354, %v622
      %v912 = vsel %vm888, %v355, %v624
      %v914 = vsel %vm888, %v356, %v626
      %v916 = vsel %vm888, %v357, %v628
      %v918 = vsel %vm888, %v358, %v630
      %v920 = vsel %vm888, %v359, %v632
      %vm921 = vcmask 523264
      %v923 = vsel %vm921, %v890, %v683
      %v925 = vsel %vm921, %v892, %v685
      %v927 = vsel %vm921, %v894, %v687
      %v929 = vsel %vm921, %v896, %v689
      %v931 = vsel %vm921, %v898, %v691
      %v933 = vsel %vm921, %v900, %v693
      %v935 = vsel %vm921, %v902, %v695
      %v937 = vsel %vm921, %v904, %v697
      %v939 = vsel %vm921, %v906, %v699
      %v941 = vsel %vm921, %v908, %v701
      %v943 = vsel %vm921, %v910, %v703
      %v945 = vsel %vm921, %v912, %v705
      %v947 = vsel %vm921, %v914, %v707
      %v949 = vsel %vm921, %v916, %v709
      %v951 = vsel %vm921, %v918, %v711
      %v953 = vsel %vm921, %v920, %v713
      %vm954 = vcmask 785408
      %v956 = vsel %vm954, %v923, %v720
      %v959 = vsel %vm954, %v925, %v722
      %v962 = vsel %vm954, %v927, %v724
      %v965 = vsel %vm954, %v929, %v726
      %v968 = vsel %vm954, %v931, %v728
      %v971 = vsel %vm954, %v933, %v730
      %v974 = vsel %vm954, %v935, %v732
      %v977 = vsel %vm954, %v937, %v734
      %v980 = vsel %vm954, %v939, %v736
      %v983 = vsel %vm954, %v941, %v738
      %v986 = vsel %vm954, %v943, %v740
      %v989 = vsel %vm954, %v945, %v742
      %v992 = vsel %vm954, %v947, %v744
      %v995 = vsel %vm954, %v949, %v746
      %v998 = vsel %vm954, %v951, %v748
      %v1001 = vsel %vm954, %v953, %v750
      %v1005 = vsel %vm888, %v432, %v770
      %v1008 = vsel %vm888, %v444, %v772
      %v1011 = vsel %vm888, %v456, %v774
      %v1014 = vsel %vm888, %v468, %v776
      %v1017 = vsel %vm888, %v480, %v778
      %v1020 = vsel %vm888, %v492, %v780
      %v1023 = vsel %vm888, %v504, %v782
      %v1026 = vsel %vm888, %v516, %v784
      %v1029 = vsel %vm888, %v528, %v786
      %v1032 = vsel %vm888, %v540, %v788
      %v1035 = vsel %vm888, %v552, %v790
      %v1038 = vsel %vm888, %v564, %v792
      %v1041 = vsel %vm888, %v576, %v794
      %v1044 = vsel %vm888, %v588, %v796
      %v1047 = vsel %vm888, %v600, %v798
      %v1050 = vsel %vm888, %v765, %v800
      %v1052 = vsel %vm921, %v1005, %v807
      %v1054 = vsel %vm921, %v1008, %v809
      %v1056 = vsel %vm921, %v1011, %v811
      %v1058 = vsel %vm921, %v1014, %v813
      %v1060 = vsel %vm921, %v1017, %v815
      %v1062 = vsel %vm921, %v1020, %v817
      %v1064 = vsel %vm921, %v1023, %v819
      %v1066 = vsel %vm921, %v1026, %v821
      %v1068 = vsel %vm921, %v1029, %v823
      %v1070 = vsel %vm921, %v1032, %v825
      %v1072 = vsel %vm921, %v1035, %v827
      %v1074 = vsel %vm921, %v1038, %v829
      %v1076 = vsel %vm921, %v1041, %v831
      %v1078 = vsel %vm921, %v1044, %v833
      %v1080 = vsel %vm921, %v1047, %v835
      %v1082 = vsel %vm921, %v1050, %v837
      %v1084 = vsel %vm954, %v1052, %v854
      %v1087 = vsel %vm954, %v1054, %v856
      %v1090 = vsel %vm954, %v1056, %v858
      %v1093 = vsel %vm954, %v1058, %v860
      %v1096 = vsel %vm954, %v1060, %v862
      %v1099 = vsel %vm954, %v1062, %v864
      %v1102 = vsel %vm954, %v1064, %v866
      %v1105 = vsel %vm954, %v1066, %v868
      %v1108 = vsel %vm954, %v1068, %v870
      %v1111 = vsel %vm954, %v1070, %v872
      %v1114 = vsel %vm954, %v1072, %v874
      %v1117 = vsel %vm954, %v1074, %v876
      %v1120 = vsel %vm954, %v1076, %v878
      %v1123 = vsel %vm954, %v1078, %v880
      %v1126 = vsel %vm954, %v1080, %v882
      %v1129 = vsel %vm954, %v1082, %v884
      %v1131 = vld [vmem:[%s1] sm:$0xff]
      %v1132 = vld [vmem:[%s1 + $0x8] sm:$0xff]
      %v1133 = vld [vmem:[%s1 + $0x10] sm:$0xff]
      %v1134 = vld [vmem:[%s1 + $0x18] sm:$0xff]
      %v1135 = vld [vmem:[%s1 + $0x20] sm:$0xff]
      %v1136 = vld [vmem:[%s1 + $0x28] sm:$0xff]
      %v1137 = vld [vmem:[%s1 + $0x30] sm:$0xff]
      %v1138 = vld [vmem:[%s1 + $0x38] sm:$0xff]
      %v1139 = vld [vmem:[%s1 + $0x40] sm:$0xff]
      %v1140 = vld [vmem:[%s1 + $0x48] sm:$0xff]
      %v1141 = vld [vmem:[%s1 + $0x50] sm:$0xff]
      %v1142 = vld [vmem:[%s1 + $0x58] sm:$0xff]
      %v1143 = vld [vmem:[%s1 + $0x60] sm:$0xff]
      %v1144 = vld [vmem:[%s1 + $0x68] sm:$0xff]
      %v1145 = vld [vmem:[%s1 + $0x70] sm:$0xff]
      %v1146 = vld [vmem:[%s1 + $0x78] sm:$0xff]
      %v1147 = vld [vmem:[%s1 + $0x80] sm:$0xff]
      %v1148 = vld [vmem:[%s1 + $0x88] sm:$0xff]
      %v1149 = vld [vmem:[%s1 + $0x90] sm:$0xff]
      %v1150 = vld [vmem:[%s1 + $0x98] sm:$0xff]
      %v1151 = vld [vmem:[%s1 + $0xa0] sm:$0xff]
      %v1152 = vld [vmem:[%s1 + $0xa8] sm:$0xff]
      %v1153 = vld [vmem:[%s1 + $0xb0] sm:$0xff]
      %v1154 = vld [vmem:[%s1 + $0xb8] sm:$0xff]
      %v1155 = vld [vmem:[%s1 + $0xc0] sm:$0xff]
      %v1156 = vld [vmem:[%s1 + $0xc8] sm:$0xff]
      %v1157 = vld [vmem:[%s1 + $0xd0] sm:$0xff]
      %v1158 = vld [vmem:[%s1 + $0xd8] sm:$0xff]
      %v1159 = vld [vmem:[%s1 + $0xe0] sm:$0xff]
      %v1160 = vld [vmem:[%s1 + $0xe8] sm:$0xff]
      %v1161 = vld [vmem:[%s1 + $0xf0] sm:$0xff]
      %v1162 = vld [vmem:[%s1 + $0xf8] sm:$0xff]
      %v1163 = vld [vmem:[%s1 + $0x100] sm:$0xff]
      %v1164 = vld [vmem:[%s1 + $0x108] sm:$0xff]
      %v1165 = vld [vmem:[%s1 + $0x110] sm:$0xff]
      %v1166 = vld [vmem:[%s1 + $0x118] sm:$0xff]
      %v1167 = vld [vmem:[%s1 + $0x120] sm:$0xff]
      %v1168 = vld [vmem:[%s1 + $0x128] sm:$0xff]
      %v1169 = vld [vmem:[%s1 + $0x130] sm:$0xff]
      %v1170 = vld [vmem:[%s1 + $0x138] sm:$0xff]
      %v1171 = vld [vmem:[%s1 + $0x140] sm:$0xff]
      %v1172 = vld [vmem:[%s1 + $0x148] sm:$0xff]
      %v1173 = vld [vmem:[%s1 + $0x150] sm:$0xff]
      %v1174 = vld [vmem:[%s1 + $0x158] sm:$0xff]
      %v1175 = vld [vmem:[%s1 + $0x160] sm:$0xff]
      %v1176 = vld [vmem:[%s1 + $0x168] sm:$0xff]
      %v1177 = vld [vmem:[%s1 + $0x170] sm:$0xff]
      %v1178 = vld [vmem:[%s1 + $0x178] sm:$0xff]
      %v1179 = vld [vmem:[%s1 + $0x180] sm:$0xff]
      %v1180 = vld [vmem:[%s1 + $0x188] sm:$0xff]
      %v1181 = vld [vmem:[%s1 + $0x190] sm:$0xff]
      %v1182 = vld [vmem:[%s1 + $0x198] sm:$0xff]
      %v1183 = vld [vmem:[%s1 + $0x1a0] sm:$0xff]
      %v1184 = vld [vmem:[%s1 + $0x1a8] sm:$0xff]
      %v1185 = vld [vmem:[%s1 + $0x1b0] sm:$0xff]
      %v1186 = vld [vmem:[%s1 + $0x1b8] sm:$0xff]
      %v1187 = vld [vmem:[%s1 + $0x1c0] sm:$0xff]
      %v1188 = vld [vmem:[%s1 + $0x1c8] sm:$0xff]
      %v1189 = vld [vmem:[%s1 + $0x1d0] sm:$0xff]
      %v1190 = vld [vmem:[%s1 + $0x1d8] sm:$0xff]
      %v1191 = vld [vmem:[%s1 + $0x1e0] sm:$0xff]
      %v1192 = vld [vmem:[%s1 + $0x1e8] sm:$0xff]
      %v1193 = vld [vmem:[%s1 + $0x1f0] sm:$0xff]
      %v1194 = vld [vmem:[%s1 + $0x1f8] sm:$0xff]
      %v1195 = vld [vmem:[%s1 + $0x200] sm:$0xff]
      %v1196 = vld [vmem:[%s1 + $0x208] sm:$0xff]
      %v1197 = vld [vmem:[%s1 + $0x210] sm:$0xff]
      %v1198 = vld [vmem:[%s1 + $0x218] sm:$0xff]
      %v1199 = vld [vmem:[%s1 + $0x220] sm:$0xff]
      %v1200 = vld [vmem:[%s1 + $0x228] sm:$0xff]
      %v1201 = vld [vmem:[%s1 + $0x230] sm:$0xff]
      %v1202 = vld [vmem:[%s1 + $0x238] sm:$0xff]
      %v1203 = vld [vmem:[%s2] sm:$0xf]
      %v1205 = vlaneseq
      %v1206 = vshrl.u32 %v1205, 7
      %v1207 = vsub.s32 0, %v1206
      %v1208 = vrot.slane %v1203, %v1207
      %v1209 = vlaneseq
      %v1210 = vshrl.u32 %v1209, 7
      %v1211 = vsub.s32 1, %v1210
      %v1212 = vrot.slane %v1203, %v1211
      %v1213 = vlaneseq
      %v1214 = vshrl.u32 %v1213, 7
      %v1215 = vsub.s32 2, %v1214
      %v1216 = vrot.slane %v1203, %v1215
      %v1217 = vlaneseq
      %v1218 = vshrl.u32 %v1217, 7
      %v1219 = vsub.s32 3, %v1218
      %v1220 = vrot.slane %v1203, %v1219
      %v1297 = vunpack.c.l.b16 %v1131
      %v1298 = vunpack.c.h.b16 %v1131
      %v1299 = vunpack.c.l.b16 %v1132
      %v1300 = vunpack.c.h.b16 %v1132
      %v1301 = vunpack.c.l.b16 %v1133
      %v1302 = vunpack.c.h.b16 %v1133
      %v1303 = vunpack.c.l.b16 %v1134
      %v1304 = vunpack.c.h.b16 %v1134
      %v1305 = vunpack.c.l.b16 %v1135
      %v1306 = vunpack.c.h.b16 %v1135
      %v1307 = vunpack.c.l.b16 %v1136
      %v1308 = vunpack.c.h.b16 %v1136
      %v1309 = vunpack.c.l.b16 %v1137
      %v1310 = vunpack.c.h.b16 %v1137
      %v1311 = vunpack.c.l.b16 %v1138
      %v1312 = vunpack.c.h.b16 %v1138
      %v1313 = vunpack.c.l.b16 %v1139
      %v1314 = vunpack.c.h.b16 %v1139
      %v1315 = vunpack.c.l.b16 %v1140
      %v1316 = vunpack.c.h.b16 %v1140
      %v1317 = vunpack.c.l.b16 %v1141
      %v1318 = vunpack.c.h.b16 %v1141
      %v1319 = vunpack.c.l.b16 %v1142
      %v1320 = vunpack.c.h.b16 %v1142
      %v1321 = vunpack.c.l.b16 %v1143
      %v1322 = vunpack.c.h.b16 %v1143
      %v1323 = vunpack.c.l.b16 %v1144
      %v1324 = vunpack.c.h.b16 %v1144
      %v1325 = vunpack.c.l.b16 %v1145
      %v1326 = vunpack.c.h.b16 %v1145
      %v1327 = vunpack.c.l.b16 %v1146
      %v1328 = vunpack.c.h.b16 %v1146
      %v1329 = vunpack.c.l.b16 %v1147
      %v1330 = vunpack.c.h.b16 %v1147
      %v1331 = vunpack.c.l.b16 %v1148
      %v1332 = vunpack.c.h.b16 %v1148
      %v1333 = vunpack.c.l.b16 %v1149
      %v1334 = vunpack.c.h.b16 %v1149
      %v1335 = vunpack.c.l.b16 %v1150
      %v1336 = vunpack.c.h.b16 %v1150
      %v1337 = vunpack.c.l.b16 %v1151
      %v1338 = vunpack.c.h.b16 %v1151
      %v1339 = vunpack.c.l.b16 %v1152
      %v1340 = vunpack.c.h.b16 %v1152
      %v1341 = vunpack.c.l.b16 %v1153
      %v1342 = vunpack.c.h.b16 %v1153
      %v1343 = vunpack.c.l.b16 %v1154
      %v1344 = vunpack.c.h.b16 %v1154
      %v1345 = vunpack.c.l.b16 %v1155
      %v1346 = vunpack.c.h.b16 %v1155
      %v1347 = vunpack.c.l.b16 %v1156
      %v1348 = vunpack.c.h.b16 %v1156
      %v1349 = vunpack.c.l.b16 %v1157
      %v1350 = vunpack.c.h.b16 %v1157
      %v1351 = vunpack.c.l.b16 %v1158
      %v1352 = vunpack.c.h.b16 %v1158
      %v1353 = vunpack.c.l.b16 %v1159
      %v1354 = vunpack.c.h.b16 %v1159
      %v1355 = vunpack.c.l.b16 %v1160
      %v1356 = vunpack.c.h.b16 %v1160
      %v1357 = vunpack.c.l.b16 %v1161
      %v1358 = vunpack.c.h.b16 %v1161
      %v1359 = vunpack.c.l.b16 %v1162
      %v1360 = vunpack.c.h.b16 %v1162
      %v1361 = vunpack.c.l.b16 %v1163
      %v1362 = vunpack.c.h.b16 %v1163
      %v1363 = vunpack.c.l.b16 %v1164
      %v1364 = vunpack.c.h.b16 %v1164
      %v1365 = vunpack.c.l.b16 %v1165
      %v1366 = vunpack.c.h.b16 %v1165
      %v1367 = vunpack.c.l.b16 %v1166
      %v1368 = vunpack.c.h.b16 %v1166
      %v1369 = vunpack.c.l.b16 %v1167
      %v1370 = vunpack.c.h.b16 %v1167
      %v1371 = vunpack.c.l.b16 %v1168
      %v1372 = vunpack.c.h.b16 %v1168
      %v1373 = vunpack.c.l.b16 %v1169
      %v1374 = vunpack.c.h.b16 %v1169
      %v1375 = vunpack.c.l.b16 %v1170
      %v1376 = vunpack.c.h.b16 %v1170
      %v1377 = vunpack.c.l.b16 %v1171
      %v1378 = vunpack.c.h.b16 %v1171
      %v1379 = vunpack.c.l.b16 %v1172
      %v1380 = vunpack.c.h.b16 %v1172
      %v1381 = vunpack.c.l.b16 %v1173
      %v1382 = vunpack.c.h.b16 %v1173
      %v1383 = vunpack.c.l.b16 %v1174
      %v1384 = vunpack.c.h.b16 %v1174
      %v1385 = vunpack.c.l.b16 %v1175
      %v1386 = vunpack.c.h.b16 %v1175
      %v1387 = vunpack.c.l.b16 %v1176
      %v1388 = vunpack.c.h.b16 %v1176
      %v1389 = vunpack.c.l.b16 %v1177
      %v1390 = vunpack.c.h.b16 %v1177
      %v1391 = vunpack.c.l.b16 %v1178
      %v1392 = vunpack.c.h.b16 %v1178
      %v1393 = vunpack.c.l.b16 %v1179
      %v1394 = vunpack.c.h.b16 %v1179
      %v1395 = vunpack.c.l.b16 %v1180
      %v1396 = vunpack.c.h.b16 %v1180
      %v1397 = vunpack.c.l.b16 %v1181
      %v1398 = vunpack.c.h.b16 %v1181
      %v1399 = vunpack.c.l.b16 %v1182
      %v1400 = vunpack.c.h.b16 %v1182
      %v1401 = vunpack.c.l.b16 %v1183
      %v1402 = vunpack.c.h.b16 %v1183
      %v1403 = vunpack.c.l.b16 %v1184
      %v1404 = vunpack.c.h.b16 %v1184
      %v1405 = vunpack.c.l.b16 %v1185
      %v1406 = vunpack.c.h.b16 %v1185
      %v1407 = vunpack.c.l.b16 %v1186
      %v1408 = vunpack.c.h.b16 %v1186
      %v1409 = vunpack.c.l.b16 %v1187
      %v1410 = vunpack.c.h.b16 %v1187
      %v1411 = vunpack.c.l.b16 %v1188
      %v1412 = vunpack.c.h.b16 %v1188
      %v1413 = vunpack.c.l.b16 %v1189
      %v1414 = vunpack.c.h.b16 %v1189
      %v1415 = vunpack.c.l.b16 %v1190
      %v1416 = vunpack.c.h.b16 %v1190
      %v1417 = vunpack.c.l.b16 %v1191
      %v1418 = vunpack.c.h.b16 %v1191
      %v1419 = vunpack.c.l.b16 %v1192
      %v1420 = vunpack.c.h.b16 %v1192
      %v1421 = vunpack.c.l.b16 %v1193
      %v1422 = vunpack.c.h.b16 %v1193
      %v1423 = vunpack.c.l.b16 %v1194
      %v1424 = vunpack.c.h.b16 %v1194
      %v1425 = vunpack.c.l.b16 %v1195
      %v1426 = vunpack.c.h.b16 %v1195
      %v1427 = vunpack.c.l.b16 %v1196
      %v1428 = vunpack.c.h.b16 %v1196
      %v1429 = vunpack.c.l.b16 %v1197
      %v1430 = vunpack.c.h.b16 %v1197
      %v1431 = vunpack.c.l.b16 %v1198
      %v1432 = vunpack.c.h.b16 %v1198
      %v1433 = vunpack.c.l.b16 %v1199
      %v1434 = vunpack.c.h.b16 %v1199
      %v1435 = vunpack.c.l.b16 %v1200
      %v1436 = vunpack.c.h.b16 %v1200
      %v1437 = vunpack.c.l.b16 %v1201
      %v1438 = vunpack.c.h.b16 %v1201
      %v1439 = vunpack.c.l.b16 %v1202
      %v1440 = vunpack.c.h.b16 %v1202
      %v1441 = vpack.c.b16 %v1301, %v1297
      %v1442 = vpack.c.b16 %v1302, %v1298
      %v1443 = vpack.c.b16 %v1303, %v1299
      %v1444 = vpack.c.b16 %v1304, %v1300
      %v1445 = vpack.c.b16 %v1309, %v1305
      %v1446 = vpack.c.b16 %v1310, %v1306
      %v1447 = vpack.c.b16 %v1311, %v1307
      %v1448 = vpack.c.b16 %v1312, %v1308
      %v1449 = vpack.c.b16 %v1317, %v1313
      %v1450 = vpack.c.b16 %v1318, %v1314
      %v1451 = vpack.c.b16 %v1319, %v1315
      %v1452 = vpack.c.b16 %v1320, %v1316
      %v1453 = vpack.c.b16 %v1325, %v1321
      %v1454 = vpack.c.b16 %v1326, %v1322
      %v1455 = vpack.c.b16 %v1327, %v1323
      %v1456 = vpack.c.b16 %v1328, %v1324
      %v1457 = vpack.c.b16 %v1333, %v1329
      %v1458 = vpack.c.b16 %v1334, %v1330
      %v1459 = vpack.c.b16 %v1335, %v1331
      %v1460 = vpack.c.b16 %v1336, %v1332
      %v1461 = vpack.c.b16 %v1341, %v1337
      %v1462 = vpack.c.b16 %v1342, %v1338
      %v1463 = vpack.c.b16 %v1343, %v1339
      %v1464 = vpack.c.b16 %v1344, %v1340
      %v1465 = vpack.c.b16 %v1349, %v1345
      %v1466 = vpack.c.b16 %v1350, %v1346
      %v1467 = vpack.c.b16 %v1351, %v1347
      %v1468 = vpack.c.b16 %v1352, %v1348
      %v1469 = vpack.c.b16 %v1357, %v1353
      %v1470 = vpack.c.b16 %v1358, %v1354
      %v1471 = vpack.c.b16 %v1359, %v1355
      %v1472 = vpack.c.b16 %v1360, %v1356
      %v1473 = vpack.c.b16 %v1365, %v1361
      %v1474 = vpack.c.b16 %v1366, %v1362
      %v1475 = vpack.c.b16 %v1367, %v1363
      %v1476 = vpack.c.b16 %v1368, %v1364
      %v1477 = vpack.c.b16 %v1373, %v1369
      %v1478 = vpack.c.b16 %v1374, %v1370
      %v1479 = vpack.c.b16 %v1375, %v1371
      %v1480 = vpack.c.b16 %v1376, %v1372
      %v1481 = vpack.c.b16 %v1381, %v1377
      %v1482 = vpack.c.b16 %v1382, %v1378
      %v1483 = vpack.c.b16 %v1383, %v1379
      %v1484 = vpack.c.b16 %v1384, %v1380
      %v1485 = vpack.c.b16 %v1389, %v1385
      %v1486 = vpack.c.b16 %v1390, %v1386
      %v1487 = vpack.c.b16 %v1391, %v1387
      %v1488 = vpack.c.b16 %v1392, %v1388
      %v1489 = vpack.c.b16 %v1397, %v1393
      %v1490 = vpack.c.b16 %v1398, %v1394
      %v1491 = vpack.c.b16 %v1399, %v1395
      %v1492 = vpack.c.b16 %v1400, %v1396
      %v1493 = vpack.c.b16 %v1405, %v1401
      %v1494 = vpack.c.b16 %v1406, %v1402
      %v1495 = vpack.c.b16 %v1407, %v1403
      %v1496 = vpack.c.b16 %v1408, %v1404
      %v1497 = vpack.c.b16 %v1413, %v1409
      %v1498 = vpack.c.b16 %v1414, %v1410
      %v1499 = vpack.c.b16 %v1415, %v1411
      %v1500 = vpack.c.b16 %v1416, %v1412
      %v1501 = vpack.c.b16 %v1421, %v1417
      %v1502 = vpack.c.b16 %v1422, %v1418
      %v1503 = vpack.c.b16 %v1423, %v1419
      %v1504 = vpack.c.b16 %v1424, %v1420
      %v1505 = vpack.c.b16 %v1429, %v1425
      %v1506 = vpack.c.b16 %v1430, %v1426
      %v1507 = vpack.c.b16 %v1431, %v1427
      %v1508 = vpack.c.b16 %v1432, %v1428
      %v1509 = vpack.c.b16 %v1437, %v1433
      %v1510 = vpack.c.b16 %v1438, %v1434
      %v1511 = vpack.c.b16 %v1439, %v1435
      %v1512 = vpack.c.b16 %v1440, %v1436
      %v1586 = vsel %vm888, %v642, 0
      %v1589 = vsel %vm888, %v645, 0
      %v1592 = vsel %vm888, %v648, 0
      %v1595 = vsel %vm888, %v651, 0
      %v1598 = vsel %vm888, %v654, 0
      %v1601 = vsel %vm888, %v657, 0
      %v1604 = vsel %vm888, %v660, 0
      %v1607 = vsel %vm888, %v663, 0
      %v1610 = vsel %vm888, %v666, 0
      %v1613 = vsel %vm888, %v669, 0
      %v1616 = vsel %vm888, %v672, 0
      %v1619 = vsel %vm888, %v675, 0
      %v1622 = vsel %vm888, %v678, 0
      %v1625 = vsel %vm888, %v681, 0
      %v1628 = vsel %vm888, %v768, 0
      %v1631 = vsel %vm888, %v887, 0
      %1633 = vmatprep.subr.bf16.mxu0 %v1442
      %1634 = vmatpush1.bf16.msra.mxu0 %v1441
      %1635 = vmatprep.subr.bf16.mxu0 %v1446
      %1636 = vmatpush1.bf16.msra.mxu0 %v1445
      %1637 = vmatprep.subr.bf16.mxu0 %v1450
      %1638 = vmatpush1.bf16.msra.mxu0 %v1449
      %1639 = vmatprep.subr.bf16.mxu0 %v1454
      %1640 = vmatpush1.bf16.msra.mxu0 %v1453
      %1641 = vmatprep.subr.bf16.mxu0 %v1458
      %1642 = vmatpush1.bf16.msra.mxu0 %v1457
      %1643 = vmatprep.subr.bf16.mxu0 %v1462
      %1644 = vmatpush1.bf16.msra.mxu0 %v1461
      %1645 = vmatprep.subr.bf16.mxu0 %v1466
      %1646 = vmatpush1.bf16.msra.mxu0 %v1465
      %1647 = vmatprep.subr.bf16.mxu0 %v1470
      %1648 = vmatpush1.bf16.msra.mxu0 %v1469
      %1649 = vmatprep.subr.bf16.mxu0 %v1474
      %1650 = vmatpush1.bf16.msra.mxu0 %v1473
      %1651 = vmatprep.subr.bf16.mxu0 %v1478
      %1652 = vmatpush1.bf16.msra.mxu0 %v1477
      %1653 = vmatprep.subr.bf16.mxu0 %v1482
      %1654 = vmatpush1.bf16.msra.mxu0 %v1481
      %1655 = vmatprep.subr.bf16.mxu0 %v1486
      %1656 = vmatpush1.bf16.msra.mxu0 %v1485
      %1657 = vmatprep.subr.bf16.mxu0 %v1490
      %1658 = vmatpush1.bf16.msra.mxu0 %v1489
      %1659 = vmatprep.subr.bf16.mxu0 %v1494
      %1660 = vmatpush1.bf16.msra.mxu0 %v1493
      %1661 = vmatprep.subr.bf16.mxu0 %v1498
      %1662 = vmatpush1.bf16.msra.mxu0 %v1497
      %1663 = vmatprep.subr.bf16.mxu0 %v1502
      %1664 = vmatpush1.bf16.msra.mxu0 %v1501
      %1665 = vmatprep.mubr.bf16.mxu0 %v1084
      %1666 = vmatmul.mubr.bf16.gmra.mrb[0].mxu0 %v956
      %v1667 = vpop.f32.mrb[0].mxu0
      %v1668 = vadd.f32 %v1208, %v1667
      %v1669 = vpop.f32.mrb[0].mxu0
      %v1670 = vadd.f32 %v1212, %v1669
      %v1671 = vpop.f32.mrb[0].mxu0
      %v1672 = vadd.f32 %v1208, %v1671
      %v1673 = vpop.f32.mrb[0].mxu0
      %v1674 = vadd.f32 %v1212, %v1673
      %1675 = vmatprep.mubr.bf16.mxu0 %v1087
      %1676 = vmatmul.mubr.bf16.gmra.mrb[0].mxu0 %v959
      %v1677 = vpop.f32.mrb[0].mxu0
      %v1678 = vadd.f32 %v1208, %v1677
      %v1679 = vpop.f32.mrb[0].mxu0
      %v1680 = vadd.f32 %v1212, %v1679
      %v1681 = vpop.f32.mrb[0].mxu0
      %v1682 = vadd.f32 %v1208, %v1681
      %v1683 = vpop.f32.mrb[0].mxu0
      %v1684 = vadd.f32 %v1212, %v1683
      %1685 = vmatprep.mubr.bf16.mxu0 %v1090
      %1686 = vmatmul.mubr.bf16.gmra.mrb[0].mxu0 %v962
      %v1687 = vpop.f32.mrb[0].mxu0
      %v1688 = vadd.f32 %v1208, %v1687
      %v1689 = vpop.f32.mrb[0].mxu0
      %v1690 = vadd.f32 %v1212, %v1689
      %v1691 = vpop.f32.mrb[0].mxu0
      %v1692 = vadd.f32 %v1208, %v1691
      %v1693 = vpop.f32.mrb[0].mxu0
      %v1694 = vadd.f32 %v1212, %v1693
      %1695 = vmatprep.mubr.bf16.mxu0 %v1093
      %1696 = vmatmul.mubr.bf16.gmra.mrb[0].mxu0 %v965
      %v1697 = vpop.f32.mrb[0].mxu0
      %v1698 = vadd.f32 %v1208, %v1697
      %v1699 = vpop.f32.mrb[0].mxu0
      %v1700 = vadd.f32 %v1212, %v1699
      %v1701 = vpop.f32.mrb[0].mxu0
      %v1702 = vadd.f32 %v1208, %v1701
      %v1703 = vpop.f32.mrb[0].mxu0
      %v1704 = vadd.f32 %v1212, %v1703
      %1705 = vmatprep.mubr.bf16.mxu0 %v1096
      %1706 = vmatmul.mubr.bf16.gmra.mrb[0].mxu0 %v968
      %v1707 = vpop.f32.mrb[0].mxu0
      %v1708 = vadd.f32 %v1208, %v1707
      %v1709 = vpop.f32.mrb[0].mxu0
      %v1710 = vadd.f32 %v1212, %v1709
      %v1711 = vpop.f32.mrb[0].mxu0
      %v1712 = vadd.f32 %v1208, %v1711
      %v1713 = vpop.f32.mrb[0].mxu0
      %v1714 = vadd.f32 %v1212, %v1713
      %1715 = vmatprep.mubr.bf16.mxu0 %v1099
      %1716 = vmatmul.mubr.bf16.gmra.mrb[0].mxu0 %v971
      %v1717 = vpop.f32.mrb[0].mxu0
      %v1718 = vadd.f32 %v1208, %v1717
      %v1719 = vpop.f32.mrb[0].mxu0
      %v1720 = vadd.f32 %v1212, %v1719
      %v1721 = vpop.f32.mrb[0].mxu0
      %v1722 = vadd.f32 %v1208, %v1721
      %v1723 = vpop.f32.mrb[0].mxu0
      %v1724 = vadd.f32 %v1212, %v1723
      %1725 = vmatprep.mubr.bf16.mxu0 %v1102
      %1726 = vmatmul.mubr.bf16.gmra.mrb[0].mxu0 %v974
      %v1727 = vpop.f32.mrb[0].mxu0
      %v1728 = vadd.f32 %v1208, %v1727
      %v1729 = vpop.f32.mrb[0].mxu0
      %v1730 = vadd.f32 %v1212, %v1729
      %v1731 = vpop.f32.mrb[0].mxu0
      %v1732 = vadd.f32 %v1208, %v1731
      %v1733 = vpop.f32.mrb[0].mxu0
      %v1734 = vadd.f32 %v1212, %v1733
      %1735 = vmatprep.mubr.bf16.mxu0 %v1105
      %1736 = vmatmul.mubr.bf16.gmra.mrb[0].mxu0 %v977
      %v1737 = vpop.f32.mrb[0].mxu0
      %v1738 = vadd.f32 %v1208, %v1737
      %v1739 = vpop.f32.mrb[0].mxu0
      %v1740 = vadd.f32 %v1212, %v1739
      %v1741 = vpop.f32.mrb[0].mxu0
      %v1742 = vadd.f32 %v1208, %v1741
      %v1743 = vpop.f32.mrb[0].mxu0
      %v1744 = vadd.f32 %v1212, %v1743
      %1745 = vmatprep.mubr.bf16.mxu0 %v1108
      %1746 = vmatmul.mubr.bf16.gmra.mrb[0].mxu0 %v980
      %v1747 = vpop.f32.mrb[0].mxu0
      %v1748 = vadd.f32 %v1208, %v1747
      %v1749 = vpop.f32.mrb[0].mxu0
      %v1750 = vadd.f32 %v1212, %v1749
      %v1751 = vpop.f32.mrb[0].mxu0
      %v1752 = vadd.f32 %v1208, %v1751
      %v1753 = vpop.f32.mrb[0].mxu0
      %v1754 = vadd.f32 %v1212, %v1753
      %1755 = vmatprep.mubr.bf16.mxu0 %v1111
      %1756 = vmatmul.mubr.bf16.gmra.mrb[0].mxu0 %v983
      %v1757 = vpop.f32.mrb[0].mxu0
      %v1758 = vadd.f32 %v1208, %v1757
      %v1759 = vpop.f32.mrb[0].mxu0
      %v1760 = vadd.f32 %v1212, %v1759
      %v1761 = vpop.f32.mrb[0].mxu0
      %v1762 = vadd.f32 %v1208, %v1761
      %v1763 = vpop.f32.mrb[0].mxu0
      %v1764 = vadd.f32 %v1212, %v1763
      %1765 = vmatprep.mubr.bf16.mxu0 %v1114
      %1766 = vmatmul.mubr.bf16.gmra.mrb[0].mxu0 %v986
      %v1767 = vpop.f32.mrb[0].mxu0
      %v1768 = vadd.f32 %v1208, %v1767
      %v1769 = vpop.f32.mrb[0].mxu0
      %v1770 = vadd.f32 %v1212, %v1769
      %v1771 = vpop.f32.mrb[0].mxu0
      %v1772 = vadd.f32 %v1208, %v1771
      %v1773 = vpop.f32.mrb[0].mxu0
      %v1774 = vadd.f32 %v1212, %v1773
      %1775 = vmatprep.mubr.bf16.mxu0 %v1117
      %1776 = vmatmul.mubr.bf16.gmra.mrb[0].mxu0 %v989
      %v1777 = vpop.f32.mrb[0].mxu0
      %v1778 = vadd.f32 %v1208, %v1777
      %v1779 = vpop.f32.mrb[0].mxu0
      %v1780 = vadd.f32 %v1212, %v1779
      %v1781 = vpop.f32.mrb[0].mxu0
      %v1782 = vadd.f32 %v1208, %v1781
      %v1783 = vpop.f32.mrb[0].mxu0
      %v1784 = vadd.f32 %v1212, %v1783
      %1785 = vmatprep.mubr.bf16.mxu0 %v1120
      %1786 = vmatmul.mubr.bf16.gmra.mrb[0].mxu0 %v992
      %v1787 = vpop.f32.mrb[0].mxu0
      %v1788 = vadd.f32 %v1208, %v1787
      %v1789 = vpop.f32.mrb[0].mxu0
      %v1790 = vadd.f32 %v1212, %v1789
      %v1791 = vpop.f32.mrb[0].mxu0
      %v1792 = vadd.f32 %v1208, %v1791
      %v1793 = vpop.f32.mrb[0].mxu0
      %v1794 = vadd.f32 %v1212, %v1793
      %1795 = vmatprep.mubr.bf16.mxu0 %v1123
      %1796 = vmatmul.mubr.bf16.gmra.mrb[0].mxu0 %v995
      %v1797 = vpop.f32.mrb[0].mxu0
      %v1798 = vadd.f32 %v1208, %v1797
      %v1799 = vpop.f32.mrb[0].mxu0
      %v1800 = vadd.f32 %v1212, %v1799
      %v1801 = vpop.f32.mrb[0].mxu0
      %v1802 = vadd.f32 %v1208, %v1801
      %v1803 = vpop.f32.mrb[0].mxu0
      %v1804 = vadd.f32 %v1212, %v1803
      %1805 = vmatprep.mubr.bf16.mxu0 %v1126
      %1806 = vmatmul.mubr.bf16.gmra.mrb[0].mxu0 %v998
      %v1807 = vpop.f32.mrb[0].mxu0
      %v1808 = vadd.f32 %v1208, %v1807
      %v1809 = vpop.f32.mrb[0].mxu0
      %v1810 = vadd.f32 %v1212, %v1809
      %v1811 = vpop.f32.mrb[0].mxu0
      %v1812 = vadd.f32 %v1208, %v1811
      %v1813 = vpop.f32.mrb[0].mxu0
      %v1814 = vadd.f32 %v1212, %v1813
      %1815 = vmatprep.mubr.bf16.mxu0 %v1129
      %1816 = vmatmul.mubr.bf16.gmra.mrb[0].mxu0 %v1001
      %v1817 = vpop.f32.mrb[0].mxu0
      %v1818 = vadd.f32 %v1208, %v1817
      %v1819 = vpop.f32.mrb[0].mxu0
      %v1820 = vadd.f32 %v1212, %v1819
      %v1821 = vpop.f32.mrb[0].mxu0
      %v1822 = vadd.f32 %v1208, %v1821
      %v1823 = vpop.f32.mrb[0].mxu0
      %v1824 = vadd.f32 %v1212, %v1823
      %1825 = vdwg.mxu0
      %1826 = vmatprep.subr.bf16.mxu0 %v1506
      %1827 = vmatpush1.bf16.msra.mxu0 %v1505
      %1828 = vmatprep.subr.bf16.mxu0 %v1510
      %1829 = vmatpush1.bf16.msra.mxu0 %v1509
      %1830 = vmatprep.subr.bf16.mxu0 0
      %1831 = vmatpush1.bf16.msra.mxu0 0
      %1832 = vmatprep.subr.bf16.mxu0 0
      %1833 = vmatpush1.bf16.msra.mxu0 0
      %1834 = vmatprep.subr.bf16.mxu0 0
      %1835 = vmatpush1.bf16.msra.mxu0 0
      %1836 = vmatprep.subr.bf16.mxu0 0
      %1837 = vmatpush1.bf16.msra.mxu0 0
      %1838 = vmatprep.subr.bf16.mxu0 0
      %1839 = vmatpush1.bf16.msra.mxu0 0
      %1840 = vmatprep.subr.bf16.mxu0 0
      %1841 = vmatpush1.bf16.msra.mxu0 0
      %1842 = vmatprep.subr.bf16.mxu0 0
      %1843 = vmatpush1.bf16.msra.mxu0 0
      %1844 = vmatprep.subr.bf16.mxu0 0
      %1845 = vmatpush1.bf16.msra.mxu0 0
      %1846 = vmatprep.subr.bf16.mxu0 0
      %1847 = vmatpush1.bf16.msra.mxu0 0
      %1848 = vmatprep.subr.bf16.mxu0 0
      %1849 = vmatpush1.bf16.msra.mxu0 0
      %1850 = vmatprep.subr.bf16.mxu0 0
      %1851 = vmatpush1.bf16.msra.mxu0 0
      %1852 = vmatprep.subr.bf16.mxu0 0
      %1853 = vmatpush1.bf16.msra.mxu0 0
      %1854 = vmatprep.subr.bf16.mxu0 0
      %1855 = vmatpush1.bf16.msra.mxu0 0
      %1856 = vmatprep.subr.bf16.mxu0 0
      %1857 = vmatpush1.bf16.msra.mxu0 0
      %1858 = vmatprep.mubr.bf16.mxu0 0
      %1859 = vmatmul.mubr.bf16.gmra.mrb[0].mxu0 %v1586
      %v1860 = vpop.f32.mrb[0].mxu0
      %v1861 = vadd.f32 %v1668, %v1860
      %v1862 = vpop.f32.mrb[0].mxu0
      %v1863 = vadd.f32 %v1670, %v1862
      %v1864 = vpop.f32.mrb[0].mxu0
      %v1865 = vadd.f32 %v1672, %v1864
      %v1866 = vpop.f32.mrb[0].mxu0
      %v1867 = vadd.f32 %v1674, %v1866
      %1868 = vmatprep.mubr.bf16.mxu0 0
      %1869 = vmatmul.mubr.bf16.gmra.mrb[0].mxu0 %v1589
      %v1870 = vpop.f32.mrb[0].mxu0
      %v1871 = vadd.f32 %v1678, %v1870
      %v1872 = vpop.f32.mrb[0].mxu0
      %v1873 = vadd.f32 %v1680, %v1872
      %v1874 = vpop.f32.mrb[0].mxu0
      %v1875 = vadd.f32 %v1682, %v1874
      %v1876 = vpop.f32.mrb[0].mxu0
      %v1877 = vadd.f32 %v1684, %v1876
      %1878 = vmatprep.mubr.bf16.mxu0 0
      %1879 = vmatmul.mubr.bf16.gmra.mrb[0].mxu0 %v1592
      %v1880 = vpop.f32.mrb[0].mxu0
      %v1881 = vadd.f32 %v1688, %v1880
      %v1882 = vpop.f32.mrb[0].mxu0
      %v1883 = vadd.f32 %v1690, %v1882
      %v1884 = vpop.f32.mrb[0].mxu0
      %v1885 = vadd.f32 %v1692, %v1884
      %v1886 = vpop.f32.mrb[0].mxu0
      %v1887 = vadd.f32 %v1694, %v1886
      %1888 = vmatprep.mubr.bf16.mxu0 0
      %1889 = vmatmul.mubr.bf16.gmra.mrb[0].mxu0 %v1595
      %v1890 = vpop.f32.mrb[0].mxu0
      %v1891 = vadd.f32 %v1698, %v1890
      %v1892 = vpop.f32.mrb[0].mxu0
      %v1893 = vadd.f32 %v1700, %v1892
      %v1894 = vpop.f32.mrb[0].mxu0
      %v1895 = vadd.f32 %v1702, %v1894
      %v1896 = vpop.f32.mrb[0].mxu0
      %v1897 = vadd.f32 %v1704, %v1896
      %1898 = vmatprep.mubr.bf16.mxu0 0
      %1899 = vmatmul.mubr.bf16.gmra.mrb[0].mxu0 %v1598
      %v1900 = vpop.f32.mrb[0].mxu0
      %v1901 = vadd.f32 %v1708, %v1900
      %v1902 = vpop.f32.mrb[0].mxu0
      %v1903 = vadd.f32 %v1710, %v1902
      %v1904 = vpop.f32.mrb[0].mxu0
      %v1905 = vadd.f32 %v1712, %v1904
      %v1906 = vpop.f32.mrb[0].mxu0
      %v1907 = vadd.f32 %v1714, %v1906
      %1908 = vmatprep.mubr.bf16.mxu0 0
      %1909 = vmatmul.mubr.bf16.gmra.mrb[0].mxu0 %v1601
      %v1910 = vpop.f32.mrb[0].mxu0
      %v1911 = vadd.f32 %v1718, %v1910
      %v1912 = vpop.f32.mrb[0].mxu0
      %v1913 = vadd.f32 %v1720, %v1912
      %v1914 = vpop.f32.mrb[0].mxu0
      %v1915 = vadd.f32 %v1722, %v1914
      %v1916 = vpop.f32.mrb[0].mxu0
      %v1917 = vadd.f32 %v1724, %v1916
      %1918 = vmatprep.mubr.bf16.mxu0 0
      %1919 = vmatmul.mubr.bf16.gmra.mrb[0].mxu0 %v1604
      %v1920 = vpop.f32.mrb[0].mxu0
      %v1921 = vadd.f32 %v1728, %v1920
      %v1922 = vpop.f32.mrb[0].mxu0
      %v1923 = vadd.f32 %v1730, %v1922
      %v1924 = vpop.f32.mrb[0].mxu0
      %v1925 = vadd.f32 %v1732, %v1924
      %v1926 = vpop.f32.mrb[0].mxu0
      %v1927 = vadd.f32 %v1734, %v1926
      %1928 = vmatprep.mubr.bf16.mxu0 0
      %1929 = vmatmul.mubr.bf16.gmra.mrb[0].mxu0 %v1607
      %v1930 = vpop.f32.mrb[0].mxu0
      %v1931 = vadd.f32 %v1738, %v1930
      %v1932 = vpop.f32.mrb[0].mxu0
      %v1933 = vadd.f32 %v1740, %v1932
      %v1934 = vpop.f32.mrb[0].mxu0
      %v1935 = vadd.f32 %v1742, %v1934
      %v1936 = vpop.f32.mrb[0].mxu0
      %v1937 = vadd.f32 %v1744, %v1936
      %1938 = vmatprep.mubr.bf16.mxu0 0
      %1939 = vmatmul.mubr.bf16.gmra.mrb[0].mxu0 %v1610
      %v1940 = vpop.f32.mrb[0].mxu0
      %v1941 = vadd.f32 %v1748, %v1940
      %v1942 = vpop.f32.mrb[0].mxu0
      %v1943 = vadd.f32 %v1750, %v1942
      %v1944 = vpop.f32.mrb[0].mxu0
      %v1945 = vadd.f32 %v1752, %v1944
      %v1946 = vpop.f32.mrb[0].mxu0
      %v1947 = vadd.f32 %v1754, %v1946
      %1948 = vmatprep.mubr.bf16.mxu0 0
      %1949 = vmatmul.mubr.bf16.gmra.mrb[0].mxu0 %v1613
      %v1950 = vpop.f32.mrb[0].mxu0
      %v1951 = vadd.f32 %v1758, %v1950
      %v1952 = vpop.f32.mrb[0].mxu0
      %v1953 = vadd.f32 %v1760, %v1952
      %v1954 = vpop.f32.mrb[0].mxu0
      %v1955 = vadd.f32 %v1762, %v1954
      %v1956 = vpop.f32.mrb[0].mxu0
      %v1957 = vadd.f32 %v1764, %v1956
      %1958 = vmatprep.mubr.bf16.mxu0 0
      %1959 = vmatmul.mubr.bf16.gmra.mrb[0].mxu0 %v1616
      %v1960 = vpop.f32.mrb[0].mxu0
      %v1961 = vadd.f32 %v1768, %v1960
      %v1962 = vpop.f32.mrb[0].mxu0
      %v1963 = vadd.f32 %v1770, %v1962
      %v1964 = vpop.f32.mrb[0].mxu0
      %v1965 = vadd.f32 %v1772, %v1964
      %v1966 = vpop.f32.mrb[0].mxu0
      %v1967 = vadd.f32 %v1774, %v1966
      %1968 = vmatprep.mubr.bf16.mxu0 0
      %1969 = vmatmul.mubr.bf16.gmra.mrb[0].mxu0 %v1619
      %v1970 = vpop.f32.mrb[0].mxu0
      %v1971 = vadd.f32 %v1778, %v1970
      %v1972 = vpop.f32.mrb[0].mxu0
      %v1973 = vadd.f32 %v1780, %v1972
      %v1974 = vpop.f32.mrb[0].mxu0
      %v1975 = vadd.f32 %v1782, %v1974
      %v1976 = vpop.f32.mrb[0].mxu0
      %v1977 = vadd.f32 %v1784, %v1976
      %1978 = vmatprep.mubr.bf16.mxu0 0
      %1979 = vmatmul.mubr.bf16.gmra.mrb[0].mxu0 %v1622
      %v1980 = vpop.f32.mrb[0].mxu0
      %v1981 = vadd.f32 %v1788, %v1980
      %v1982 = vpop.f32.mrb[0].mxu0
      %v1983 = vadd.f32 %v1790, %v1982
      %v1984 = vpop.f32.mrb[0].mxu0
      %v1985 = vadd.f32 %v1792, %v1984
      %v1986 = vpop.f32.mrb[0].mxu0
      %v1987 = vadd.f32 %v1794, %v1986
      %1988 = vmatprep.mubr.bf16.mxu0 0
      %1989 = vmatmul.mubr.bf16.gmra.mrb[0].mxu0 %v1625
      %v1990 = vpop.f32.mrb[0].mxu0
      %v1991 = vadd.f32 %v1798, %v1990
      %v1992 = vpop.f32.mrb[0].mxu0
      %v1993 = vadd.f32 %v1800, %v1992
      %v1994 = vpop.f32.mrb[0].mxu0
      %v1995 = vadd.f32 %v1802, %v1994
      %v1996 = vpop.f32.mrb[0].mxu0
      %v1997 = vadd.f32 %v1804, %v1996
      %1998 = vmatprep.mubr.bf16.mxu0 0
      %1999 = vmatmul.mubr.bf16.gmra.mrb[0].mxu0 %v1628
      %v2000 = vpop.f32.mrb[0].mxu0
      %v2001 = vadd.f32 %v1808, %v2000
      %v2002 = vpop.f32.mrb[0].mxu0
      %v2003 = vadd.f32 %v1810, %v2002
      %v2004 = vpop.f32.mrb[0].mxu0
      %v2005 = vadd.f32 %v1812, %v2004
      %v2006 = vpop.f32.mrb[0].mxu0
      %v2007 = vadd.f32 %v1814, %v2006
      %2008 = vmatprep.mubr.bf16.mxu0 0
      %2009 = vmatmul.mubr.bf16.gmra.mrb[0].mxu0 %v1631
      %v2010 = vpop.f32.mrb[0].mxu0
      %v2011 = vadd.f32 %v1818, %v2010
      %v2012 = vpop.f32.mrb[0].mxu0
      %v2013 = vadd.f32 %v1820, %v2012
      %v2014 = vpop.f32.mrb[0].mxu0
      %v2015 = vadd.f32 %v1822, %v2014
      %v2016 = vpop.f32.mrb[0].mxu0
      %v2017 = vadd.f32 %v1824, %v2016
      %2018 = vdwg.mxu0
      %2019 = vmatprep.subr.bf16.mxu0 %v1444
      %2020 = vmatpush1.bf16.msra.mxu0 %v1443
      %2021 = vmatprep.subr.bf16.mxu0 %v1448
      %2022 = vmatpush1.bf16.msra.mxu0 %v1447
      %2023 = vmatprep.subr.bf16.mxu0 %v1452
      %2024 = vmatpush1.bf16.msra.mxu0 %v1451
      %2025 = vmatprep.subr.bf16.mxu0 %v1456
      %2026 = vmatpush1.bf16.msra.mxu0 %v1455
      %2027 = vmatprep.subr.bf16.mxu0 %v1460
      %2028 = vmatpush1.bf16.msra.mxu0 %v1459
      %2029 = vmatprep.subr.bf16.mxu0 %v1464
      %2030 = vmatpush1.bf16.msra.mxu0 %v1463
      %2031 = vmatprep.subr.bf16.mxu0 %v1468
      %2032 = vmatpush1.bf16.msra.mxu0 %v1467
      %2033 = vmatprep.subr.bf16.mxu0 %v1472
      %2034 = vmatpush1.bf16.msra.mxu0 %v1471
      %2035 = vmatprep.subr.bf16.mxu0 %v1476
      %2036 = vmatpush1.bf16.msra.mxu0 %v1475
      %2037 = vmatprep.subr.bf16.mxu0 %v1480
      %2038 = vmatpush1.bf16.msra.mxu0 %v1479
      %2039 = vmatprep.subr.bf16.mxu0 %v1484
      %2040 = vmatpush1.bf16.msra.mxu0 %v1483
      %2041 = vmatprep.subr.bf16.mxu0 %v1488
      %2042 = vmatpush1.bf16.msra.mxu0 %v1487
      %2043 = vmatprep.subr.bf16.mxu0 %v1492
      %2044 = vmatpush1.bf16.msra.mxu0 %v1491
      %2045 = vmatprep.subr.bf16.mxu0 %v1496
      %2046 = vmatpush1.bf16.msra.mxu0 %v1495
      %2047 = vmatprep.subr.bf16.mxu0 %v1500
      %2048 = vmatpush1.bf16.msra.mxu0 %v1499
      %2049 = vmatprep.subr.bf16.mxu0 %v1504
      %2050 = vmatpush1.bf16.msra.mxu0 %v1503
      %2051 = vmatprep.mubr.bf16.mxu0 %v1084
      %2052 = vmatmul.mubr.bf16.gmra.mrb[0].mxu0 %v956
      %v2053 = vpop.f32.mrb[0].mxu0
      %v2054 = vadd.f32 %v1216, %v2053
      %v2055 = vpop.f32.mrb[0].mxu0
      %v2056 = vadd.f32 %v1220, %v2055
      %v2057 = vpop.f32.mrb[0].mxu0
      %v2058 = vadd.f32 %v1216, %v2057
      %v2059 = vpop.f32.mrb[0].mxu0
      %v2060 = vadd.f32 %v1220, %v2059
      %2061 = vmatprep.mubr.bf16.mxu0 %v1087
      %2062 = vmatmul.mubr.bf16.gmra.mrb[0].mxu0 %v959
      %v2063 = vpop.f32.mrb[0].mxu0
      %v2064 = vadd.f32 %v1216, %v2063
      %v2065 = vpop.f32.mrb[0].mxu0
      %v2066 = vadd.f32 %v1220, %v2065
      %v2067 = vpop.f32.mrb[0].mxu0
      %v2068 = vadd.f32 %v1216, %v2067
      %v2069 = vpop.f32.mrb[0].mxu0
      %v2070 = vadd.f32 %v1220, %v2069
      %2071 = vmatprep.mubr.bf16.mxu0 %v1090
      %2072 = vmatmul.mubr.bf16.gmra.mrb[0].mxu0 %v962
      %v2073 = vpop.f32.mrb[0].mxu0
      %v2074 = vadd.f32 %v1216, %v2073
      %v2075 = vpop.f32.mrb[0].mxu0
      %v2076 = vadd.f32 %v1220, %v2075
      %v2077 = vpop.f32.mrb[0].mxu0
      %v2078 = vadd.f32 %v1216, %v2077
      %v2079 = vpop.f32.mrb[0].mxu0
      %v2080 = vadd.f32 %v1220, %v2079
      %2081 = vmatprep.mubr.bf16.mxu0 %v1093
      %2082 = vmatmul.mubr.bf16.gmra.mrb[0].mxu0 %v965
      %v2083 = vpop.f32.mrb[0].mxu0
      %v2084 = vadd.f32 %v1216, %v2083
      %v2085 = vpop.f32.mrb[0].mxu0
      %v2086 = vadd.f32 %v1220, %v2085
      %v2087 = vpop.f32.mrb[0].mxu0
      %v2088 = vadd.f32 %v1216, %v2087
      %v2089 = vpop.f32.mrb[0].mxu0
      %v2090 = vadd.f32 %v1220, %v2089
      %2091 = vmatprep.mubr.bf16.mxu0 %v1096
      %2092 = vmatmul.mubr.bf16.gmra.mrb[0].mxu0 %v968
      %v2093 = vpop.f32.mrb[0].mxu0
      %v2094 = vadd.f32 %v1216, %v2093
      %v2095 = vpop.f32.mrb[0].mxu0
      %v2096 = vadd.f32 %v1220, %v2095
      %v2097 = vpop.f32.mrb[0].mxu0
      %v2098 = vadd.f32 %v1216, %v2097
      %v2099 = vpop.f32.mrb[0].mxu0
      %v2100 = vadd.f32 %v1220, %v2099
      %2101 = vmatprep.mubr.bf16.mxu0 %v1099
      %2102 = vmatmul.mubr.bf16.gmra.mrb[0].mxu0 %v971
      %v2103 = vpop.f32.mrb[0].mxu0
      %v2104 = vadd.f32 %v1216, %v2103
      %v2105 = vpop.f32.mrb[0].mxu0
      %v2106 = vadd.f32 %v1220, %v2105
      %v2107 = vpop.f32.mrb[0].mxu0
      %v2108 = vadd.f32 %v1216, %v2107
      %v2109 = vpop.f32.mrb[0].mxu0
      %v2110 = vadd.f32 %v1220, %v2109
      %2111 = vmatprep.mubr.bf16.mxu0 %v1102
      %2112 = vmatmul.mubr.bf16.gmra.mrb[0].mxu0 %v974
      %v2113 = vpop.f32.mrb[0].mxu0
      %v2114 = vadd.f32 %v1216, %v2113
      %v2115 = vpop.f32.mrb[0].mxu0
      %v2116 = vadd.f32 %v1220, %v2115
      %v2117 = vpop.f32.mrb[0].mxu0
      %v2118 = vadd.f32 %v1216, %v2117
      %v2119 = vpop.f32.mrb[0].mxu0
      %v2120 = vadd.f32 %v1220, %v2119
      %2121 = vmatprep.mubr.bf16.mxu0 %v1105
      %2122 = vmatmul.mubr.bf16.gmra.mrb[0].mxu0 %v977
      %v2123 = vpop.f32.mrb[0].mxu0
      %v2124 = vadd.f32 %v1216, %v2123
      %v2125 = vpop.f32.mrb[0].mxu0
      %v2126 = vadd.f32 %v1220, %v2125
      %v2127 = vpop.f32.mrb[0].mxu0
      %v2128 = vadd.f32 %v1216, %v2127
      %v2129 = vpop.f32.mrb[0].mxu0
      %v2130 = vadd.f32 %v1220, %v2129
      %2131 = vmatprep.mubr.bf16.mxu0 %v1108
      %2132 = vmatmul.mubr.bf16.gmra.mrb[0].mxu0 %v980
      %v2133 = vpop.f32.mrb[0].mxu0
      %v2134 = vadd.f32 %v1216, %v2133
      %v2135 = vpop.f32.mrb[0].mxu0
      %v2136 = vadd.f32 %v1220, %v2135
      %v2137 = vpop.f32.mrb[0].mxu0
      %v2138 = vadd.f32 %v1216, %v2137
      %v2139 = vpop.f32.mrb[0].mxu0
      %v2140 = vadd.f32 %v1220, %v2139
      %2141 = vmatprep.mubr.bf16.mxu0 %v1111
      %2142 = vmatmul.mubr.bf16.gmra.mrb[0].mxu0 %v983
      %v2143 = vpop.f32.mrb[0].mxu0
      %v2144 = vadd.f32 %v1216, %v2143
      %v2145 = vpop.f32.mrb[0].mxu0
      %v2146 = vadd.f32 %v1220, %v2145
      %v2147 = vpop.f32.mrb[0].mxu0
      %v2148 = vadd.f32 %v1216, %v2147
      %v2149 = vpop.f32.mrb[0].mxu0
      %v2150 = vadd.f32 %v1220, %v2149
      %2151 = vmatprep.mubr.bf16.mxu0 %v1114
      %2152 = vmatmul.mubr.bf16.gmra.mrb[0].mxu0 %v986
      %v2153 = vpop.f32.mrb[0].mxu0
      %v2154 = vadd.f32 %v1216, %v2153
      %v2155 = vpop.f32.mrb[0].mxu0
      %v2156 = vadd.f32 %v1220, %v2155
      %v2157 = vpop.f32.mrb[0].mxu0
      %v2158 = vadd.f32 %v1216, %v2157
      %v2159 = vpop.f32.mrb[0].mxu0
      %v2160 = vadd.f32 %v1220, %v2159
      %2161 = vmatprep.mubr.bf16.mxu0 %v1117
      %2162 = vmatmul.mubr.bf16.gmra.mrb[0].mxu0 %v989
      %v2163 = vpop.f32.mrb[0].mxu0
      %v2164 = vadd.f32 %v1216, %v2163
      %v2165 = vpop.f32.mrb[0].mxu0
      %v2166 = vadd.f32 %v1220, %v2165
      %v2167 = vpop.f32.mrb[0].mxu0
      %v2168 = vadd.f32 %v1216, %v2167
      %v2169 = vpop.f32.mrb[0].mxu0
      %v2170 = vadd.f32 %v1220, %v2169
      %2171 = vmatprep.mubr.bf16.mxu0 %v1120
      %2172 = vmatmul.mubr.bf16.gmra.mrb[0].mxu0 %v992
      %v2173 = vpop.f32.mrb[0].mxu0
      %v2174 = vadd.f32 %v1216, %v2173
      %v2175 = vpop.f32.mrb[0].mxu0
      %v2176 = vadd.f32 %v1220, %v2175
      %v2177 = vpop.f32.mrb[0].mxu0
      %v2178 = vadd.f32 %v1216, %v2177
      %v2179 = vpop.f32.mrb[0].mxu0
      %v2180 = vadd.f32 %v1220, %v2179
      %2181 = vmatprep.mubr.bf16.mxu0 %v1123
      %2182 = vmatmul.mubr.bf16.gmra.mrb[0].mxu0 %v995
      %v2183 = vpop.f32.mrb[0].mxu0
      %v2184 = vadd.f32 %v1216, %v2183
      %v2185 = vpop.f32.mrb[0].mxu0
      %v2186 = vadd.f32 %v1220, %v2185
      %v2187 = vpop.f32.mrb[0].mxu0
      %v2188 = vadd.f32 %v1216, %v2187
      %v2189 = vpop.f32.mrb[0].mxu0
      %v2190 = vadd.f32 %v1220, %v2189
      %2191 = vmatprep.mubr.bf16.mxu0 %v1126
      %2192 = vmatmul.mubr.bf16.gmra.mrb[0].mxu0 %v998
      %v2193 = vpop.f32.mrb[0].mxu0
      %v2194 = vadd.f32 %v1216, %v2193
      %v2195 = vpop.f32.mrb[0].mxu0
      %v2196 = vadd.f32 %v1220, %v2195
      %v2197 = vpop.f32.mrb[0].mxu0
      %v2198 = vadd.f32 %v1216, %v2197
      %v2199 = vpop.f32.mrb[0].mxu0
      %v2200 = vadd.f32 %v1220, %v2199
      %2201 = vmatprep.mubr.bf16.mxu0 %v1129
      %2202 = vmatmul.mubr.bf16.gmra.mrb[0].mxu0 %v1001
      %v2203 = vpop.f32.mrb[0].mxu0
      %v2204 = vadd.f32 %v1216, %v2203
      %v2205 = vpop.f32.mrb[0].mxu0
      %v2206 = vadd.f32 %v1220, %v2205
      %v2207 = vpop.f32.mrb[0].mxu0
      %v2208 = vadd.f32 %v1216, %v2207
      %v2209 = vpop.f32.mrb[0].mxu0
      %v2210 = vadd.f32 %v1220, %v2209
      %2211 = vdwg.mxu0
      %2212 = vmatprep.subr.bf16.mxu0 %v1508
      %2213 = vmatpush1.bf16.msra.mxu0 %v1507
      %2214 = vmatprep.subr.bf16.mxu0 %v1512
      %2215 = vmatpush1.bf16.msra.mxu0 %v1511
      %2216 = vmatprep.subr.bf16.mxu0 0
      %2217 = vmatpush1.bf16.msra.mxu0 0
      %2218 = vmatprep.subr.bf16.mxu0 0
      %2219 = vmatpush1.bf16.msra.mxu0 0
      %2220 = vmatprep.subr.bf16.mxu0 0
      %2221 = vmatpush1.bf16.msra.mxu0 0
      %2222 = vmatprep.subr.bf16.mxu0 0
      %2223 = vmatpush1.bf16.msra.mxu0 0
      %2224 = vmatprep.subr.bf16.mxu0 0
      %2225 = vmatpush1.bf16.msra.mxu0 0
      %2226 = vmatprep.subr.bf16.mxu0 0
      %2227 = vmatpush1.bf16.msra.mxu0 0
      %2228 = vmatprep.subr.bf16.mxu0 0
      %2229 = vmatpush1.bf16.msra.mxu0 0
      %2230 = vmatprep.subr.bf16.mxu0 0
      %2231 = vmatpush1.bf16.msra.mxu0 0
      %2232 = vmatprep.subr.bf16.mxu0 0
      %2233 = vmatpush1.bf16.msra.mxu0 0
      %2234 = vmatprep.subr.bf16.mxu0 0
      %2235 = vmatpush1.bf16.msra.mxu0 0
      %2236 = vmatprep.subr.bf16.mxu0 0
      %2237 = vmatpush1.bf16.msra.mxu0 0
      %2238 = vmatprep.subr.bf16.mxu0 0
      %2239 = vmatpush1.bf16.msra.mxu0 0
      %2240 = vmatprep.subr.bf16.mxu0 0
      %2241 = vmatpush1.bf16.msra.mxu0 0
      %2242 = vmatprep.subr.bf16.mxu0 0
      %2243 = vmatpush1.bf16.msra.mxu0 0
      %2244 = vmatprep.mubr.bf16.mxu0 0
      %2245 = vmatmul.mubr.bf16.gmra.mrb[0].mxu0 %v1586
      %v2246 = vpop.f32.mrb[0].mxu0
      %v2247 = vadd.f32 %v2054, %v2246
      %v2248 = vpop.f32.mrb[0].mxu0
      %v2249 = vadd.f32 %v2056, %v2248
      %v2250 = vpop.f32.mrb[0].mxu0
      %v2251 = vadd.f32 %v2058, %v2250
      %v2252 = vpop.f32.mrb[0].mxu0
      %v2253 = vadd.f32 %v2060, %v2252
      %2254 = vmatprep.mubr.bf16.mxu0 0
      %2255 = vmatmul.mubr.bf16.gmra.mrb[0].mxu0 %v1589
      %v2256 = vpop.f32.mrb[0].mxu0
      %v2257 = vadd.f32 %v2064, %v2256
      %v2258 = vpop.f32.mrb[0].mxu0
      %v2259 = vadd.f32 %v2066, %v2258
      %v2260 = vpop.f32.mrb[0].mxu0
      %v2261 = vadd.f32 %v2068, %v2260
      %v2262 = vpop.f32.mrb[0].mxu0
      %v2263 = vadd.f32 %v2070, %v2262
      %2264 = vmatprep.mubr.bf16.mxu0 0
      %2265 = vmatmul.mubr.bf16.gmra.mrb[0].mxu0 %v1592
      %v2266 = vpop.f32.mrb[0].mxu0
      %v2267 = vadd.f32 %v2074, %v2266
      %v2268 = vpop.f32.mrb[0].mxu0
      %v2269 = vadd.f32 %v2076, %v2268
      %v2270 = vpop.f32.mrb[0].mxu0
      %v2271 = vadd.f32 %v2078, %v2270
      %v2272 = vpop.f32.mrb[0].mxu0
      %v2273 = vadd.f32 %v2080, %v2272
      %2274 = vmatprep.mubr.bf16.mxu0 0
      %2275 = vmatmul.mubr.bf16.gmra.mrb[0].mxu0 %v1595
      %v2276 = vpop.f32.mrb[0].mxu0
      %v2277 = vadd.f32 %v2084, %v2276
      %v2278 = vpop.f32.mrb[0].mxu0
      %v2279 = vadd.f32 %v2086, %v2278
      %v2280 = vpop.f32.mrb[0].mxu0
      %v2281 = vadd.f32 %v2088, %v2280
      %v2282 = vpop.f32.mrb[0].mxu0
      %v2283 = vadd.f32 %v2090, %v2282
      %2284 = vmatprep.mubr.bf16.mxu0 0
      %2285 = vmatmul.mubr.bf16.gmra.mrb[0].mxu0 %v1598
      %v2286 = vpop.f32.mrb[0].mxu0
      %v2287 = vadd.f32 %v2094, %v2286
      %v2288 = vpop.f32.mrb[0].mxu0
      %v2289 = vadd.f32 %v2096, %v2288
      %v2290 = vpop.f32.mrb[0].mxu0
      %v2291 = vadd.f32 %v2098, %v2290
      %v2292 = vpop.f32.mrb[0].mxu0
      %v2293 = vadd.f32 %v2100, %v2292
      %2294 = vmatprep.mubr.bf16.mxu0 0
      %2295 = vmatmul.mubr.bf16.gmra.mrb[0].mxu0 %v1601
      %v2296 = vpop.f32.mrb[0].mxu0
      %v2297 = vadd.f32 %v2104, %v2296
      %v2298 = vpop.f32.mrb[0].mxu0
      %v2299 = vadd.f32 %v2106, %v2298
      %v2300 = vpop.f32.mrb[0].mxu0
      %v2301 = vadd.f32 %v2108, %v2300
      %v2302 = vpop.f32.mrb[0].mxu0
      %v2303 = vadd.f32 %v2110, %v2302
      %2304 = vmatprep.mubr.bf16.mxu0 0
      %2305 = vmatmul.mubr.bf16.gmra.mrb[0].mxu0 %v1604
      %v2306 = vpop.f32.mrb[0].mxu0
      %v2307 = vadd.f32 %v2114, %v2306
      %v2308 = vpop.f32.mrb[0].mxu0
      %v2309 = vadd.f32 %v2116, %v2308
      %v2310 = vpop.f32.mrb[0].mxu0
      %v2311 = vadd.f32 %v2118, %v2310
      %v2312 = vpop.f32.mrb[0].mxu0
      %v2313 = vadd.f32 %v2120, %v2312
      %2314 = vmatprep.mubr.bf16.mxu0 0
      %2315 = vmatmul.mubr.bf16.gmra.mrb[0].mxu0 %v1607
      %v2316 = vpop.f32.mrb[0].mxu0
      %v2317 = vadd.f32 %v2124, %v2316
      %v2318 = vpop.f32.mrb[0].mxu0
      %v2319 = vadd.f32 %v2126, %v2318
      %v2320 = vpop.f32.mrb[0].mxu0
      %v2321 = vadd.f32 %v2128, %v2320
      %v2322 = vpop.f32.mrb[0].mxu0
      %v2323 = vadd.f32 %v2130, %v2322
      %2324 = vmatprep.mubr.bf16.mxu0 0
      %2325 = vmatmul.mubr.bf16.gmra.mrb[0].mxu0 %v1610
      %v2326 = vpop.f32.mrb[0].mxu0
      %v2327 = vadd.f32 %v2134, %v2326
      %v2328 = vpop.f32.mrb[0].mxu0
      %v2329 = vadd.f32 %v2136, %v2328
      %v2330 = vpop.f32.mrb[0].mxu0
      %v2331 = vadd.f32 %v2138, %v2330
      %v2332 = vpop.f32.mrb[0].mxu0
      %v2333 = vadd.f32 %v2140, %v2332
      %2334 = vmatprep.mubr.bf16.mxu0 0
      %2335 = vmatmul.mubr.bf16.gmra.mrb[0].mxu0 %v1613
      %v2336 = vpop.f32.mrb[0].mxu0
      %v2337 = vadd.f32 %v2144, %v2336
      %v2338 = vpop.f32.mrb[0].mxu0
      %v2339 = vadd.f32 %v2146, %v2338
      %v2340 = vpop.f32.mrb[0].mxu0
      %v2341 = vadd.f32 %v2148, %v2340
      %v2342 = vpop.f32.mrb[0].mxu0
      %v2343 = vadd.f32 %v2150, %v2342
      %2344 = vmatprep.mubr.bf16.mxu0 0
      %2345 = vmatmul.mubr.bf16.gmra.mrb[0].mxu0 %v1616
      %v2346 = vpop.f32.mrb[0].mxu0
      %v2347 = vadd.f32 %v2154, %v2346
      %v2348 = vpop.f32.mrb[0].mxu0
      %v2349 = vadd.f32 %v2156, %v2348
      %v2350 = vpop.f32.mrb[0].mxu0
      %v2351 = vadd.f32 %v2158, %v2350
      %v2352 = vpop.f32.mrb[0].mxu0
      %v2353 = vadd.f32 %v2160, %v2352
      %2354 = vmatprep.mubr.bf16.mxu0 0
      %2355 = vmatmul.mubr.bf16.gmra.mrb[0].mxu0 %v1619
      %v2356 = vpop.f32.mrb[0].mxu0
      %v2357 = vadd.f32 %v2164, %v2356
      %v2358 = vpop.f32.mrb[0].mxu0
      %v2359 = vadd.f32 %v2166, %v2358
      %v2360 = vpop.f32.mrb[0].mxu0
      %v2361 = vadd.f32 %v2168, %v2360
      %v2362 = vpop.f32.mrb[0].mxu0
      %v2363 = vadd.f32 %v2170, %v2362
      %2364 = vmatprep.mubr.bf16.mxu0 0
      %2365 = vmatmul.mubr.bf16.gmra.mrb[0].mxu0 %v1622
      %v2366 = vpop.f32.mrb[0].mxu0
      %v2367 = vadd.f32 %v2174, %v2366
      %v2368 = vpop.f32.mrb[0].mxu0
      %v2369 = vadd.f32 %v2176, %v2368
      %v2370 = vpop.f32.mrb[0].mxu0
      %v2371 = vadd.f32 %v2178, %v2370
      %v2372 = vpop.f32.mrb[0].mxu0
      %v2373 = vadd.f32 %v2180, %v2372
      %2374 = vmatprep.mubr.bf16.mxu0 0
      %2375 = vmatmul.mubr.bf16.gmra.mrb[0].mxu0 %v1625
      %v2376 = vpop.f32.mrb[0].mxu0
      %v2377 = vadd.f32 %v2184, %v2376
      %v2378 = vpop.f32.mrb[0].mxu0
      %v2379 = vadd.f32 %v2186, %v2378
      %v2380 = vpop.f32.mrb[0].mxu0
      %v2381 = vadd.f32 %v2188, %v2380
      %v2382 = vpop.f32.mrb[0].mxu0
      %v2383 = vadd.f32 %v2190, %v2382
      %2384 = vmatprep.mubr.bf16.mxu0 0
      %2385 = vmatmul.mubr.bf16.gmra.mrb[0].mxu0 %v1628
      %v2386 = vpop.f32.mrb[0].mxu0
      %v2387 = vadd.f32 %v2194, %v2386
      %v2388 = vpop.f32.mrb[0].mxu0
      %v2389 = vadd.f32 %v2196, %v2388
      %v2390 = vpop.f32.mrb[0].mxu0
      %v2391 = vadd.f32 %v2198, %v2390
      %v2392 = vpop.f32.mrb[0].mxu0
      %v2393 = vadd.f32 %v2200, %v2392
      %2394 = vmatprep.mubr.bf16.mxu0 0
      %2395 = vmatmul.mubr.bf16.gmra.mrb[0].mxu0 %v1631
      %v2396 = vpop.f32.mrb[0].mxu0
      %v2397 = vadd.f32 %v2204, %v2396
      %v2398 = vpop.f32.mrb[0].mxu0
      %v2399 = vadd.f32 %v2206, %v2398
      %v2400 = vpop.f32.mrb[0].mxu0
      %v2401 = vadd.f32 %v2208, %v2400
      %v2402 = vpop.f32.mrb[0].mxu0
      %v2403 = vadd.f32 %v2210, %v2402
      %2404 = vdwg.mxu0
      %v2405 = vmax.f32 %v1861, 0.0
      %v2406 = vmax.f32 %v1863, 0.0
      %v2407 = vmax.f32 %v2247, 0.0
      %v2408 = vmax.f32 %v2249, 0.0
      %v2409 = vmax.f32 %v1865, 0.0
      %v2410 = vmax.f32 %v1867, 0.0
      %v2411 = vmax.f32 %v2251, 0.0
      %v2412 = vmax.f32 %v2253, 0.0
      %v2413 = vmax.f32 %v1871, 0.0
      %v2414 = vmax.f32 %v1873, 0.0
      %v2415 = vmax.f32 %v2257, 0.0
      %v2416 = vmax.f32 %v2259, 0.0
      %v2417 = vmax.f32 %v1875, 0.0
      %v2418 = vmax.f32 %v1877, 0.0
      %v2419 = vmax.f32 %v2261, 0.0
      %v2420 = vmax.f32 %v2263, 0.0
      %v2421 = vmax.f32 %v1881, 0.0
      %v2422 = vmax.f32 %v1883, 0.0
      %v2423 = vmax.f32 %v2267, 0.0
      %v2424 = vmax.f32 %v2269, 0.0
      %v2425 = vmax.f32 %v1885, 0.0
      %v2426 = vmax.f32 %v1887, 0.0
      %v2427 = vmax.f32 %v2271, 0.0
      %v2428 = vmax.f32 %v2273, 0.0
      %v2429 = vmax.f32 %v1891, 0.0
      %v2430 = vmax.f32 %v1893, 0.0
      %v2431 = vmax.f32 %v2277, 0.0
      %v2432 = vmax.f32 %v2279, 0.0
      %v2433 = vmax.f32 %v1895, 0.0
      %v2434 = vmax.f32 %v1897, 0.0
      %v2435 = vmax.f32 %v2281, 0.0
      %v2436 = vmax.f32 %v2283, 0.0
      %v2437 = vmax.f32 %v1901, 0.0
      %v2438 = vmax.f32 %v1903, 0.0
      %v2439 = vmax.f32 %v2287, 0.0
      %v2440 = vmax.f32 %v2289, 0.0
      %v2441 = vmax.f32 %v1905, 0.0
      %v2442 = vmax.f32 %v1907, 0.0
      %v2443 = vmax.f32 %v2291, 0.0
      %v2444 = vmax.f32 %v2293, 0.0
      %v2445 = vmax.f32 %v1911, 0.0
      %v2446 = vmax.f32 %v1913, 0.0
      %v2447 = vmax.f32 %v2297, 0.0
      %v2448 = vmax.f32 %v2299, 0.0
      %v2449 = vmax.f32 %v1915, 0.0
      %v2450 = vmax.f32 %v1917, 0.0
      %v2451 = vmax.f32 %v2301, 0.0
      %v2452 = vmax.f32 %v2303, 0.0
      %v2453 = vmax.f32 %v1921, 0.0
      %v2454 = vmax.f32 %v1923, 0.0
      %v2455 = vmax.f32 %v2307, 0.0
      %v2456 = vmax.f32 %v2309, 0.0
      %v2457 = vmax.f32 %v1925, 0.0
      %v2458 = vmax.f32 %v1927, 0.0
      %v2459 = vmax.f32 %v2311, 0.0
      %v2460 = vmax.f32 %v2313, 0.0
      %v2461 = vmax.f32 %v1931, 0.0
      %v2462 = vmax.f32 %v1933, 0.0
      %v2463 = vmax.f32 %v2317, 0.0
      %v2464 = vmax.f32 %v2319, 0.0
      %v2465 = vmax.f32 %v1935, 0.0
      %v2466 = vmax.f32 %v1937, 0.0
      %v2467 = vmax.f32 %v2321, 0.0
      %v2468 = vmax.f32 %v2323, 0.0
      %v2469 = vmax.f32 %v1941, 0.0
      %v2470 = vmax.f32 %v1943, 0.0
      %v2471 = vmax.f32 %v2327, 0.0
      %v2472 = vmax.f32 %v2329, 0.0
      %v2473 = vmax.f32 %v1945, 0.0
      %v2474 = vmax.f32 %v1947, 0.0
      %v2475 = vmax.f32 %v2331, 0.0
      %v2476 = vmax.f32 %v2333, 0.0
      %v2477 = vmax.f32 %v1951, 0.0
      %v2478 = vmax.f32 %v1953, 0.0
      %v2479 = vmax.f32 %v2337, 0.0
      %v2480 = vmax.f32 %v2339, 0.0
      %v2481 = vmax.f32 %v1955, 0.0
      %v2482 = vmax.f32 %v1957, 0.0
      %v2483 = vmax.f32 %v2341, 0.0
      %v2484 = vmax.f32 %v2343, 0.0
      %v2485 = vmax.f32 %v1961, 0.0
      %v2486 = vmax.f32 %v1963, 0.0
      %v2487 = vmax.f32 %v2347, 0.0
      %v2488 = vmax.f32 %v2349, 0.0
      %v2489 = vmax.f32 %v1965, 0.0
      %v2490 = vmax.f32 %v1967, 0.0
      %v2491 = vmax.f32 %v2351, 0.0
      %v2492 = vmax.f32 %v2353, 0.0
      %v2493 = vmax.f32 %v1971, 0.0
      %v2494 = vmax.f32 %v1973, 0.0
      %v2495 = vmax.f32 %v2357, 0.0
      %v2496 = vmax.f32 %v2359, 0.0
      %v2497 = vmax.f32 %v1975, 0.0
      %v2498 = vmax.f32 %v1977, 0.0
      %v2499 = vmax.f32 %v2361, 0.0
      %v2500 = vmax.f32 %v2363, 0.0
      %v2501 = vmax.f32 %v1981, 0.0
      %v2502 = vmax.f32 %v1983, 0.0
      %v2503 = vmax.f32 %v2367, 0.0
      %v2504 = vmax.f32 %v2369, 0.0
      %v2505 = vmax.f32 %v1985, 0.0
      %v2506 = vmax.f32 %v1987, 0.0
      %v2507 = vmax.f32 %v2371, 0.0
      %v2508 = vmax.f32 %v2373, 0.0
      %v2509 = vmax.f32 %v1991, 0.0
      %v2510 = vmax.f32 %v1993, 0.0
      %v2511 = vmax.f32 %v2377, 0.0
      %v2512 = vmax.f32 %v2379, 0.0
      %v2513 = vmax.f32 %v1995, 0.0
      %v2514 = vmax.f32 %v1997, 0.0
      %v2515 = vmax.f32 %v2381, 0.0
      %v2516 = vmax.f32 %v2383, 0.0
      %v2517 = vmax.f32 %v2001, 0.0
      %v2518 = vmax.f32 %v2003, 0.0
      %v2519 = vmax.f32 %v2387, 0.0
      %v2520 = vmax.f32 %v2389, 0.0
      %v2521 = vmax.f32 %v2005, 0.0
      %v2522 = vmax.f32 %v2007, 0.0
      %v2523 = vmax.f32 %v2391, 0.0
      %v2524 = vmax.f32 %v2393, 0.0
      %v2525 = vmax.f32 %v2011, 0.0
      %v2526 = vmax.f32 %v2013, 0.0
      %v2527 = vmax.f32 %v2397, 0.0
      %v2528 = vmax.f32 %v2399, 0.0
      %v2529 = vmax.f32 %v2015, 0.0
      %v2530 = vmax.f32 %v2017, 0.0
      %v2531 = vmax.f32 %v2401, 0.0
      %v2532 = vmax.f32 %v2403, 0.0
      %v2533 = vpack.c.bf16 %v2409, %v2405
      %v2534 = vpack.c.bf16 %v2410, %v2406
      %v2535 = vpack.c.bf16 %v2411, %v2407
      %v2536 = vpack.c.bf16 %v2412, %v2408
      %v2537 = vpack.c.bf16 %v2417, %v2413
      %v2538 = vpack.c.bf16 %v2418, %v2414
      %v2539 = vpack.c.bf16 %v2419, %v2415
      %v2540 = vpack.c.bf16 %v2420, %v2416
      %v2541 = vpack.c.bf16 %v2425, %v2421
      %v2542 = vpack.c.bf16 %v2426, %v2422
      %v2543 = vpack.c.bf16 %v2427, %v2423
      %v2544 = vpack.c.bf16 %v2428, %v2424
      %v2545 = vpack.c.bf16 %v2433, %v2429
      %v2546 = vpack.c.bf16 %v2434, %v2430
      %v2547 = vpack.c.bf16 %v2435, %v2431
      %v2548 = vpack.c.bf16 %v2436, %v2432
      %v2549 = vpack.c.bf16 %v2441, %v2437
      %v2550 = vpack.c.bf16 %v2442, %v2438
      %v2551 = vpack.c.bf16 %v2443, %v2439
      %v2552 = vpack.c.bf16 %v2444, %v2440
      %v2553 = vpack.c.bf16 %v2449, %v2445
      %v2554 = vpack.c.bf16 %v2450, %v2446
      %v2555 = vpack.c.bf16 %v2451, %v2447
      %v2556 = vpack.c.bf16 %v2452, %v2448
      %v2557 = vpack.c.bf16 %v2457, %v2453
      %v2558 = vpack.c.bf16 %v2458, %v2454
      %v2559 = vpack.c.bf16 %v2459, %v2455
      %v2560 = vpack.c.bf16 %v2460, %v2456
      %v2561 = vpack.c.bf16 %v2465, %v2461
      %v2562 = vpack.c.bf16 %v2466, %v2462
      %v2563 = vpack.c.bf16 %v2467, %v2463
      %v2564 = vpack.c.bf16 %v2468, %v2464
      %v2565 = vpack.c.bf16 %v2473, %v2469
      %v2566 = vpack.c.bf16 %v2474, %v2470
      %v2567 = vpack.c.bf16 %v2475, %v2471
      %v2568 = vpack.c.bf16 %v2476, %v2472
      %v2569 = vpack.c.bf16 %v2481, %v2477
      %v2570 = vpack.c.bf16 %v2482, %v2478
      %v2571 = vpack.c.bf16 %v2483, %v2479
      %v2572 = vpack.c.bf16 %v2484, %v2480
      %v2573 = vpack.c.bf16 %v2489, %v2485
      %v2574 = vpack.c.bf16 %v2490, %v2486
      %v2575 = vpack.c.bf16 %v2491, %v2487
      %v2576 = vpack.c.bf16 %v2492, %v2488
      %v2577 = vpack.c.bf16 %v2497, %v2493
      %v2578 = vpack.c.bf16 %v2498, %v2494
      %v2579 = vpack.c.bf16 %v2499, %v2495
      %v2580 = vpack.c.bf16 %v2500, %v2496
      %v2581 = vpack.c.bf16 %v2505, %v2501
      %v2582 = vpack.c.bf16 %v2506, %v2502
      %v2583 = vpack.c.bf16 %v2507, %v2503
      %v2584 = vpack.c.bf16 %v2508, %v2504
      %v2585 = vpack.c.bf16 %v2513, %v2509
      %v2586 = vpack.c.bf16 %v2514, %v2510
      %v2587 = vpack.c.bf16 %v2515, %v2511
      %v2588 = vpack.c.bf16 %v2516, %v2512
      %v2589 = vpack.c.bf16 %v2521, %v2517
      %v2590 = vpack.c.bf16 %v2522, %v2518
      %v2591 = vpack.c.bf16 %v2523, %v2519
      %v2592 = vpack.c.bf16 %v2524, %v2520
      %v2593 = vpack.c.bf16 %v2529, %v2525
      %v2594 = vpack.c.bf16 %v2530, %v2526
      %v2595 = vpack.c.bf16 %v2531, %v2527
      %v2596 = vpack.c.bf16 %v2532, %v2528
      %v2597 = vld [vmem:[%s3] sm:$0xf]
      %v2598 = vld [vmem:[%s3 + $0x4] sm:$0xf]
      %v2599 = vld [vmem:[%s3 + $0x8] sm:$0xf]
      %v2600 = vld [vmem:[%s3 + $0xc] sm:$0xf]
      %v2601 = vld [vmem:[%s3 + $0x10] sm:$0xf]
      %v2602 = vld [vmem:[%s3 + $0x14] sm:$0xf]
      %v2603 = vld [vmem:[%s3 + $0x18] sm:$0xf]
      %v2604 = vld [vmem:[%s3 + $0x1c] sm:$0xf]
      %v2605 = vld [vmem:[%s3 + $0x20] sm:$0xf]
      %v2606 = vld [vmem:[%s3 + $0x24] sm:$0xf]
      %v2607 = vld [vmem:[%s3 + $0x28] sm:$0xf]
      %v2608 = vld [vmem:[%s3 + $0x2c] sm:$0xf]
      %v2609 = vld [vmem:[%s3 + $0x30] sm:$0xf]
      %v2610 = vld [vmem:[%s3 + $0x34] sm:$0xf]
      %v2611 = vld [vmem:[%s3 + $0x38] sm:$0xf]
      %v2612 = vld [vmem:[%s3 + $0x3c] sm:$0xf]
      %v2613 = vld [vmem:[%s3 + $0x40] sm:$0xf]
      %v2614 = vld [vmem:[%s3 + $0x44] sm:$0xf]
      %v2615 = vld [vmem:[%s3 + $0x48] sm:$0xf]
      %v2616 = vld [vmem:[%s3 + $0x4c] sm:$0xf]
      %v2617 = vld [vmem:[%s3 + $0x50] sm:$0xf]
      %v2618 = vld [vmem:[%s3 + $0x54] sm:$0xf]
      %v2619 = vld [vmem:[%s3 + $0x58] sm:$0xf]
      %v2620 = vld [vmem:[%s3 + $0x5c] sm:$0xf]
      %v2621 = vld [vmem:[%s3 + $0x60] sm:$0xf]
      %v2622 = vld [vmem:[%s3 + $0x64] sm:$0xf]
      %v2623 = vld [vmem:[%s3 + $0x68] sm:$0xf]
      %v2624 = vld [vmem:[%s3 + $0x6c] sm:$0xf]
      %v2625 = vld [vmem:[%s3 + $0x70] sm:$0xf]
      %v2626 = vld [vmem:[%s3 + $0x74] sm:$0xf]
      %v2627 = vld [vmem:[%s3 + $0x78] sm:$0xf]
      %v2628 = vld [vmem:[%s3 + $0x7c] sm:$0xf]
      %v2629 = vld [vmem:[%s3 + $0x80] sm:$0xf]
      %v2630 = vld [vmem:[%s3 + $0x84] sm:$0xf]
      %v2631 = vld [vmem:[%s3 + $0x88] sm:$0xf]
      %v2632 = vld [vmem:[%s3 + $0x8c] sm:$0xf]
      %v2633 = vld [vmem:[%s3 + $0x90] sm:$0xf]
      %v2634 = vld [vmem:[%s3 + $0x94] sm:$0xf]
      %v2635 = vld [vmem:[%s3 + $0x98] sm:$0xf]
      %v2636 = vld [vmem:[%s3 + $0x9c] sm:$0xf]
      %v2637 = vld [vmem:[%s3 + $0xa0] sm:$0xf]
      %v2638 = vld [vmem:[%s3 + $0xa4] sm:$0xf]
      %v2639 = vld [vmem:[%s3 + $0xa8] sm:$0xf]
      %v2640 = vld [vmem:[%s3 + $0xac] sm:$0xf]
      %v2641 = vld [vmem:[%s3 + $0xb0] sm:$0xf]
      %v2642 = vld [vmem:[%s3 + $0xb4] sm:$0xf]
      %v2643 = vld [vmem:[%s3 + $0xb8] sm:$0xf]
      %v2644 = vld [vmem:[%s3 + $0xbc] sm:$0xf]
      %v2645 = vld [vmem:[%s3 + $0xc0] sm:$0xf]
      %v2646 = vld [vmem:[%s3 + $0xc4] sm:$0xf]
      %v2647 = vld [vmem:[%s3 + $0xc8] sm:$0xf]
      %v2648 = vld [vmem:[%s3 + $0xcc] sm:$0xf]
      %v2649 = vld [vmem:[%s3 + $0xd0] sm:$0xf]
      %v2650 = vld [vmem:[%s3 + $0xd4] sm:$0xf]
      %v2651 = vld [vmem:[%s3 + $0xd8] sm:$0xf]
      %v2652 = vld [vmem:[%s3 + $0xdc] sm:$0xf]
      %v2653 = vld [vmem:[%s3 + $0xe0] sm:$0xf]
      %v2654 = vld [vmem:[%s3 + $0xe4] sm:$0xf]
      %v2655 = vld [vmem:[%s3 + $0xe8] sm:$0xf]
      %v2656 = vld [vmem:[%s3 + $0xec] sm:$0xf]
      %v2657 = vld [vmem:[%s3 + $0xf0] sm:$0xf]
      %v2658 = vld [vmem:[%s3 + $0xf4] sm:$0xf]
      %v2659 = vld [vmem:[%s3 + $0xf8] sm:$0xf]
      %v2660 = vld [vmem:[%s3 + $0xfc] sm:$0xf]
      %v2661 = vld [vmem:[%s4] sm:$0x1]
      %v2663 = vlaneseq
      %v2664 = vshrl.u32 %v2663, 7
      %v2665 = vsub.s32 0, %v2664
      %v2666 = vrot.slane %v2661, %v2665
      %v2732 = vunpack.c.l.b16 %v2597
      %v2733 = vunpack.c.l.b16 %v2598
      %v2734 = vunpack.c.l.b16 %v2599
      %v2735 = vunpack.c.l.b16 %v2600
      %v2736 = vunpack.c.l.b16 %v2601
      %v2737 = vunpack.c.l.b16 %v2602
      %v2738 = vunpack.c.l.b16 %v2603
      %v2739 = vunpack.c.l.b16 %v2604
      %v2740 = vunpack.c.l.b16 %v2605
      %v2741 = vunpack.c.l.b16 %v2606
      %v2742 = vunpack.c.l.b16 %v2607
      %v2743 = vunpack.c.l.b16 %v2608
      %v2744 = vunpack.c.l.b16 %v2609
      %v2745 = vunpack.c.l.b16 %v2610
      %v2746 = vunpack.c.l.b16 %v2611
      %v2747 = vunpack.c.l.b16 %v2612
      %v2748 = vunpack.c.l.b16 %v2613
      %v2749 = vunpack.c.l.b16 %v2614
      %v2750 = vunpack.c.l.b16 %v2615
      %v2751 = vunpack.c.l.b16 %v2616
      %v2752 = vunpack.c.l.b16 %v2617
      %v2753 = vunpack.c.l.b16 %v2618
      %v2754 = vunpack.c.l.b16 %v2619
      %v2755 = vunpack.c.l.b16 %v2620
      %v2756 = vunpack.c.l.b16 %v2621
      %v2757 = vunpack.c.l.b16 %v2622
      %v2758 = vunpack.c.l.b16 %v2623
      %v2759 = vunpack.c.l.b16 %v2624
      %v2760 = vunpack.c.l.b16 %v2625
      %v2761 = vunpack.c.l.b16 %v2626
      %v2762 = vunpack.c.l.b16 %v2627
      %v2763 = vunpack.c.l.b16 %v2628
      %v2764 = vunpack.c.l.b16 %v2629
      %v2765 = vunpack.c.l.b16 %v2630
      %v2766 = vunpack.c.l.b16 %v2631
      %v2767 = vunpack.c.l.b16 %v2632
      %v2768 = vunpack.c.l.b16 %v2633
      %v2769 = vunpack.c.l.b16 %v2634
      %v2770 = vunpack.c.l.b16 %v2635
      %v2771 = vunpack.c.l.b16 %v2636
      %v2772 = vunpack.c.l.b16 %v2637
      %v2773 = vunpack.c.l.b16 %v2638
      %v2774 = vunpack.c.l.b16 %v2639
      %v2775 = vunpack.c.l.b16 %v2640
      %v2776 = vunpack.c.l.b16 %v2641
      %v2777 = vunpack.c.l.b16 %v2642
      %v2778 = vunpack.c.l.b16 %v2643
      %v2779 = vunpack.c.l.b16 %v2644
      %v2780 = vunpack.c.l.b16 %v2645
      %v2781 = vunpack.c.l.b16 %v2646
      %v2782 = vunpack.c.l.b16 %v2647
      %v2783 = vunpack.c.l.b16 %v2648
      %v2784 = vunpack.c.l.b16 %v2649
      %v2785 = vunpack.c.l.b16 %v2650
      %v2786 = vunpack.c.l.b16 %v2651
      %v2787 = vunpack.c.l.b16 %v2652
      %v2788 = vunpack.c.l.b16 %v2653
      %v2789 = vunpack.c.l.b16 %v2654
      %v2790 = vunpack.c.l.b16 %v2655
      %v2791 = vunpack.c.l.b16 %v2656
      %v2792 = vunpack.c.l.b16 %v2657
      %v2793 = vunpack.c.l.b16 %v2658
      %v2794 = vunpack.c.l.b16 %v2659
      %v2795 = vunpack.c.l.b16 %v2660
      %v2796 = vpack.c.b16 %v2733, %v2732
      %v2797 = vpack.c.b16 %v2735, %v2734
      %v2798 = vpack.c.b16 %v2737, %v2736
      %v2799 = vpack.c.b16 %v2739, %v2738
      %v2800 = vpack.c.b16 %v2741, %v2740
      %v2801 = vpack.c.b16 %v2743, %v2742
      %v2802 = vpack.c.b16 %v2745, %v2744
      %v2803 = vpack.c.b16 %v2747, %v2746
      %v2804 = vpack.c.b16 %v2749, %v2748
      %v2805 = vpack.c.b16 %v2751, %v2750
      %v2806 = vpack.c.b16 %v2753, %v2752
      %v2807 = vpack.c.b16 %v2755, %v2754
      %v2808 = vpack.c.b16 %v2757, %v2756
      %v2809 = vpack.c.b16 %v2759, %v2758
      %v2810 = vpack.c.b16 %v2761, %v2760
      %v2811 = vpack.c.b16 %v2763, %v2762
      %v2812 = vpack.c.b16 %v2765, %v2764
      %v2813 = vpack.c.b16 %v2767, %v2766
      %v2814 = vpack.c.b16 %v2769, %v2768
      %v2815 = vpack.c.b16 %v2771, %v2770
      %v2816 = vpack.c.b16 %v2773, %v2772
      %v2817 = vpack.c.b16 %v2775, %v2774
      %v2818 = vpack.c.b16 %v2777, %v2776
      %v2819 = vpack.c.b16 %v2779, %v2778
      %v2820 = vpack.c.b16 %v2781, %v2780
      %v2821 = vpack.c.b16 %v2783, %v2782
      %v2822 = vpack.c.b16 %v2785, %v2784
      %v2823 = vpack.c.b16 %v2787, %v2786
      %v2824 = vpack.c.b16 %v2789, %v2788
      %v2825 = vpack.c.b16 %v2791, %v2790
      %v2826 = vpack.c.b16 %v2793, %v2792
      %v2827 = vpack.c.b16 %v2795, %v2794
      %2860 = vmatprep.subr.bf16.mxu0 0
      %2861 = vmatpush1.bf16.msra.mxu0 %v2796
      %2862 = vmatprep.subr.bf16.mxu0 0
      %2863 = vmatpush1.bf16.msra.mxu0 %v2797
      %2864 = vmatprep.subr.bf16.mxu0 0
      %2865 = vmatpush1.bf16.msra.mxu0 %v2798
      %2866 = vmatprep.subr.bf16.mxu0 0
      %2867 = vmatpush1.bf16.msra.mxu0 %v2799
      %2868 = vmatprep.subr.bf16.mxu0 0
      %2869 = vmatpush1.bf16.msra.mxu0 %v2800
      %2870 = vmatprep.subr.bf16.mxu0 0
      %2871 = vmatpush1.bf16.msra.mxu0 %v2801
      %2872 = vmatprep.subr.bf16.mxu0 0
      %2873 = vmatpush1.bf16.msra.mxu0 %v2802
      %2874 = vmatprep.subr.bf16.mxu0 0
      %2875 = vmatpush1.bf16.msra.mxu0 %v2803
      %2876 = vmatprep.subr.bf16.mxu0 0
      %2877 = vmatpush1.bf16.msra.mxu0 %v2804
      %2878 = vmatprep.subr.bf16.mxu0 0
      %2879 = vmatpush1.bf16.msra.mxu0 %v2805
      %2880 = vmatprep.subr.bf16.mxu0 0
      %2881 = vmatpush1.bf16.msra.mxu0 %v2806
      %2882 = vmatprep.subr.bf16.mxu0 0
      %2883 = vmatpush1.bf16.msra.mxu0 %v2807
      %2884 = vmatprep.subr.bf16.mxu0 0
      %2885 = vmatpush1.bf16.msra.mxu0 %v2808
      %2886 = vmatprep.subr.bf16.mxu0 0
      %2887 = vmatpush1.bf16.msra.mxu0 %v2809
      %2888 = vmatprep.subr.bf16.mxu0 0
      %2889 = vmatpush1.bf16.msra.mxu0 %v2810
      %2890 = vmatprep.subr.bf16.mxu0 0
      %2891 = vmatpush1.bf16.msra.mxu0 %v2811
      %2892 = vmatprep.mubr.bf16.mxu0 %v2534
      %2893 = vmatmul.mubr.bf16.gmra.mrb[0].mxu0 %v2533
      %v2894 = vpop.f32.mrb[0].mxu0
      %v2895 = vadd.f32 %v2666, %v2894
      %v2896 = vpop.f32.mrb[0].mxu0
      %v2897 = vpop.f32.mrb[0].mxu0
      %v2898 = vadd.f32 %v2666, %v2897
      %v2899 = vpop.f32.mrb[0].mxu0
      %2900 = vmatprep.mubr.bf16.mxu0 %v2538
      %2901 = vmatmul.mubr.bf16.gmra.mrb[0].mxu0 %v2537
      %v2902 = vpop.f32.mrb[0].mxu0
      %v2903 = vadd.f32 %v2666, %v2902
      %v2904 = vpop.f32.mrb[0].mxu0
      %v2905 = vpop.f32.mrb[0].mxu0
      %v2906 = vadd.f32 %v2666, %v2905
      %v2907 = vpop.f32.mrb[0].mxu0
      %2908 = vmatprep.mubr.bf16.mxu0 %v2542
      %2909 = vmatmul.mubr.bf16.gmra.mrb[0].mxu0 %v2541
      %v2910 = vpop.f32.mrb[0].mxu0
      %v2911 = vadd.f32 %v2666, %v2910
      %v2912 = vpop.f32.mrb[0].mxu0
      %v2913 = vpop.f32.mrb[0].mxu0
      %v2914 = vadd.f32 %v2666, %v2913
      %v2915 = vpop.f32.mrb[0].mxu0
      %2916 = vmatprep.mubr.bf16.mxu0 %v2546
      %2917 = vmatmul.mubr.bf16.gmra.mrb[0].mxu0 %v2545
      %v2918 = vpop.f32.mrb[0].mxu0
      %v2919 = vadd.f32 %v2666, %v2918
      %v2920 = vpop.f32.mrb[0].mxu0
      %v2921 = vpop.f32.mrb[0].mxu0
      %v2922 = vadd.f32 %v2666, %v2921
      %v2923 = vpop.f32.mrb[0].mxu0
      %2924 = vmatprep.mubr.bf16.mxu0 %v2550
      %2925 = vmatmul.mubr.bf16.gmra.mrb[0].mxu0 %v2549
      %v2926 = vpop.f32.mrb[0].mxu0
      %v2927 = vadd.f32 %v2666, %v2926
      %v2928 = vpop.f32.mrb[0].mxu0
      %v2929 = vpop.f32.mrb[0].mxu0
      %v2930 = vadd.f32 %v2666, %v2929
      %v2931 = vpop.f32.mrb[0].mxu0
      %2932 = vmatprep.mubr.bf16.mxu0 %v2554
      %2933 = vmatmul.mubr.bf16.gmra.mrb[0].mxu0 %v2553
      %v2934 = vpop.f32.mrb[0].mxu0
      %v2935 = vadd.f32 %v2666, %v2934
      %v2936 = vpop.f32.mrb[0].mxu0
      %v2937 = vpop.f32.mrb[0].mxu0
      %v2938 = vadd.f32 %v2666, %v2937
      %v2939 = vpop.f32.mrb[0].mxu0
      %2940 = vmatprep.mubr.bf16.mxu0 %v2558
      %2941 = vmatmul.mubr.bf16.gmra.mrb[0].mxu0 %v2557
      %v2942 = vpop.f32.mrb[0].mxu0
      %v2943 = vadd.f32 %v2666, %v2942
      %v2944 = vpop.f32.mrb[0].mxu0
      %v2945 = vpop.f32.mrb[0].mxu0
      %v2946 = vadd.f32 %v2666, %v2945
      %v2947 = vpop.f32.mrb[0].mxu0
      %2948 = vmatprep.mubr.bf16.mxu0 %v2562
      %2949 = vmatmul.mubr.bf16.gmra.mrb[0].mxu0 %v2561
      %v2950 = vpop.f32.mrb[0].mxu0
      %v2951 = vadd.f32 %v2666, %v2950
      %v2952 = vpop.f32.mrb[0].mxu0
      %v2953 = vpop.f32.mrb[0].mxu0
      %v2954 = vadd.f32 %v2666, %v2953
      %v2955 = vpop.f32.mrb[0].mxu0
      %2956 = vmatprep.mubr.bf16.mxu0 %v2566
      %2957 = vmatmul.mubr.bf16.gmra.mrb[0].mxu0 %v2565
      %v2958 = vpop.f32.mrb[0].mxu0
      %v2959 = vadd.f32 %v2666, %v2958
      %v2960 = vpop.f32.mrb[0].mxu0
      %v2961 = vpop.f32.mrb[0].mxu0
      %v2962 = vadd.f32 %v2666, %v2961
      %v2963 = vpop.f32.mrb[0].mxu0
      %2964 = vmatprep.mubr.bf16.mxu0 %v2570
      %2965 = vmatmul.mubr.bf16.gmra.mrb[0].mxu0 %v2569
      %v2966 = vpop.f32.mrb[0].mxu0
      %v2967 = vadd.f32 %v2666, %v2966
      %v2968 = vpop.f32.mrb[0].mxu0
      %v2969 = vpop.f32.mrb[0].mxu0
      %v2970 = vadd.f32 %v2666, %v2969
      %v2971 = vpop.f32.mrb[0].mxu0
      %2972 = vmatprep.mubr.bf16.mxu0 %v2574
      %2973 = vmatmul.mubr.bf16.gmra.mrb[0].mxu0 %v2573
      %v2974 = vpop.f32.mrb[0].mxu0
      %v2975 = vadd.f32 %v2666, %v2974
      %v2976 = vpop.f32.mrb[0].mxu0
      %v2977 = vpop.f32.mrb[0].mxu0
      %v2978 = vadd.f32 %v2666, %v2977
      %v2979 = vpop.f32.mrb[0].mxu0
      %2980 = vmatprep.mubr.bf16.mxu0 %v2578
      %2981 = vmatmul.mubr.bf16.gmra.mrb[0].mxu0 %v2577
      %v2982 = vpop.f32.mrb[0].mxu0
      %v2983 = vadd.f32 %v2666, %v2982
      %v2984 = vpop.f32.mrb[0].mxu0
      %v2985 = vpop.f32.mrb[0].mxu0
      %v2986 = vadd.f32 %v2666, %v2985
      %v2987 = vpop.f32.mrb[0].mxu0
      %2988 = vmatprep.mubr.bf16.mxu0 %v2582
      %2989 = vmatmul.mubr.bf16.gmra.mrb[0].mxu0 %v2581
      %v2990 = vpop.f32.mrb[0].mxu0
      %v2991 = vadd.f32 %v2666, %v2990
      %v2992 = vpop.f32.mrb[0].mxu0
      %v2993 = vpop.f32.mrb[0].mxu0
      %v2994 = vadd.f32 %v2666, %v2993
      %v2995 = vpop.f32.mrb[0].mxu0
      %2996 = vmatprep.mubr.bf16.mxu0 %v2586
      %2997 = vmatmul.mubr.bf16.gmra.mrb[0].mxu0 %v2585
      %v2998 = vpop.f32.mrb[0].mxu0
      %v2999 = vadd.f32 %v2666, %v2998
      %v3000 = vpop.f32.mrb[0].mxu0
      %v3001 = vpop.f32.mrb[0].mxu0
      %v3002 = vadd.f32 %v2666, %v3001
      %v3003 = vpop.f32.mrb[0].mxu0
      %3004 = vmatprep.mubr.bf16.mxu0 %v2590
      %3005 = vmatmul.mubr.bf16.gmra.mrb[0].mxu0 %v2589
      %v3006 = vpop.f32.mrb[0].mxu0
      %v3007 = vadd.f32 %v2666, %v3006
      %v3008 = vpop.f32.mrb[0].mxu0
      %v3009 = vpop.f32.mrb[0].mxu0
      %v3010 = vadd.f32 %v2666, %v3009
      %v3011 = vpop.f32.mrb[0].mxu0
      %3012 = vmatprep.mubr.bf16.mxu0 %v2594
      %3013 = vmatmul.mubr.bf16.gmra.mrb[0].mxu0 %v2593
      %v3014 = vpop.f32.mrb[0].mxu0
      %v3015 = vadd.f32 %v2666, %v3014
      %v3016 = vpop.f32.mrb[0].mxu0
      %v3017 = vpop.f32.mrb[0].mxu0
      %v3018 = vadd.f32 %v2666, %v3017
      %v3019 = vpop.f32.mrb[0].mxu0
      %3020 = vdwg.mxu0
      %3021 = vmatprep.subr.bf16.mxu0 0
      %3022 = vmatpush1.bf16.msra.mxu0 %v2812
      %3023 = vmatprep.subr.bf16.mxu0 0
      %3024 = vmatpush1.bf16.msra.mxu0 %v2813
      %3025 = vmatprep.subr.bf16.mxu0 0
      %3026 = vmatpush1.bf16.msra.mxu0 %v2814
      %3027 = vmatprep.subr.bf16.mxu0 0
      %3028 = vmatpush1.bf16.msra.mxu0 %v2815
      %3029 = vmatprep.subr.bf16.mxu0 0
      %3030 = vmatpush1.bf16.msra.mxu0 %v2816
      %3031 = vmatprep.subr.bf16.mxu0 0
      %3032 = vmatpush1.bf16.msra.mxu0 %v2817
      %3033 = vmatprep.subr.bf16.mxu0 0
      %3034 = vmatpush1.bf16.msra.mxu0 %v2818
      %3035 = vmatprep.subr.bf16.mxu0 0
      %3036 = vmatpush1.bf16.msra.mxu0 %v2819
      %3037 = vmatprep.subr.bf16.mxu0 0
      %3038 = vmatpush1.bf16.msra.mxu0 %v2820
      %3039 = vmatprep.subr.bf16.mxu0 0
      %3040 = vmatpush1.bf16.msra.mxu0 %v2821
      %3041 = vmatprep.subr.bf16.mxu0 0
      %3042 = vmatpush1.bf16.msra.mxu0 %v2822
      %3043 = vmatprep.subr.bf16.mxu0 0
      %3044 = vmatpush1.bf16.msra.mxu0 %v2823
      %3045 = vmatprep.subr.bf16.mxu0 0
      %3046 = vmatpush1.bf16.msra.mxu0 %v2824
      %3047 = vmatprep.subr.bf16.mxu0 0
      %3048 = vmatpush1.bf16.msra.mxu0 %v2825
      %3049 = vmatprep.subr.bf16.mxu0 0
      %3050 = vmatpush1.bf16.msra.mxu0 %v2826
      %3051 = vmatprep.subr.bf16.mxu0 0
      %3052 = vmatpush1.bf16.msra.mxu0 %v2827
      %3053 = vmatprep.mubr.bf16.mxu0 %v2536
      %3054 = vmatmul.mubr.bf16.gmra.mrb[0].mxu0 %v2535
      %v3055 = vpop.f32.mrb[0].mxu0
      %v3056 = vadd.f32 %v2895, %v3055
      %v3057 = vpop.f32.mrb[0].mxu0
      %v3058 = vpop.f32.mrb[0].mxu0
      %v3059 = vadd.f32 %v2898, %v3058
      %v3060 = vpop.f32.mrb[0].mxu0
      %3061 = vmatprep.mubr.bf16.mxu0 %v2540
      %3062 = vmatmul.mubr.bf16.gmra.mrb[0].mxu0 %v2539
      %v3063 = vpop.f32.mrb[0].mxu0
      %v3064 = vadd.f32 %v2903, %v3063
      %v3065 = vpop.f32.mrb[0].mxu0
      %v3066 = vpop.f32.mrb[0].mxu0
      %v3067 = vadd.f32 %v2906, %v3066
      %v3068 = vpop.f32.mrb[0].mxu0
      %3069 = vmatprep.mubr.bf16.mxu0 %v2544
      %3070 = vmatmul.mubr.bf16.gmra.mrb[0].mxu0 %v2543
      %v3071 = vpop.f32.mrb[0].mxu0
      %v3072 = vadd.f32 %v2911, %v3071
      %v3073 = vpop.f32.mrb[0].mxu0
      %v3074 = vpop.f32.mrb[0].mxu0
      %v3075 = vadd.f32 %v2914, %v3074
      %v3076 = vpop.f32.mrb[0].mxu0
      %3077 = vmatprep.mubr.bf16.mxu0 %v2548
      %3078 = vmatmul.mubr.bf16.gmra.mrb[0].mxu0 %v2547
      %v3079 = vpop.f32.mrb[0].mxu0
      %v3080 = vadd.f32 %v2919, %v3079
      %v3081 = vpop.f32.mrb[0].mxu0
      %v3082 = vpop.f32.mrb[0].mxu0
      %v3083 = vadd.f32 %v2922, %v3082
      %v3084 = vpop.f32.mrb[0].mxu0
      %3085 = vmatprep.mubr.bf16.mxu0 %v2552
      %3086 = vmatmul.mubr.bf16.gmra.mrb[0].mxu0 %v2551
      %v3087 = vpop.f32.mrb[0].mxu0
      %v3088 = vadd.f32 %v2927, %v3087
      %v3089 = vpop.f32.mrb[0].mxu0
      %v3090 = vpop.f32.mrb[0].mxu0
      %v3091 = vadd.f32 %v2930, %v3090
      %v3092 = vpop.f32.mrb[0].mxu0
      %3093 = vmatprep.mubr.bf16.mxu0 %v2556
      %3094 = vmatmul.mubr.bf16.gmra.mrb[0].mxu0 %v2555
      %v3095 = vpop.f32.mrb[0].mxu0
      %v3096 = vadd.f32 %v2935, %v3095
      %v3097 = vpop.f32.mrb[0].mxu0
      %v3098 = vpop.f32.mrb[0].mxu0
      %v3099 = vadd.f32 %v2938, %v3098
      %v3100 = vpop.f32.mrb[0].mxu0
      %3101 = vmatprep.mubr.bf16.mxu0 %v2560
      %3102 = vmatmul.mubr.bf16.gmra.mrb[0].mxu0 %v2559
      %v3103 = vpop.f32.mrb[0].mxu0
      %v3104 = vadd.f32 %v2943, %v3103
      %v3105 = vpop.f32.mrb[0].mxu0
      %v3106 = vpop.f32.mrb[0].mxu0
      %v3107 = vadd.f32 %v2946, %v3106
      %v3108 = vpop.f32.mrb[0].mxu0
      %3109 = vmatprep.mubr.bf16.mxu0 %v2564
      %3110 = vmatmul.mubr.bf16.gmra.mrb[0].mxu0 %v2563
      %v3111 = vpop.f32.mrb[0].mxu0
      %v3112 = vadd.f32 %v2951, %v3111
      %v3113 = vpop.f32.mrb[0].mxu0
      %v3114 = vpop.f32.mrb[0].mxu0
      %v3115 = vadd.f32 %v2954, %v3114
      %v3116 = vpop.f32.mrb[0].mxu0
      %3117 = vmatprep.mubr.bf16.mxu0 %v2568
      %3118 = vmatmul.mubr.bf16.gmra.mrb[0].mxu0 %v2567
      %v3119 = vpop.f32.mrb[0].mxu0
      %v3120 = vadd.f32 %v2959, %v3119
      %v3121 = vpop.f32.mrb[0].mxu0
      %v3122 = vpop.f32.mrb[0].mxu0
      %v3123 = vadd.f32 %v2962, %v3122
      %v3124 = vpop.f32.mrb[0].mxu0
      %3125 = vmatprep.mubr.bf16.mxu0 %v2572
      %3126 = vmatmul.mubr.bf16.gmra.mrb[0].mxu0 %v2571
      %v3127 = vpop.f32.mrb[0].mxu0
      %v3128 = vadd.f32 %v2967, %v3127
      %v3129 = vpop.f32.mrb[0].mxu0
      %v3130 = vpop.f32.mrb[0].mxu0
      %v3131 = vadd.f32 %v2970, %v3130
      %v3132 = vpop.f32.mrb[0].mxu0
      %3133 = vmatprep.mubr.bf16.mxu0 %v2576
      %3134 = vmatmul.mubr.bf16.gmra.mrb[0].mxu0 %v2575
      %v3135 = vpop.f32.mrb[0].mxu0
      %v3136 = vadd.f32 %v2975, %v3135
      %v3137 = vpop.f32.mrb[0].mxu0
      %v3138 = vpop.f32.mrb[0].mxu0
      %v3139 = vadd.f32 %v2978, %v3138
      %v3140 = vpop.f32.mrb[0].mxu0
      %3141 = vmatprep.mubr.bf16.mxu0 %v2580
      %3142 = vmatmul.mubr.bf16.gmra.mrb[0].mxu0 %v2579
      %v3143 = vpop.f32.mrb[0].mxu0
      %v3144 = vadd.f32 %v2983, %v3143
      %v3145 = vpop.f32.mrb[0].mxu0
      %v3146 = vpop.f32.mrb[0].mxu0
      %v3147 = vadd.f32 %v2986, %v3146
      %v3148 = vpop.f32.mrb[0].mxu0
      %3149 = vmatprep.mubr.bf16.mxu0 %v2584
      %3150 = vmatmul.mubr.bf16.gmra.mrb[0].mxu0 %v2583
      %v3151 = vpop.f32.mrb[0].mxu0
      %v3152 = vadd.f32 %v2991, %v3151
      %v3153 = vpop.f32.mrb[0].mxu0
      %v3154 = vpop.f32.mrb[0].mxu0
      %v3155 = vadd.f32 %v2994, %v3154
      %v3156 = vpop.f32.mrb[0].mxu0
      %3157 = vmatprep.mubr.bf16.mxu0 %v2588
      %3158 = vmatmul.mubr.bf16.gmra.mrb[0].mxu0 %v2587
      %v3159 = vpop.f32.mrb[0].mxu0
      %v3160 = vadd.f32 %v2999, %v3159
      %v3161 = vpop.f32.mrb[0].mxu0
      %v3162 = vpop.f32.mrb[0].mxu0
      %v3163 = vadd.f32 %v3002, %v3162
      %v3164 = vpop.f32.mrb[0].mxu0
      %3165 = vmatprep.mubr.bf16.mxu0 %v2592
      %3166 = vmatmul.mubr.bf16.gmra.mrb[0].mxu0 %v2591
      %v3167 = vpop.f32.mrb[0].mxu0
      %v3168 = vadd.f32 %v3007, %v3167
      %v3169 = vpop.f32.mrb[0].mxu0
      %v3170 = vpop.f32.mrb[0].mxu0
      %v3171 = vadd.f32 %v3010, %v3170
      %v3172 = vpop.f32.mrb[0].mxu0
      %3173 = vmatprep.mubr.bf16.mxu0 %v2596
      %3174 = vmatmul.mubr.bf16.gmra.mrb[0].mxu0 %v2595
      %v3175 = vpop.f32.mrb[0].mxu0
      %v3176 = vadd.f32 %v3015, %v3175
      %v3177 = vpop.f32.mrb[0].mxu0
      %v3178 = vpop.f32.mrb[0].mxu0
      %v3179 = vadd.f32 %v3018, %v3178
      %v3180 = vpop.f32.mrb[0].mxu0
      %3181 = vdwg.mxu0
      %v3182 = vsub.f32 0.0, %v3056
      %v3183 = vsub.f32 0.0, %v3059
      %v3184 = vsub.f32 0.0, %v3064
      %v3185 = vsub.f32 0.0, %v3067
      %v3186 = vsub.f32 0.0, %v3072
      %v3187 = vsub.f32 0.0, %v3075
      %v3188 = vsub.f32 0.0, %v3080
      %v3189 = vsub.f32 0.0, %v3083
      %v3190 = vsub.f32 0.0, %v3088
      %v3191 = vsub.f32 0.0, %v3091
      %v3192 = vsub.f32 0.0, %v3096
      %v3193 = vsub.f32 0.0, %v3099
      %v3194 = vsub.f32 0.0, %v3104
      %v3195 = vsub.f32 0.0, %v3107
      %v3196 = vsub.f32 0.0, %v3112
      %v3197 = vsub.f32 0.0, %v3115
      %v3198 = vsub.f32 0.0, %v3120
      %v3199 = vsub.f32 0.0, %v3123
      %v3200 = vsub.f32 0.0, %v3128
      %v3201 = vsub.f32 0.0, %v3131
      %v3202 = vsub.f32 0.0, %v3136
      %v3203 = vsub.f32 0.0, %v3139
      %v3204 = vsub.f32 0.0, %v3144
      %v3205 = vsub.f32 0.0, %v3147
      %v3206 = vsub.f32 0.0, %v3152
      %v3207 = vsub.f32 0.0, %v3155
      %v3208 = vsub.f32 0.0, %v3160
      %v3209 = vsub.f32 0.0, %v3163
      %v3210 = vsub.f32 0.0, %v3168
      %v3211 = vsub.f32 0.0, %v3171
      %v3212 = vsub.f32 0.0, %v3176
      %v3213 = vsub.f32 0.0, %v3179
      %v3214 = vmul.f32 %v3182, 1.442695
      %v3215 = vpow.pop %v3214
      %v3216 = vmul.f32 %v3183, 1.442695
      %v3217 = vpow.pop %v3216
      %v3218 = vmul.f32 %v3184, 1.442695
      %v3219 = vpow.pop %v3218
      %v3220 = vmul.f32 %v3185, 1.442695
      %v3221 = vpow.pop %v3220
      %v3222 = vmul.f32 %v3186, 1.442695
      %v3223 = vpow.pop %v3222
      %v3224 = vmul.f32 %v3187, 1.442695
      %v3225 = vpow.pop %v3224
      %v3226 = vmul.f32 %v3188, 1.442695
      %v3227 = vpow.pop %v3226
      %v3228 = vmul.f32 %v3189, 1.442695
      %v3229 = vpow.pop %v3228
      %v3230 = vmul.f32 %v3190, 1.442695
      %v3231 = vpow.pop %v3230
      %v3232 = vmul.f32 %v3191, 1.442695
      %v3233 = vpow.pop %v3232
      %v3234 = vmul.f32 %v3192, 1.442695
      %v3235 = vpow.pop %v3234
      %v3236 = vmul.f32 %v3193, 1.442695
      %v3237 = vpow.pop %v3236
      %v3238 = vmul.f32 %v3194, 1.442695
      %v3239 = vpow.pop %v3238
      %v3240 = vmul.f32 %v3195, 1.442695
      %v3241 = vpow.pop %v3240
      %v3242 = vmul.f32 %v3196, 1.442695
      %v3243 = vpow.pop %v3242
      %v3244 = vmul.f32 %v3197, 1.442695
      %v3245 = vpow.pop %v3244
      %v3246 = vmul.f32 %v3198, 1.442695
      %v3247 = vpow.pop %v3246
      %v3248 = vmul.f32 %v3199, 1.442695
      %v3249 = vpow.pop %v3248
      %v3250 = vmul.f32 %v3200, 1.442695
      %v3251 = vpow.pop %v3250
      %v3252 = vmul.f32 %v3201, 1.442695
      %v3253 = vpow.pop %v3252
      %v3254 = vmul.f32 %v3202, 1.442695
      %v3255 = vpow.pop %v3254
      %v3256 = vmul.f32 %v3203, 1.442695
      %v3257 = vpow.pop %v3256
      %v3258 = vmul.f32 %v3204, 1.442695
      %v3259 = vpow.pop %v3258
      %v3260 = vmul.f32 %v3205, 1.442695
      %v3261 = vpow.pop %v3260
      %v3262 = vmul.f32 %v3206, 1.442695
      %v3263 = vpow.pop %v3262
      %v3264 = vmul.f32 %v3207, 1.442695
      %v3265 = vpow.pop %v3264
      %v3266 = vmul.f32 %v3208, 1.442695
      %v3267 = vpow.pop %v3266
      %v3268 = vmul.f32 %v3209, 1.442695
      %v3269 = vpow.pop %v3268
      %v3270 = vmul.f32 %v3210, 1.442695
      %v3271 = vpow.pop %v3270
      %v3272 = vmul.f32 %v3211, 1.442695
      %v3273 = vpow.pop %v3272
      %v3274 = vmul.f32 %v3212, 1.442695
      %v3275 = vpow.pop %v3274
      %v3276 = vmul.f32 %v3213, 1.442695
      %v3277 = vpow.pop %v3276
      %v3278 = vadd.f32 %v3215, 1.0
      %v3279 = vadd.f32 %v3217, 1.0
      %v3280 = vadd.f32 %v3219, 1.0
      %v3281 = vadd.f32 %v3221, 1.0
      %v3282 = vadd.f32 %v3223, 1.0
      %v3283 = vadd.f32 %v3225, 1.0
      %v3284 = vadd.f32 %v3227, 1.0
      %v3285 = vadd.f32 %v3229, 1.0
      %v3286 = vadd.f32 %v3231, 1.0
      %v3287 = vadd.f32 %v3233, 1.0
      %v3288 = vadd.f32 %v3235, 1.0
      %v3289 = vadd.f32 %v3237, 1.0
      %v3290 = vadd.f32 %v3239, 1.0
      %v3291 = vadd.f32 %v3241, 1.0
      %v3292 = vadd.f32 %v3243, 1.0
      %v3293 = vadd.f32 %v3245, 1.0
      %v3294 = vadd.f32 %v3247, 1.0
      %v3295 = vadd.f32 %v3249, 1.0
      %v3296 = vadd.f32 %v3251, 1.0
      %v3297 = vadd.f32 %v3253, 1.0
      %v3298 = vadd.f32 %v3255, 1.0
      %v3299 = vadd.f32 %v3257, 1.0
      %v3300 = vadd.f32 %v3259, 1.0
      %v3301 = vadd.f32 %v3261, 1.0
      %v3302 = vadd.f32 %v3263, 1.0
      %v3303 = vadd.f32 %v3265, 1.0
      %v3304 = vadd.f32 %v3267, 1.0
      %v3305 = vadd.f32 %v3269, 1.0
      %v3306 = vadd.f32 %v3271, 1.0
      %v3307 = vadd.f32 %v3273, 1.0
      %v3308 = vadd.f32 %v3275, 1.0
      %v3309 = vadd.f32 %v3277, 1.0
      %v3310 = vrcp.pop %v3278
      %v3311 = vmul.f32 1.0, %v3310
      %v3312 = vrcp.pop %v3279
      %v3313 = vmul.f32 1.0, %v3312
      %v3314 = vrcp.pop %v3280
      %v3315 = vmul.f32 1.0, %v3314
      %v3316 = vrcp.pop %v3281
      %v3317 = vmul.f32 1.0, %v3316
      %v3318 = vrcp.pop %v3282
      %v3319 = vmul.f32 1.0, %v3318
      %v3320 = vrcp.pop %v3283
      %v3321 = vmul.f32 1.0, %v3320
      %v3322 = vrcp.pop %v3284
      %v3323 = vmul.f32 1.0, %v3322
      %v3324 = vrcp.pop %v3285
      %v3325 = vmul.f32 1.0, %v3324
      %v3326 = vrcp.pop %v3286
      %v3327 = vmul.f32 1.0, %v3326
      %v3328 = vrcp.pop %v3287
      %v3329 = vmul.f32 1.0, %v3328
      %v3330 = vrcp.pop %v3288
      %v3331 = vmul.f32 1.0, %v3330
      %v3332 = vrcp.pop %v3289
      %v3333 = vmul.f32 1.0, %v3332
      %v3334 = vrcp.pop %v3290
      %v3335 = vmul.f32 1.0, %v3334
      %v3336 = vrcp.pop %v3291
      %v3337 = vmul.f32 1.0, %v3336
      %v3338 = vrcp.pop %v3292
      %v3339 = vmul.f32 1.0, %v3338
      %v3340 = vrcp.pop %v3293
      %v3341 = vmul.f32 1.0, %v3340
      %v3342 = vrcp.pop %v3294
      %v3343 = vmul.f32 1.0, %v3342
      %v3344 = vrcp.pop %v3295
      %v3345 = vmul.f32 1.0, %v3344
      %v3346 = vrcp.pop %v3296
      %v3347 = vmul.f32 1.0, %v3346
      %v3348 = vrcp.pop %v3297
      %v3349 = vmul.f32 1.0, %v3348
      %v3350 = vrcp.pop %v3298
      %v3351 = vmul.f32 1.0, %v3350
      %v3352 = vrcp.pop %v3299
      %v3353 = vmul.f32 1.0, %v3352
      %v3354 = vrcp.pop %v3300
      %v3355 = vmul.f32 1.0, %v3354
      %v3356 = vrcp.pop %v3301
      %v3357 = vmul.f32 1.0, %v3356
      %v3358 = vrcp.pop %v3302
      %v3359 = vmul.f32 1.0, %v3358
      %v3360 = vrcp.pop %v3303
      %v3361 = vmul.f32 1.0, %v3360
      %v3362 = vrcp.pop %v3304
      %v3363 = vmul.f32 1.0, %v3362
      %v3364 = vrcp.pop %v3305
      %v3365 = vmul.f32 1.0, %v3364
      %v3366 = vrcp.pop %v3306
      %v3367 = vmul.f32 1.0, %v3366
      %v3368 = vrcp.pop %v3307
      %v3369 = vmul.f32 1.0, %v3368
      %v3370 = vrcp.pop %v3308
      %v3371 = vmul.f32 1.0, %v3370
      %v3372 = vrcp.pop %v3309
      %v3373 = vmul.f32 1.0, %v3372
      %v3374 = vsub.f32 1.0, %v3311
      %v3375 = vsub.f32 1.0, %v3313
      %v3376 = vsub.f32 1.0, %v3315
      %v3377 = vsub.f32 1.0, %v3317
      %v3378 = vsub.f32 1.0, %v3319
      %v3379 = vsub.f32 1.0, %v3321
      %v3380 = vsub.f32 1.0, %v3323
      %v3381 = vsub.f32 1.0, %v3325
      %v3382 = vsub.f32 1.0, %v3327
      %v3383 = vsub.f32 1.0, %v3329
      %v3384 = vsub.f32 1.0, %v3331
      %v3385 = vsub.f32 1.0, %v3333
      %v3386 = vsub.f32 1.0, %v3335
      %v3387 = vsub.f32 1.0, %v3337
      %v3388 = vsub.f32 1.0, %v3339
      %v3389 = vsub.f32 1.0, %v3341
      %v3390 = vsub.f32 1.0, %v3343
      %v3391 = vsub.f32 1.0, %v3345
      %v3392 = vsub.f32 1.0, %v3347
      %v3393 = vsub.f32 1.0, %v3349
      %v3394 = vsub.f32 1.0, %v3351
      %v3395 = vsub.f32 1.0, %v3353
      %v3396 = vsub.f32 1.0, %v3355
      %v3397 = vsub.f32 1.0, %v3357
      %v3398 = vsub.f32 1.0, %v3359
      %v3399 = vsub.f32 1.0, %v3361
      %v3400 = vsub.f32 1.0, %v3363
      %v3401 = vsub.f32 1.0, %v3365
      %v3402 = vsub.f32 1.0, %v3367
      %v3403 = vsub.f32 1.0, %v3369
      %v3404 = vsub.f32 1.0, %v3371
      %v3405 = vsub.f32 1.0, %v3373
      %3438 = vrot.lane.b32.xlu0 %v3311, 3
      %v3439 = vpop.permute.xlu0 %3438
      %3440 = vrot.lane.b32.xlu0 %v3313, 3
      %v3441 = vpop.permute.xlu0 %3440
      %3442 = vrot.lane.b32.xlu0 %v3315, 3
      %v3443 = vpop.permute.xlu0 %3442
      %3444 = vrot.lane.b32.xlu0 %v3317, 3
      %v3445 = vpop.permute.xlu0 %3444
      %3446 = vrot.lane.b32.xlu0 %v3319, 3
      %v3447 = vpop.permute.xlu0 %3446
      %3448 = vrot.lane.b32.xlu0 %v3321, 3
      %v3449 = vpop.permute.xlu0 %3448
      %3450 = vrot.lane.b32.xlu0 %v3323, 3
      %v3451 = vpop.permute.xlu0 %3450
      %3452 = vrot.lane.b32.xlu0 %v3325, 3
      %v3453 = vpop.permute.xlu0 %3452
      %3454 = vrot.lane.b32.xlu0 %v3327, 3
      %v3455 = vpop.permute.xlu0 %3454
      %3456 = vrot.lane.b32.xlu0 %v3329, 3
      %v3457 = vpop.permute.xlu0 %3456
      %3458 = vrot.lane.b32.xlu0 %v3331, 3
      %v3459 = vpop.permute.xlu0 %3458
      %3460 = vrot.lane.b32.xlu0 %v3333, 3
      %v3461 = vpop.permute.xlu0 %3460
      %3462 = vrot.lane.b32.xlu0 %v3335, 3
      %v3463 = vpop.permute.xlu0 %3462
      %3464 = vrot.lane.b32.xlu0 %v3337, 3
      %v3465 = vpop.permute.xlu0 %3464
      %3466 = vrot.lane.b32.xlu0 %v3339, 3
      %v3467 = vpop.permute.xlu0 %3466
      %3468 = vrot.lane.b32.xlu0 %v3341, 3
      %v3469 = vpop.permute.xlu0 %3468
      %3470 = vrot.lane.b32.xlu0 %v3343, 3
      %v3471 = vpop.permute.xlu0 %3470
      %3472 = vrot.lane.b32.xlu0 %v3345, 3
      %v3473 = vpop.permute.xlu0 %3472
      %3474 = vrot.lane.b32.xlu0 %v3347, 3
      %v3475 = vpop.permute.xlu0 %3474
      %3476 = vrot.lane.b32.xlu0 %v3349, 3
      %v3477 = vpop.permute.xlu0 %3476
      %3478 = vrot.lane.b32.xlu0 %v3351, 3
      %v3479 = vpop.permute.xlu0 %3478
      %3480 = vrot.lane.b32.xlu0 %v3353, 3
      %v3481 = vpop.permute.xlu0 %3480
      %3482 = vrot.lane.b32.xlu0 %v3355, 3
      %v3483 = vpop.permute.xlu0 %3482
      %3484 = vrot.lane.b32.xlu0 %v3357, 3
      %v3485 = vpop.permute.xlu0 %3484
      %3486 = vrot.lane.b32.xlu0 %v3359, 3
      %v3487 = vpop.permute.xlu0 %3486
      %3488 = vrot.lane.b32.xlu0 %v3361, 3
      %v3489 = vpop.permute.xlu0 %3488
      %3490 = vrot.lane.b32.xlu0 %v3363, 3
      %v3491 = vpop.permute.xlu0 %3490
      %3492 = vrot.lane.b32.xlu0 %v3365, 3
      %v3493 = vpop.permute.xlu0 %3492
      %3494 = vrot.lane.b32.xlu0 %v3367, 3
      %v3495 = vpop.permute.xlu0 %3494
      %3496 = vrot.lane.b32.xlu0 %v3369, 3
      %v3497 = vpop.permute.xlu0 %3496
      %3498 = vrot.lane.b32.xlu0 %v3371, 3
      %v3499 = vpop.permute.xlu0 %3498
      %3500 = vrot.lane.b32.xlu0 %v3373, 3
      %v3501 = vpop.permute.xlu0 %3500
      %vm3534 = vcmask 146432
      %v3535 = vsel %vm3534, %v3056, %v3374
      %v3536 = vsel %vm3534, %v3059, %v3375
      %v3537 = vsel %vm3534, %v3064, %v3376
      %v3538 = vsel %vm3534, %v3067, %v3377
      %v3539 = vsel %vm3534, %v3072, %v3378
      %v3540 = vsel %vm3534, %v3075, %v3379
      %v3541 = vsel %vm3534, %v3080, %v3380
      %v3542 = vsel %vm3534, %v3083, %v3381
      %v3543 = vsel %vm3534, %v3088, %v3382
      %v3544 = vsel %vm3534, %v3091, %v3383
      %v3545 = vsel %vm3534, %v3096, %v3384
      %v3546 = vsel %vm3534, %v3099, %v3385
      %v3547 = vsel %vm3534, %v3104, %v3386
      %v3548 = vsel %vm3534, %v3107, %v3387
      %v3549 = vsel %vm3534, %v3112, %v3388
      %v3550 = vsel %vm3534, %v3115, %v3389
      %v3551 = vsel %vm3534, %v3120, %v3390
      %v3552 = vsel %vm3534, %v3123, %v3391
      %v3553 = vsel %vm3534, %v3128, %v3392
      %v3554 = vsel %vm3534, %v3131, %v3393
      %v3555 = vsel %vm3534, %v3136, %v3394
      %v3556 = vsel %vm3534, %v3139, %v3395
      %v3557 = vsel %vm3534, %v3144, %v3396
      %v3558 = vsel %vm3534, %v3147, %v3397
      %v3559 = vsel %vm3534, %v3152, %v3398
      %v3560 = vsel %vm3534, %v3155, %v3399
      %v3561 = vsel %vm3534, %v3160, %v3400
      %v3562 = vsel %vm3534, %v3163, %v3401
      %v3563 = vsel %vm3534, %v3168, %v3402
      %v3564 = vsel %vm3534, %v3171, %v3403
      %v3565 = vsel %vm3534, %v3176, %v3404
      %v3566 = vsel %vm3534, %v3179, %v3405
      %vm3567 = vcmask 171008
      %v3568 = vsel %vm3567, %v3535, %v3439
      %v3569 = vsel %vm3567, %v3536, %v3441
      %v3570 = vsel %vm3567, %v3537, %v3443
      %v3571 = vsel %vm3567, %v3538, %v3445
      %v3572 = vsel %vm3567, %v3539, %v3447
      %v3573 = vsel %vm3567, %v3540, %v3449
      %v3574 = vsel %vm3567, %v3541, %v3451
      %v3575 = vsel %vm3567, %v3542, %v3453
      %v3576 = vsel %vm3567, %v3543, %v3455
      %v3577 = vsel %vm3567, %v3544, %v3457
      %v3578 = vsel %vm3567, %v3545, %v3459
      %v3579 = vsel %vm3567, %v3546, %v3461
      %v3580 = vsel %vm3567, %v3547, %v3463
      %v3581 = vsel %vm3567, %v3548, %v3465
      %v3582 = vsel %vm3567, %v3549, %v3467
      %v3583 = vsel %vm3567, %v3550, %v3469
      %v3584 = vsel %vm3567, %v3551, %v3471
      %v3585 = vsel %vm3567, %v3552, %v3473
      %v3586 = vsel %vm3567, %v3553, %v3475
      %v3587 = vsel %vm3567, %v3554, %v3477
      %v3588 = vsel %vm3567, %v3555, %v3479
      %v3589 = vsel %vm3567, %v3556, %v3481
      %v3590 = vsel %vm3567, %v3557, %v3483
      %v3591 = vsel %vm3567, %v3558, %v3485
      %v3592 = vsel %vm3567, %v3559, %v3487
      %v3593 = vsel %vm3567, %v3560, %v3489
      %v3594 = vsel %vm3567, %v3561, %v3491
      %v3595 = vsel %vm3567, %v3562, %v3493
      %v3596 = vsel %vm3567, %v3563, %v3495
      %v3597 = vsel %vm3567, %v3564, %v3497
      %v3598 = vsel %vm3567, %v3565, %v3499
      %v3599 = vsel %vm3567, %v3566, %v3501
      %vm3600 = vcmask 195584
      %v3601 = vsel %vm3600, %v3568, 0.0
      %v3602 = vsel %vm3600, %v3569, 0.0
      %v3603 = vsel %vm3600, %v3570, 0.0
      %v3604 = vsel %vm3600, %v3571, 0.0
      %v3605 = vsel %vm3600, %v3572, 0.0
      %v3606 = vsel %vm3600, %v3573, 0.0
      %v3607 = vsel %vm3600, %v3574, 0.0
      %v3608 = vsel %vm3600, %v3575, 0.0
      %v3609 = vsel %vm3600, %v3576, 0.0
      %v3610 = vsel %vm3600, %v3577, 0.0
      %v3611 = vsel %vm3600, %v3578, 0.0
      %v3612 = vsel %vm3600, %v3579, 0.0
      %v3613 = vsel %vm3600, %v3580, 0.0
      %v3614 = vsel %vm3600, %v3581, 0.0
      %v3615 = vsel %vm3600, %v3582, 0.0
      %v3616 = vsel %vm3600, %v3583, 0.0
      %v3617 = vsel %vm3600, %v3584, 0.0
      %v3618 = vsel %vm3600, %v3585, 0.0
      %v3619 = vsel %vm3600, %v3586, 0.0
      %v3620 = vsel %vm3600, %v3587, 0.0
      %v3621 = vsel %vm3600, %v3588, 0.0
      %v3622 = vsel %vm3600, %v3589, 0.0
      %v3623 = vsel %vm3600, %v3590, 0.0
      %v3624 = vsel %vm3600, %v3591, 0.0
      %v3625 = vsel %vm3600, %v3592, 0.0
      %v3626 = vsel %vm3600, %v3593, 0.0
      %v3627 = vsel %vm3600, %v3594, 0.0
      %v3628 = vsel %vm3600, %v3595, 0.0
      %v3629 = vsel %vm3600, %v3596, 0.0
      %v3630 = vsel %vm3600, %v3597, 0.0
      %v3631 = vsel %vm3600, %v3598, 0.0
      %v3632 = vsel %vm3600, %v3599, 0.0
      %3633 = vst [vmem:[%s224] sm:$0xff] %v3601
      %3634 = vst [vmem:[%s224 + $0x8] sm:$0xff] %v3602
      %3635 = vst [vmem:[%s224 + $0x10] sm:$0xff] %v3603
      %3636 = vst [vmem:[%s224 + $0x18] sm:$0xff] %v3604
      %3637 = vst [vmem:[%s224 + $0x20] sm:$0xff] %v3605
      %3638 = vst [vmem:[%s224 + $0x28] sm:$0xff] %v3606
      %3639 = vst [vmem:[%s224 + $0x30] sm:$0xff] %v3607
      %3640 = vst [vmem:[%s224 + $0x38] sm:$0xff] %v3608
      %3641 = vst [vmem:[%s224 + $0x40] sm:$0xff] %v3609
      %3642 = vst [vmem:[%s224 + $0x48] sm:$0xff] %v3610
      %3643 = vst [vmem:[%s224 + $0x50] sm:$0xff] %v3611
      %3644 = vst [vmem:[%s224 + $0x58] sm:$0xff] %v3612
      %3645 = vst [vmem:[%s224 + $0x60] sm:$0xff] %v3613
      %3646 = vst [vmem:[%s224 + $0x68] sm:$0xff] %v3614
      %3647 = vst [vmem:[%s224 + $0x70] sm:$0xff] %v3615
      %3648 = vst [vmem:[%s224 + $0x78] sm:$0xff] %v3616
      %3649 = vst [vmem:[%s224 + $0x80] sm:$0xff] %v3617
      %3650 = vst [vmem:[%s224 + $0x88] sm:$0xff] %v3618
      %3651 = vst [vmem:[%s224 + $0x90] sm:$0xff] %v3619
      %3652 = vst [vmem:[%s224 + $0x98] sm:$0xff] %v3620
      %3653 = vst [vmem:[%s224 + $0xa0] sm:$0xff] %v3621
      %3654 = vst [vmem:[%s224 + $0xa8] sm:$0xff] %v3622
      %3655 = vst [vmem:[%s224 + $0xb0] sm:$0xff] %v3623
      %3656 = vst [vmem:[%s224 + $0xb8] sm:$0xff] %v3624
      %3657 = vst [vmem:[%s224 + $0xc0] sm:$0xff] %v3625
      %3658 = vst [vmem:[%s224 + $0xc8] sm:$0xff] %v3626
      %3659 = vst [vmem:[%s224 + $0xd0] sm:$0xff] %v3627
      %3660 = vst [vmem:[%s224 + $0xd8] sm:$0xff] %v3628
      %3661 = vst [vmem:[%s224 + $0xe0] sm:$0xff] %v3629
      %3662 = vst [vmem:[%s224 + $0xe8] sm:$0xff] %v3630
      %3663 = vst [vmem:[%s224 + $0xf0] sm:$0xff] %v3631
      %3664 = vst [vmem:[%s224 + $0xf8] sm:$0xff] %v3632
      %p3665 = scmp.lt.s32.totalorder %s16, 1
      %s3666 = scalar_select %p3665, %s16, 1
      %s3667 = smul.addr %s3666, 32
      %s3668 = smul.addr %s3667, 8
      %s3669 = scalar_lea.vmem %s5, %s3668
      // Predicated region
      $region41: #{_rpn_forward_impl.1} parent=39 // pred_check
        %p3670 = pneg %p144
      $region42: #{_rpn_forward_impl.1} parent=39 // pred_check_branch
        %3672 = sbr.rel (%p3670) target = $region44
      $region43: #{_rpn_forward_impl.1} parent=39 // pred_region
        _
      $region44: #{_rpn_forward_impl.1} parent=39 // pred_fallthru
        _
    $region40: #{_rpn_forward_impl.1} parent=5 // pred_fallthru
      _
    %p3673 = scmp.le.s32.totalorder 2, %s11
    // Predicated region
    $region45: #{_rpn_forward_impl.1} parent=5 // pred_check
      %p3674 = pneg %p3673
    $region46: #{_rpn_forward_impl.1} parent=5 // pred_check_branch
      %3676 = sbr.rel (%p3674) target = $region48
    $region47: #{_rpn_forward_impl.1} parent=5 // pred_region
      %s3677 = ssub.s32 %s11, 2
      // Predicated region
      $region49: #{_rpn_forward_impl.1} parent=47 // pred_check
        %p3678 = pneg %p150
      $region50: #{_rpn_forward_impl.1} parent=47 // pred_check_branch
        %3680 = sbr.rel (%p3678) target = $region52
      $region51: #{_rpn_forward_impl.1} parent=47 // pred_region
        %p3681 = scmp.lt.s32.totalorder %s17, 1
        %s3682 = scalar_select %p3681, %s17, 1
        %s3683 = smul.addr %s3682, 32
        %s3684 = smul.addr %s3683, 8
        %s3685 = scalar_lea.vmem %s5, %s3684
      $region52: #{_rpn_forward_impl.1} parent=47 // pred_fallthru
        _
    $region48: #{_rpn_forward_impl.1} parent=5 // pred_fallthru
      _
  $region6: #{_rpn_forward_impl.1} parent=0 // loop_footer
    %s15 = sadd.s32 1, %s11
  $region7: #{_rpn_forward_impl.1} parent=0 // loop_footer_branch
    %10 = sbr.rel target = $region3
  $region8: #{_rpn_forward_impl.1} parent=0 // loop_exit
    _

</llo_original>
